<compile_context>
chip_gen: v7x
topology: tpu7x:2x2x1
jax: 0.10.0
libtpu: 0.0.40
codegen_flags: <defaults>
</compile_context>

<pallas_src>
import jax
import jax.numpy as jnp
import numpy as np
from jax.experimental import pallas as pl
from jax.experimental.pallas import tpu as pltpu


# --------------------------------------------------------------------------
# Pallas kernel: entire forward pass, all operands resident in VMEM.
# --------------------------------------------------------------------------
def gnn_encoder_kernel(
    # data
    x_ref, ea_ref, src_ref, dst_ref, bat_ref, gf_ref,
    # encoders
    wn_ref, bn_ref, we_ref, be_ref,
    # stacked per-layer GraphConv (lin_rel & lin_root fused on K) / BN params
    wcat_ref, brel_ref, gamma_ref, beta_ref,
    # global attention gate MLP
    wg1_ref, bg1_ref, wg2_ref, bg2_ref,
    # global feature encoder + integrator (single fused [2H, H] weight)
    wgf_ref, bgf_ref, wi_ref, bi_ref,
    # outputs
    xout_ref, gout_ref,
):
    f32 = jnp.float32
    bf16 = jnp.bfloat16

    N = x_ref.shape[0]
    E = ea_ref.shape[0]
    Bg = gf_ref.shape[0]

    # ---- gather / scatter / segment masks built in-kernel from int32 ids ----
    src = src_ref[...]                                                   # [E, 1]
    dst = dst_ref[...]                                                   # [1, E]
    bat = bat_ref[...]                                                   # [1, N]
    G = (jax.lax.broadcasted_iota(jnp.int32, (E, N), 1) == src).astype(bf16)  # [E, N]
    S = (jax.lax.broadcasted_iota(jnp.int32, (N, E), 0) == dst).astype(bf16)  # [N, E]
    seg_bool = jax.lax.broadcasted_iota(jnp.int32, (Bg, N), 0) == bat          # [B, N]
    seg = seg_bool.astype(f32)

    # ---- node / edge encoders (bf16 MXU operands, f32 accumulation) ---------
    x = jnp.dot(x_ref[...].astype(bf16), wn_ref[...],
                preferred_element_type=f32) + bn_ref[...]                # [N, H]
    eh = jnp.dot(ea_ref[...].astype(bf16), we_ref[...],
                 preferred_element_type=f32) + be_ref[...]               # [E, H]

    num_layers = wcat_ref.shape[0]
    # static unroll — fine at this depth; switch to lax.fori_loop with dynamic
    # leading-axis indexing of the stacked refs if num_layers grows beyond ~8.
    for i in range(num_layers):
        identity = x
        x_bf = x.astype(bf16)
        # message passing:  agg_i = sum_{e: dst(e)=i} edge_h_e * x_{src(e)}
        x_src = jnp.dot(G, x_bf, preferred_element_type=f32)            # [E, H]
        msg = (x_src * eh).astype(bf16)                                  # [E, H]
        agg = jnp.dot(S, msg, preferred_element_type=f32)                # [N, H]
        # fused lin_rel + lin_root: [N, 2H] @ [2H, H]  (K = 256 fills the MXU)
        cat = jnp.concatenate([agg.astype(bf16), x_bf], axis=1)         # [N, 2H]
        h = jnp.dot(cat, wcat_ref[i], preferred_element_type=f32) + brel_ref[i]
        # BatchNorm1d (training mode, biased variance over all nodes) — f32
        mean = jnp.mean(h, axis=0, keepdims=True)
        var = jnp.mean(jnp.square(h - mean), axis=0, keepdims=True)
        hn = (h - mean) * jax.lax.rsqrt(var + 1e-5)
        hn = hn * gamma_ref[i] + beta_ref[i]
        # residual + relu
        x = jnp.maximum(hn + identity, 0.0)

    xout_ref[...] = x.astype(xout_ref.dtype)

    # ---- GlobalAttention pooling, per-graph softmax in [B, N] layout --------
    x_bf = x.astype(bf16)
    g1 = jnp.maximum(
        jnp.dot(x_bf, wg1_ref[...], preferred_element_type=f32) + bg1_ref[...], 0.0)
    gate = jnp.dot(g1.astype(bf16), wg2_ref[...],
                   preferred_element_type=f32) + bg2_ref[...]            # [N, 1]
    gate_row = gate.T                                                    # [1, N]

    masked = jnp.where(seg_bool, gate_row, -1e30)                        # [B, N]
    gmax = jnp.max(masked, axis=1, keepdims=True)                        # [B, 1]
    e = jnp.exp(masked - gmax) * seg                                     # [B, N]
    denom = jnp.sum(e, axis=1, keepdims=True)                            # [B, 1]
    attn = e * pl.reciprocal(denom, approx=True)                         # [B, N]
    pooled = jnp.dot(attn.astype(bf16), x_bf, preferred_element_type=f32)  # [B, H]

    # ---- global feature integration (single fused [B, 2H] @ [2H, H]) --------
    gf_enc = jnp.dot(gf_ref[...].astype(bf16), wgf_ref[...],
                     preferred_element_type=f32) + bgf_ref[...]          # [B, H]
    gcat = jnp.concatenate([pooled.astype(bf16), gf_enc.astype(bf16)], axis=1)
    gout = jnp.dot(gcat, wi_ref[...], preferred_element_type=f32) + bi_ref[...]
    gout_ref[...] = gout.astype(gout_ref.dtype)


# --------------------------------------------------------------------------
# Host wrapper
# --------------------------------------------------------------------------
def gnn_encoder_forward(x, edge_index, edge_attr, global_features, batch, params):
    N = x.shape[0]
    E = edge_attr.shape[0]
    B = global_features.shape[0]
    H = params["wn"].shape[1]
    L = params["wrel"].shape[0]
    bf16 = jnp.bfloat16

    # tiny int32 index arrays instead of dense one-hot matrices
    src2d = edge_index[0].astype(jnp.int32).reshape(E, 1)
    dst2d = edge_index[1].astype(jnp.int32).reshape(1, E)
    bat2d = batch.astype(jnp.int32).reshape(1, N)

    # stack lin_rel / lin_root along the contraction axis: [L, 2H, H]
    wcat = jnp.concatenate([params["wrel"], params["wroot"]], axis=1).astype(bf16)

    kernel_args = (
        x, edge_attr, src2d, dst2d, bat2d, global_features,
        params["wn"].astype(bf16), params["bn"],
        params["we"].astype(bf16), params["be"],
        wcat, params["brel"], params["gamma"], params["beta"],
        params["wg1"].astype(bf16), params["bg1"],
        params["wg2"].astype(bf16), params["bg2"],
        params["wgf"].astype(bf16), params["bgf"],
        params["wi"].astype(bf16), params["bi"],
    )

    out_shape = (jax.ShapeDtypeStruct((N, H), jnp.float32),
                 jax.ShapeDtypeStruct((B, H), jnp.float32))

    # advisory cost estimate + explicit scoped-VMEM budget (sized to footprint)
    flops = 2 * (N * x.shape[1] * H + E * edge_attr.shape[1] * H
                 + L * (2 * E * N * H + 2 * N * H * H)
                 + N * H * H + N * H + B * N * H
                 + B * 8 * H + 2 * B * H * H)
    transcendentals = B * N + L * H + B
    io_bytes = (sum(int(a.size) * a.dtype.itemsize for a in kernel_args)
                + (N + B) * H * 4)
    scratch_bytes = ((2 * E * N + B * N) * 2                       # in-kernel masks
                     + (10 * N * H + 3 * E * H + 4 * B * H) * 4)   # f32/bf16 temporaries
    vmem_limit = int(min(max(2 * (io_bytes + scratch_bytes), 8 * 2 ** 20),
                         32 * 2 ** 20))

    vmem = pl.BlockSpec(memory_space=pltpu.MemorySpace.VMEM)
    return pl.pallas_call(
        gnn_encoder_kernel,
        out_shape=out_shape,
        in_specs=[vmem] * len(kernel_args),
        out_specs=(vmem, vmem),
        compiler_params=pltpu.CompilerParams(vmem_limit_bytes=vmem_limit),
        cost_estimate=pl.CostEstimate(flops=int(flops),
                                      transcendentals=int(transcendentals),
                                      bytes_accessed=int(io_bytes)),
    )(*kernel_args)


# --------------------------------------------------------------------------
# Pure-JAX f32 reference (for validation)
# --------------------------------------------------------------------------
def gnn_encoder_reference(x, edge_index, edge_attr, global_features, batch, params):
    B = global_features.shape[0]
    N = x.shape[0]
    src, dst = edge_index[0], edge_index[1]

    x = x @ params["wn"] + params["bn"]
    eh = edge_attr @ params["we"] + params["be"]
    L = params["wrel"].shape[0]
    for i in range(L):
        identity = x
        msg = x[src] * eh
        agg = jax.ops.segment_sum(msg, dst, num_segments=N)
        h = agg @ params["wrel"][i] + params["brel"][i] + x @ params["wroot"][i]
        mean = h.mean(axis=0, keepdims=True)
        var = ((h - mean) ** 2).mean(axis=0, keepdims=True)
        hn = (h - mean) / jnp.sqrt(var + 1e-5)
        hn = hn * params["gamma"][i] + params["beta"][i]
        x = jnp.maximum(hn + identity, 0.0)

    g1 = jnp.maximum(x @ params["wg1"] + params["bg1"], 0.0)
    gate = (g1 @ params["wg2"] + params["bg2"])[:, 0]                 # [N]
    gmax = jax.ops.segment_max(gate, batch, num_segments=B)
    e = jnp.exp(gate - gmax[batch])
    denom = jax.ops.segment_sum(e, batch, num_segments=B)
    attn = e / denom[batch]
    pooled = jax.ops.segment_sum(attn[:, None] * x, batch, num_segments=B)

    gf_enc = global_features @ params["wgf"] + params["bgf"]
    gout = jnp.concatenate([pooled, gf_enc], axis=1) @ params["wi"] + params["bi"]
    return x, gout


# --------------------------------------------------------------------------
# Deterministic parameter / input construction
# --------------------------------------------------------------------------
def _linear(key, in_f, out_f):
    kw, kb = jax.random.split(key)
    bound = 1.0 / np.sqrt(in_f)
    w = jax.random.uniform(kw, (out_f, in_f), jnp.float32, -bound, bound)
    b = jax.random.uniform(kb, (out_f,), jnp.float32, -bound, bound)
    return w, b


def make_params(key, node_features, edge_features, hidden_dim, num_layers):
    keys = jax.random.split(key, 8 + 3 * num_layers)
    ki = iter(keys)
    wn, bn = _linear(next(ki), node_features, hidden_dim)
    we, be = _linear(next(ki), edge_features, hidden_dim)

    wrel, brel, wroot, gamma, beta = [], [], [], [], []
    for _ in range(num_layers):
        w1, b1 = _linear(next(ki), hidden_dim, hidden_dim)   # lin_rel (with bias)
        w2, _ = _linear(next(ki), hidden_dim, hidden_dim)    # lin_root (no bias in PyG)
        wrel.append(w1.T); brel.append(b1[None, :]); wroot.append(w2.T)
        g = 1.0 + 0.1 * jax.random.normal(next(ki), (hidden_dim,), jnp.float32)
        gamma.append(g[None, :]); beta.append(0.1 * g[None, :])

    wg1, bg1 = _linear(next(ki), hidden_dim, hidden_dim)
    wg2, bg2 = _linear(next(ki), hidden_dim, 1)
    wgf, bgf = _linear(next(ki), 8, hidden_dim)
    wi, bi = _linear(next(ki), 2 * hidden_dim, hidden_dim)

    return {
        # weights pre-transposed to [in, out]; biases [1, out];
        # per-layer params stacked as [L, 1, out] / [L, in, out]
        "wn": wn.T, "bn": bn[None, :],
        "we": we.T, "be": be[None, :],
        "wrel": jnp.stack(wrel), "brel": jnp.stack(brel), "wroot": jnp.stack(wroot),
        "gamma": jnp.stack(gamma), "beta": jnp.stack(beta),
        "wg1": wg1.T, "bg1": bg1[None, :],
        "wg2": wg2.T, "bg2": bg2[None, :],
        "wgf": wgf.T, "bgf": bgf[None, :],
        "wi": wi.T, "bi": bi[None, :],
    }


if __name__ == "__main__":
    # small shapes consistent with the module (hidden_dim = 128, lane-dense)
    B = 2                    # graphs in the batch
    NPG = 32                 # nodes per graph
    N = B * NPG              # total nodes
    E_PER = 64               # edges per graph
    E = B * E_PER
    NODE_F, EDGE_F, HIDDEN, LAYERS = 16, 5, 128, 3

    key = jax.random.PRNGKey(0)
    k_x, k_ea, k_gf, k_es, k_ed, k_p = jax.random.split(key, 6)

    x = jax.random.normal(k_x, (N, NODE_F), jnp.float32)
    edge_attr = jax.random.normal(k_ea, (E, EDGE_F), jnp.float32)
    global_features = jax.random.normal(k_gf, (B, 8), jnp.float32)

    # edges restricted to lie inside each graph
    src = jnp.concatenate([
        jax.random.randint(jax.random.fold_in(k_es, b), (E_PER,), 0, NPG) + b * NPG
        for b in range(B)])
    dst = jnp.concatenate([
        jax.random.randint(jax.random.fold_in(k_ed, b), (E_PER,), 0, NPG) + b * NPG
        for b in range(B)])
    edge_index = jnp.stack([src, dst]).astype(jnp.int32)
    batch = jnp.repeat(jnp.arange(B, dtype=jnp.int32), NPG)

    params = make_params(k_p, NODE_F, EDGE_F, HIDDEN, LAYERS)

    x_out, g_out = gnn_encoder_forward(
        x, edge_index, edge_attr, global_features, batch, params)
    jax.block_until_ready((x_out, g_out))

    x_ref, g_ref = gnn_encoder_reference(
        x, edge_index, edge_attr, global_features, batch, params)

    assert x_out.shape == (N, HIDDEN) and g_out.shape == (B, HIDDEN)
    assert bool(jnp.all(jnp.isfinite(x_out))) and bool(jnp.all(jnp.isfinite(g_out)))
    # kernel uses bf16 MXU operands (f32 accumulate) vs the pure-f32 reference
    np.testing.assert_allclose(np.asarray(x_out), np.asarray(x_ref),
                               rtol=5e-2, atol=7.5e-2)
    np.testing.assert_allclose(np.asarray(g_out), np.asarray(g_ref),
                               rtol=5e-2, atol=7.5e-2)

    print("KERNEL_OK")
</pallas_src>

<mosaic_0001>
module attributes {stable_mosaic.version = 11 : i64} {
  func.func @gnn_encoder_kernel(%arg0: memref<64x16xf32, #tpu.memory_space<vmem>>, %arg1: memref<128x5xf32, #tpu.memory_space<vmem>>, %arg2: memref<128x1xi32, #tpu.memory_space<vmem>>, %arg3: memref<1x128xi32, #tpu.memory_space<vmem>>, %arg4: memref<1x64xi32, #tpu.memory_space<vmem>>, %arg5: memref<2x8xf32, #tpu.memory_space<vmem>>, %arg6: memref<16x128xbf16, #tpu.memory_space<vmem>>, %arg7: memref<1x128xf32, #tpu.memory_space<vmem>>, %arg8: memref<5x128xbf16, #tpu.memory_space<vmem>>, %arg9: memref<1x128xf32, #tpu.memory_space<vmem>>, %arg10: memref<3x256x128xbf16, #tpu.memory_space<vmem>>, %arg11: memref<3x1x128xf32, #tpu.memory_space<vmem>>, %arg12: memref<3x1x128xf32, #tpu.memory_space<vmem>>, %arg13: memref<3x1x128xf32, #tpu.memory_space<vmem>>, %arg14: memref<128x128xbf16, #tpu.memory_space<vmem>>, %arg15: memref<1x128xf32, #tpu.memory_space<vmem>>, %arg16: memref<128x1xbf16, #tpu.memory_space<vmem>>, %arg17: memref<1x1xf32, #tpu.memory_space<vmem>>, %arg18: memref<8x128xbf16, #tpu.memory_space<vmem>>, %arg19: memref<1x128xf32, #tpu.memory_space<vmem>>, %arg20: memref<256x128xbf16, #tpu.memory_space<vmem>>, %arg21: memref<1x128xf32, #tpu.memory_space<vmem>>, %arg22: memref<64x128xf32, #tpu.memory_space<vmem>>, %arg23: memref<2x128xf32, #tpu.memory_space<vmem>>) attributes {dimension_semantics = [], scalar_prefetch = 0 : i64, scratch_operands = 0 : i64, tpu.core_type = #tpu.core_type<tc>} {
    %c0 = arith.constant 0 : index
    %c0_0 = arith.constant 0 : index
    %0 = vector.load %arg2[%c0, %c0_0] : memref<128x1xi32, #tpu.memory_space<vmem>>, vector<128x1xi32>
    %c0_1 = arith.constant 0 : index
    %c0_2 = arith.constant 0 : index
    %1 = vector.load %arg3[%c0_1, %c0_2] : memref<1x128xi32, #tpu.memory_space<vmem>>, vector<1x128xi32>
    %c0_3 = arith.constant 0 : index
    %c0_4 = arith.constant 0 : index
    %2 = vector.load %arg4[%c0_3, %c0_4] : memref<1x64xi32, #tpu.memory_space<vmem>>, vector<1x64xi32>
    %3 = tpu.iota {dimensions = array<i32: 1>} : vector<128x64xi32>
    %4 = vector.broadcast %0 : vector<128x1xi32> to vector<128x64xi32>
    %5 = arith.cmpi eq, %3, %4 : vector<128x64xi32>
    %6 = arith.extui %5 : vector<128x64xi1> to vector<128x64xi32>
    %7 = arith.sitofp %6 : vector<128x64xi32> to vector<128x64xf32>
    %8 = arith.truncf %7 : vector<128x64xf32> to vector<128x64xbf16>
    %9 = tpu.iota {dimensions = array<i32: 0>} : vector<64x128xi32>
    %10 = vector.broadcast %1 : vector<1x128xi32> to vector<64x128xi32>
    %11 = arith.cmpi eq, %9, %10 : vector<64x128xi32>
    %12 = arith.extui %11 : vector<64x128xi1> to vector<64x128xi32>
    %13 = arith.sitofp %12 : vector<64x128xi32> to vector<64x128xf32>
    %14 = arith.truncf %13 : vector<64x128xf32> to vector<64x128xbf16>
    %15 = tpu.iota {dimensions = array<i32: 0>} : vector<2x64xi32>
    %16 = vector.broadcast %2 : vector<1x64xi32> to vector<2x64xi32>
    %17 = arith.cmpi eq, %15, %16 : vector<2x64xi32>
    %18 = arith.extui %17 : vector<2x64xi1> to vector<2x64xi32>
    %19 = arith.sitofp %18 : vector<2x64xi32> to vector<2x64xf32>
    %c0_5 = arith.constant 0 : index
    %c0_6 = arith.constant 0 : index
    %20 = vector.load %arg0[%c0_5, %c0_6] : memref<64x16xf32, #tpu.memory_space<vmem>>, vector<64x16xf32>
    %21 = arith.truncf %20 : vector<64x16xf32> to vector<64x16xbf16>
    %c0_7 = arith.constant 0 : index
    %c0_8 = arith.constant 0 : index
    %22 = vector.load %arg6[%c0_7, %c0_8] : memref<16x128xbf16, #tpu.memory_space<vmem>>, vector<16x128xbf16>
    %cst = arith.constant dense<0.000000e+00> : vector<64x128xf32>
    %23 = tpu.matmul %21, %22, %cst {dimension_numbers = #tpu.dot_dimension_numbers<[1], [0], [0], [1], [0, 0, 1, 1], [], []>} : vector<64x16xbf16>, vector<16x128xbf16>, vector<64x128xf32> -> vector<64x128xf32>
    %c0_9 = arith.constant 0 : index
    %c0_10 = arith.constant 0 : index
    %24 = vector.load %arg7[%c0_9, %c0_10] : memref<1x128xf32, #tpu.memory_space<vmem>>, vector<1x128xf32>
    %25 = vector.broadcast %24 : vector<1x128xf32> to vector<64x128xf32>
    %26 = arith.addf %23, %25 : vector<64x128xf32>
    %c0_11 = arith.constant 0 : index
    %c0_12 = arith.constant 0 : index
    %27 = vector.load %arg1[%c0_11, %c0_12] : memref<128x5xf32, #tpu.memory_space<vmem>>, vector<128x5xf32>
    %28 = arith.truncf %27 : vector<128x5xf32> to vector<128x5xbf16>
    %c0_13 = arith.constant 0 : index
    %c0_14 = arith.constant 0 : index
    %29 = vector.load %arg8[%c0_13, %c0_14] : memref<5x128xbf16, #tpu.memory_space<vmem>>, vector<5x128xbf16>
    %cst_15 = arith.constant dense<0.000000e+00> : vector<128x128xf32>
    %30 = tpu.matmul %28, %29, %cst_15 {dimension_numbers = #tpu.dot_dimension_numbers<[1], [0], [0], [1], [0, 0, 1, 1], [], []>} : vector<128x5xbf16>, vector<5x128xbf16>, vector<128x128xf32> -> vector<128x128xf32>
    %c0_16 = arith.constant 0 : index
    %c0_17 = arith.constant 0 : index
    %31 = vector.load %arg9[%c0_16, %c0_17] : memref<1x128xf32, #tpu.memory_space<vmem>>, vector<1x128xf32>
    %32 = vector.broadcast %31 : vector<1x128xf32> to vector<128x128xf32>
    %33 = arith.addf %30, %32 : vector<128x128xf32>
    %34 = arith.truncf %26 : vector<64x128xf32> to vector<64x128xbf16>
    %cst_18 = arith.constant dense<0.000000e+00> : vector<128x128xf32>
    %35 = tpu.matmul %8, %34, %cst_18 {dimension_numbers = #tpu.dot_dimension_numbers<[1], [0], [0], [1], [0, 0, 1, 1], [], []>} : vector<128x64xbf16>, vector<64x128xbf16>, vector<128x128xf32> -> vector<128x128xf32>
    %36 = arith.mulf %35, %33 : vector<128x128xf32>
    %37 = arith.truncf %36 : vector<128x128xf32> to vector<128x128xbf16>
    %cst_19 = arith.constant dense<0.000000e+00> : vector<64x128xf32>
    %38 = tpu.matmul %14, %37, %cst_19 {dimension_numbers = #tpu.dot_dimension_numbers<[1], [0], [0], [1], [0, 0, 1, 1], [], []>} : vector<64x128xbf16>, vector<128x128xbf16>, vector<64x128xf32> -> vector<64x128xf32>
    %39 = arith.truncf %38 : vector<64x128xf32> to vector<64x128xbf16>
    %40 = tpu.concatenate %39, %34 in 1 : vector<64x128xbf16>, vector<64x128xbf16> -> vector<64x256xbf16>
    %c0_20 = arith.constant 0 : index
    %c0_21 = arith.constant 0 : index
    %c0_22 = arith.constant 0 : index
    %41 = vector.load %arg10[%c0_20, %c0_21, %c0_22] : memref<3x256x128xbf16, #tpu.memory_space<vmem>>, vector<1x256x128xbf16>
    %42 = vector.shape_cast %41 : vector<1x256x128xbf16> to vector<256x128xbf16>
    %cst_23 = arith.constant dense<0.000000e+00> : vector<64x128xf32>
    %43 = tpu.matmul %40, %42, %cst_23 {dimension_numbers = #tpu.dot_dimension_numbers<[1], [0], [0], [1], [0, 0, 1, 1], [], []>} : vector<64x256xbf16>, vector<256x128xbf16>, vector<64x128xf32> -> vector<64x128xf32>
    %c0_24 = arith.constant 0 : index
    %c0_25 = arith.constant 0 : index
    %c0_26 = arith.constant 0 : index
    %44 = vector.load %arg11[%c0_24, %c0_25, %c0_26] : memref<3x1x128xf32, #tpu.memory_space<vmem>>, vector<1x1x128xf32>
    %45 = vector.shape_cast %44 : vector<1x1x128xf32> to vector<1x128xf32>
    %46 = vector.broadcast %45 : vector<1x128xf32> to vector<64x128xf32>
    %47 = arith.addf %43, %46 : vector<64x128xf32>
    %cst_27 = arith.constant dense<0.000000e+00> : vector<128xf32>
    %48 = vector.multi_reduction <add>, %47, %cst_27 [0] : vector<64x128xf32> to vector<128xf32>
    %49 = vector.shape_cast %48 : vector<128xf32> to vector<1x128xf32>
    %cst_28 = arith.constant 6.400000e+01 : f32
    %50 = vector.broadcast %cst_28 : f32 to vector<1x128xf32>
    %51 = arith.divf %49, %50 : vector<1x128xf32>
    %52 = vector.broadcast %51 : vector<1x128xf32> to vector<64x128xf32>
    %53 = arith.subf %47, %52 : vector<64x128xf32>
    %54 = arith.mulf %53, %53 : vector<64x128xf32>
    %cst_29 = arith.constant dense<0.000000e+00> : vector<128xf32>
    %55 = vector.multi_reduction <add>, %54, %cst_29 [0] : vector<64x128xf32> to vector<128xf32>
    %56 = vector.shape_cast %55 : vector<128xf32> to vector<1x128xf32>
    %cst_30 = arith.constant 6.400000e+01 : f32
    %57 = vector.broadcast %cst_30 : f32 to vector<1x128xf32>
    %58 = arith.divf %56, %57 : vector<1x128xf32>
    %59 = vector.broadcast %51 : vector<1x128xf32> to vector<64x128xf32>
    %60 = arith.subf %47, %59 : vector<64x128xf32>
    %cst_31 = arith.constant 9.99999974E-6 : f32
    %61 = vector.broadcast %cst_31 : f32 to vector<1x128xf32>
    %62 = arith.addf %58, %61 : vector<1x128xf32>
    %63 = math.rsqrt %62 : vector<1x128xf32>
    %64 = vector.broadcast %63 : vector<1x128xf32> to vector<64x128xf32>
    %65 = arith.mulf %60, %64 : vector<64x128xf32>
    %c0_32 = arith.constant 0 : index
    %c0_33 = arith.constant 0 : index
    %c0_34 = arith.constant 0 : index
    %66 = vector.load %arg12[%c0_32, %c0_33, %c0_34] : memref<3x1x128xf32, #tpu.memory_space<vmem>>, vector<1x1x128xf32>
    %67 = vector.shape_cast %66 : vector<1x1x128xf32> to vector<1x128xf32>
    %68 = vector.broadcast %67 : vector<1x128xf32> to vector<64x128xf32>
    %69 = arith.mulf %65, %68 : vector<64x128xf32>
    %c0_35 = arith.constant 0 : index
    %c0_36 = arith.constant 0 : index
    %c0_37 = arith.constant 0 : index
    %70 = vector.load %arg13[%c0_35, %c0_36, %c0_37] : memref<3x1x128xf32, #tpu.memory_space<vmem>>, vector<1x1x128xf32>
    %71 = vector.shape_cast %70 : vector<1x1x128xf32> to vector<1x128xf32>
    %72 = vector.broadcast %71 : vector<1x128xf32> to vector<64x128xf32>
    %73 = arith.addf %69, %72 : vector<64x128xf32>
    %74 = arith.addf %73, %26 : vector<64x128xf32>
    %cst_38 = arith.constant 0.000000e+00 : f32
    %75 = vector.broadcast %cst_38 : f32 to vector<64x128xf32>
    %76 = arith.maximumf %74, %75 : vector<64x128xf32>
    %77 = arith.truncf %76 : vector<64x128xf32> to vector<64x128xbf16>
    %cst_39 = arith.constant dense<0.000000e+00> : vector<128x128xf32>
    %78 = tpu.matmul %8, %77, %cst_39 {dimension_numbers = #tpu.dot_dimension_numbers<[1], [0], [0], [1], [0, 0, 1, 1], [], []>} : vector<128x64xbf16>, vector<64x128xbf16>, vector<128x128xf32> -> vector<128x128xf32>
    %79 = arith.mulf %78, %33 : vector<128x128xf32>
    %80 = arith.truncf %79 : vector<128x128xf32> to vector<128x128xbf16>
    %cst_40 = arith.constant dense<0.000000e+00> : vector<64x128xf32>
    %81 = tpu.matmul %14, %80, %cst_40 {dimension_numbers = #tpu.dot_dimension_numbers<[1], [0], [0], [1], [0, 0, 1, 1], [], []>} : vector<64x128xbf16>, vector<128x128xbf16>, vector<64x128xf32> -> vector<64x128xf32>
    %82 = arith.truncf %81 : vector<64x128xf32> to vector<64x128xbf16>
    %83 = tpu.concatenate %82, %77 in 1 : vector<64x128xbf16>, vector<64x128xbf16> -> vector<64x256xbf16>
    %c1 = arith.constant 1 : index
    %c0_41 = arith.constant 0 : index
    %c0_42 = arith.constant 0 : index
    %84 = vector.load %arg10[%c1, %c0_41, %c0_42] : memref<3x256x128xbf16, #tpu.memory_space<vmem>>, vector<1x256x128xbf16>
    %85 = vector.shape_cast %84 : vector<1x256x128xbf16> to vector<256x128xbf16>
    %cst_43 = arith.constant dense<0.000000e+00> : vector<64x128xf32>
    %86 = tpu.matmul %83, %85, %cst_43 {dimension_numbers = #tpu.dot_dimension_numbers<[1], [0], [0], [1], [0, 0, 1, 1], [], []>} : vector<64x256xbf16>, vector<256x128xbf16>, vector<64x128xf32> -> vector<64x128xf32>
    %c1_44 = arith.constant 1 : index
    %c0_45 = arith.constant 0 : index
    %c0_46 = arith.constant 0 : index
    %87 = vector.load %arg11[%c1_44, %c0_45, %c0_46] : memref<3x1x128xf32, #tpu.memory_space<vmem>>, vector<1x1x128xf32>
    %88 = vector.shape_cast %87 : vector<1x1x128xf32> to vector<1x128xf32>
    %89 = vector.broadcast %88 : vector<1x128xf32> to vector<64x128xf32>
    %90 = arith.addf %86, %89 : vector<64x128xf32>
    %cst_47 = arith.constant dense<0.000000e+00> : vector<128xf32>
    %91 = vector.multi_reduction <add>, %90, %cst_47 [0] : vector<64x128xf32> to vector<128xf32>
    %92 = vector.shape_cast %91 : vector<128xf32> to vector<1x128xf32>
    %cst_48 = arith.constant 6.400000e+01 : f32
    %93 = vector.broadcast %cst_48 : f32 to vector<1x128xf32>
    %94 = arith.divf %92, %93 : vector<1x128xf32>
    %95 = vector.broadcast %94 : vector<1x128xf32> to vector<64x128xf32>
    %96 = arith.subf %90, %95 : vector<64x128xf32>
    %97 = arith.mulf %96, %96 : vector<64x128xf32>
    %cst_49 = arith.constant dense<0.000000e+00> : vector<128xf32>
    %98 = vector.multi_reduction <add>, %97, %cst_49 [0] : vector<64x128xf32> to vector<128xf32>
    %99 = vector.shape_cast %98 : vector<128xf32> to vector<1x128xf32>
    %cst_50 = arith.constant 6.400000e+01 : f32
    %100 = vector.broadcast %cst_50 : f32 to vector<1x128xf32>
    %101 = arith.divf %99, %100 : vector<1x128xf32>
    %102 = vector.broadcast %94 : vector<1x128xf32> to vector<64x128xf32>
    %103 = arith.subf %90, %102 : vector<64x128xf32>
    %cst_51 = arith.constant 9.99999974E-6 : f32
    %104 = vector.broadcast %cst_51 : f32 to vector<1x128xf32>
    %105 = arith.addf %101, %104 : vector<1x128xf32>
    %106 = math.rsqrt %105 : vector<1x128xf32>
    %107 = vector.broadcast %106 : vector<1x128xf32> to vector<64x128xf32>
    %108 = arith.mulf %103, %107 : vector<64x128xf32>
    %c1_52 = arith.constant 1 : index
    %c0_53 = arith.constant 0 : index
    %c0_54 = arith.constant 0 : index
    %109 = vector.load %arg12[%c1_52, %c0_53, %c0_54] : memref<3x1x128xf32, #tpu.memory_space<vmem>>, vector<1x1x128xf32>
    %110 = vector.shape_cast %109 : vector<1x1x128xf32> to vector<1x128xf32>
    %111 = vector.broadcast %110 : vector<1x128xf32> to vector<64x128xf32>
    %112 = arith.mulf %108, %111 : vector<64x128xf32>
    %c1_55 = arith.constant 1 : index
    %c0_56 = arith.constant 0 : index
    %c0_57 = arith.constant 0 : index
    %113 = vector.load %arg13[%c1_55, %c0_56, %c0_57] : memref<3x1x128xf32, #tpu.memory_space<vmem>>, vector<1x1x128xf32>
    %114 = vector.shape_cast %113 : vector<1x1x128xf32> to vector<1x128xf32>
    %115 = vector.broadcast %114 : vector<1x128xf32> to vector<64x128xf32>
    %116 = arith.addf %112, %115 : vector<64x128xf32>
    %117 = arith.addf %116, %76 : vector<64x128xf32>
    %cst_58 = arith.constant 0.000000e+00 : f32
    %118 = vector.broadcast %cst_58 : f32 to vector<64x128xf32>
    %119 = arith.maximumf %117, %118 : vector<64x128xf32>
    %120 = arith.truncf %119 : vector<64x128xf32> to vector<64x128xbf16>
    %cst_59 = arith.constant dense<0.000000e+00> : vector<128x128xf32>
    %121 = tpu.matmul %8, %120, %cst_59 {dimension_numbers = #tpu.dot_dimension_numbers<[1], [0], [0], [1], [0, 0, 1, 1], [], []>} : vector<128x64xbf16>, vector<64x128xbf16>, vector<128x128xf32> -> vector<128x128xf32>
    %122 = arith.mulf %121, %33 : vector<128x128xf32>
    %123 = arith.truncf %122 : vector<128x128xf32> to vector<128x128xbf16>
    %cst_60 = arith.constant dense<0.000000e+00> : vector<64x128xf32>
    %124 = tpu.matmul %14, %123, %cst_60 {dimension_numbers = #tpu.dot_dimension_numbers<[1], [0], [0], [1], [0, 0, 1, 1], [], []>} : vector<64x128xbf16>, vector<128x128xbf16>, vector<64x128xf32> -> vector<64x128xf32>
    %125 = arith.truncf %124 : vector<64x128xf32> to vector<64x128xbf16>
    %126 = tpu.concatenate %125, %120 in 1 : vector<64x128xbf16>, vector<64x128xbf16> -> vector<64x256xbf16>
    %c2 = arith.constant 2 : index
    %c0_61 = arith.constant 0 : index
    %c0_62 = arith.constant 0 : index
    %127 = vector.load %arg10[%c2, %c0_61, %c0_62] : memref<3x256x128xbf16, #tpu.memory_space<vmem>>, vector<1x256x128xbf16>
    %128 = vector.shape_cast %127 : vector<1x256x128xbf16> to vector<256x128xbf16>
    %cst_63 = arith.constant dense<0.000000e+00> : vector<64x128xf32>
    %129 = tpu.matmul %126, %128, %cst_63 {dimension_numbers = #tpu.dot_dimension_numbers<[1], [0], [0], [1], [0, 0, 1, 1], [], []>} : vector<64x256xbf16>, vector<256x128xbf16>, vector<64x128xf32> -> vector<64x128xf32>
    %c2_64 = arith.constant 2 : index
    %c0_65 = arith.constant 0 : index
    %c0_66 = arith.constant 0 : index
    %130 = vector.load %arg11[%c2_64, %c0_65, %c0_66] : memref<3x1x128xf32, #tpu.memory_space<vmem>>, vector<1x1x128xf32>
    %131 = vector.shape_cast %130 : vector<1x1x128xf32> to vector<1x128xf32>
    %132 = vector.broadcast %131 : vector<1x128xf32> to vector<64x128xf32>
    %133 = arith.addf %129, %132 : vector<64x128xf32>
    %cst_67 = arith.constant dense<0.000000e+00> : vector<128xf32>
    %134 = vector.multi_reduction <add>, %133, %cst_67 [0] : vector<64x128xf32> to vector<128xf32>
    %135 = vector.shape_cast %134 : vector<128xf32> to vector<1x128xf32>
    %cst_68 = arith.constant 6.400000e+01 : f32
    %136 = vector.broadcast %cst_68 : f32 to vector<1x128xf32>
    %137 = arith.divf %135, %136 : vector<1x128xf32>
    %138 = vector.broadcast %137 : vector<1x128xf32> to vector<64x128xf32>
    %139 = arith.subf %133, %138 : vector<64x128xf32>
    %140 = arith.mulf %139, %139 : vector<64x128xf32>
    %cst_69 = arith.constant dense<0.000000e+00> : vector<128xf32>
    %141 = vector.multi_reduction <add>, %140, %cst_69 [0] : vector<64x128xf32> to vector<128xf32>
    %142 = vector.shape_cast %141 : vector<128xf32> to vector<1x128xf32>
    %cst_70 = arith.constant 6.400000e+01 : f32
    %143 = vector.broadcast %cst_70 : f32 to vector<1x128xf32>
    %144 = arith.divf %142, %143 : vector<1x128xf32>
    %145 = vector.broadcast %137 : vector<1x128xf32> to vector<64x128xf32>
    %146 = arith.subf %133, %145 : vector<64x128xf32>
    %cst_71 = arith.constant 9.99999974E-6 : f32
    %147 = vector.broadcast %cst_71 : f32 to vector<1x128xf32>
    %148 = arith.addf %144, %147 : vector<1x128xf32>
    %149 = math.rsqrt %148 : vector<1x128xf32>
    %150 = vector.broadcast %149 : vector<1x128xf32> to vector<64x128xf32>
    %151 = arith.mulf %146, %150 : vector<64x128xf32>
    %c2_72 = arith.constant 2 : index
    %c0_73 = arith.constant 0 : index
    %c0_74 = arith.constant 0 : index
    %152 = vector.load %arg12[%c2_72, %c0_73, %c0_74] : memref<3x1x128xf32, #tpu.memory_space<vmem>>, vector<1x1x128xf32>
    %153 = vector.shape_cast %152 : vector<1x1x128xf32> to vector<1x128xf32>
    %154 = vector.broadcast %153 : vector<1x128xf32> to vector<64x128xf32>
    %155 = arith.mulf %151, %154 : vector<64x128xf32>
    %c2_75 = arith.constant 2 : index
    %c0_76 = arith.constant 0 : index
    %c0_77 = arith.constant 0 : index
    %156 = vector.load %arg13[%c2_75, %c0_76, %c0_77] : memref<3x1x128xf32, #tpu.memory_space<vmem>>, vector<1x1x128xf32>
    %157 = vector.shape_cast %156 : vector<1x1x128xf32> to vector<1x128xf32>
    %158 = vector.broadcast %157 : vector<1x128xf32> to vector<64x128xf32>
    %159 = arith.addf %155, %158 : vector<64x128xf32>
    %160 = arith.addf %159, %119 : vector<64x128xf32>
    %cst_78 = arith.constant 0.000000e+00 : f32
    %161 = vector.broadcast %cst_78 : f32 to vector<64x128xf32>
    %162 = arith.maximumf %160, %161 : vector<64x128xf32>
    %c0_79 = arith.constant 0 : index
    %c0_80 = arith.constant 0 : index
    %163 = vector.load %arg22[%c0_79, %c0_80] : memref<64x128xf32, #tpu.memory_space<vmem>>, vector<64x128xf32>
    tpu.vector_store %arg22[%c0_79, %c0_80], %162 {strides = array<i32>} : memref<64x128xf32, #tpu.memory_space<vmem>>, vector<64x128xf32>,
    %164 = arith.truncf %162 : vector<64x128xf32> to vector<64x128xbf16>
    %c0_81 = arith.constant 0 : index
    %c0_82 = arith.constant 0 : index
    %165 = vector.load %arg14[%c0_81, %c0_82] : memref<128x128xbf16, #tpu.memory_space<vmem>>, vector<128x128xbf16>
    %cst_83 = arith.constant dense<0.000000e+00> : vector<64x128xf32>
    %166 = tpu.matmul %164, %165, %cst_83 {dimension_numbers = #tpu.dot_dimension_numbers<[1], [0], [0], [1], [0, 0, 1, 1], [], []>} : vector<64x128xbf16>, vector<128x128xbf16>, vector<64x128xf32> -> vector<64x128xf32>
    %c0_84 = arith.constant 0 : index
    %c0_85 = arith.constant 0 : index
    %167 = vector.load %arg15[%c0_84, %c0_85] : memref<1x128xf32, #tpu.memory_space<vmem>>, vector<1x128xf32>
    %168 = vector.broadcast %167 : vector<1x128xf32> to vector<64x128xf32>
    %169 = arith.addf %166, %168 : vector<64x128xf32>
    %cst_86 = arith.constant 0.000000e+00 : f32
    %170 = vector.broadcast %cst_86 : f32 to vector<64x128xf32>
    %171 = arith.maximumf %169, %170 : vector<64x128xf32>
    %172 = arith.truncf %171 : vector<64x128xf32> to vector<64x128xbf16>
    %c0_87 = arith.constant 0 : index
    %c0_88 = arith.constant 0 : index
    %173 = vector.load %arg16[%c0_87, %c0_88] : memref<128x1xbf16, #tpu.memory_space<vmem>>, vector<128x1xbf16>
    %cst_89 = arith.constant dense<0.000000e+00> : vector<64x1xf32>
    %174 = tpu.matmul %172, %173, %cst_89 {dimension_numbers = #tpu.dot_dimension_numbers<[1], [0], [0], [1], [0, 0, 1, 1], [], []>} : vector<64x128xbf16>, vector<128x1xbf16>, vector<64x1xf32> -> vector<64x1xf32>
    %c0_90 = arith.constant 0 : index
    %c0_91 = arith.constant 0 : index
    %175 = vector.load %arg17[%c0_90, %c0_91] : memref<1x1xf32, #tpu.memory_space<vmem>>, vector<1x1xf32>
    %176 = vector.broadcast %175 : vector<1x1xf32> to vector<64x1xf32>
    %177 = arith.addf %174, %176 : vector<64x1xf32>
    %178 = tpu.transpose %177, [1, 0] : vector<64x1xf32> -> vector<1x64xf32>
    %cst_92 = arith.constant -1.000000e+30 : f32
    %179 = vector.shape_cast %178 : vector<1x64xf32> to vector<1x64xf32>
    %180 = vector.broadcast %179 : vector<1x64xf32> to vector<2x64xf32>
    %181 = vector.broadcast %cst_92 : f32 to vector<2x64xf32>
    %182 = arith.select %17, %180, %181 : vector<2x64xi1>, vector<2x64xf32>
    %cst_93 = arith.constant dense<0xFF800000> : vector<2xf32>
    %183 = vector.multi_reduction <maximumf>, %182, %cst_93 [1] : vector<2x64xf32> to vector<2xf32>
    %184 = vector.shape_cast %183 : vector<2xf32> to vector<2x1xf32>
    %185 = vector.broadcast %184 : vector<2x1xf32> to vector<2x64xf32>
    %186 = arith.subf %182, %185 : vector<2x64xf32>
    %187 = math.exp %186 : vector<2x64xf32>
    %188 = arith.mulf %187, %19 : vector<2x64xf32>
    %cst_94 = arith.constant dense<0.000000e+00> : vector<2xf32>
    %189 = vector.multi_reduction <add>, %188, %cst_94 [1] : vector<2x64xf32> to vector<2xf32>
    %190 = vector.shape_cast %189 : vector<2xf32> to vector<2x1xf32>
    %191 = tpu.reciprocal %190 {approx = true} : vector<2x1xf32> -> vector<2x1xf32>
    %192 = vector.broadcast %191 : vector<2x1xf32> to vector<2x64xf32>
    %193 = arith.mulf %188, %192 : vector<2x64xf32>
    %194 = arith.truncf %193 : vector<2x64xf32> to vector<2x64xbf16>
    %cst_95 = arith.constant dense<0.000000e+00> : vector<2x128xf32>
    %195 = tpu.matmul %194, %164, %cst_95 {dimension_numbers = #tpu.dot_dimension_numbers<[1], [0], [0], [1], [0, 0, 1, 1], [], []>} : vector<2x64xbf16>, vector<64x128xbf16>, vector<2x128xf32> -> vector<2x128xf32>
    %c0_96 = arith.constant 0 : index
    %c0_97 = arith.constant 0 : index
    %196 = vector.load %arg5[%c0_96, %c0_97] : memref<2x8xf32, #tpu.memory_space<vmem>>, vector<2x8xf32>
    %197 = arith.truncf %196 : vector<2x8xf32> to vector<2x8xbf16>
    %c0_98 = arith.constant 0 : index
    %c0_99 = arith.constant 0 : index
    %198 = vector.load %arg18[%c0_98, %c0_99] : memref<8x128xbf16, #tpu.memory_space<vmem>>, vector<8x128xbf16>
    %cst_100 = arith.constant dense<0.000000e+00> : vector<2x128xf32>
    %199 = tpu.matmul %197, %198, %cst_100 {dimension_numbers = #tpu.dot_dimension_numbers<[1], [0], [0], [1], [0, 0, 1, 1], [], []>} : vector<2x8xbf16>, vector<8x128xbf16>, vector<2x128xf32> -> vector<2x128xf32>
    %c0_101 = arith.constant 0 : index
    %c0_102 = arith.constant 0 : index
    %200 = vector.load %arg19[%c0_101, %c0_102] : memref<1x128xf32, #tpu.memory_space<vmem>>, vector<1x128xf32>
    %201 = vector.broadcast %200 : vector<1x128xf32> to vector<2x128xf32>
    %202 = arith.addf %199, %201 : vector<2x128xf32>
    %203 = arith.truncf %195 : vector<2x128xf32> to vector<2x128xbf16>
    %204 = arith.truncf %202 : vector<2x128xf32> to vector<2x128xbf16>
    %205 = tpu.concatenate %203, %204 in 1 : vector<2x128xbf16>, vector<2x128xbf16> -> vector<2x256xbf16>
    %c0_103 = arith.constant 0 : index
    %c0_104 = arith.constant 0 : index
    %206 = vector.load %arg20[%c0_103, %c0_104] : memref<256x128xbf16, #tpu.memory_space<vmem>>, vector<256x128xbf16>
    %cst_105 = arith.constant dense<0.000000e+00> : vector<2x128xf32>
    %207 = tpu.matmul %205, %206, %cst_105 {dimension_numbers = #tpu.dot_dimension_numbers<[1], [0], [0], [1], [0, 0, 1, 1], [], []>} : vector<2x256xbf16>, vector<256x128xbf16>, vector<2x128xf32> -> vector<2x128xf32>
    %c0_106 = arith.constant 0 : index
    %c0_107 = arith.constant 0 : index
    %208 = vector.load %arg21[%c0_106, %c0_107] : memref<1x128xf32, #tpu.memory_space<vmem>>, vector<1x128xf32>
    %209 = vector.broadcast %208 : vector<1x128xf32> to vector<2x128xf32>
    %210 = arith.addf %207, %209 : vector<2x128xf32>
    %c0_108 = arith.constant 0 : index
    %c0_109 = arith.constant 0 : index
    %211 = vector.load %arg23[%c0_108, %c0_109] : memref<2x128xf32, #tpu.memory_space<vmem>>, vector<2x128xf32>
    tpu.vector_store %arg23[%c0_108, %c0_109], %210 {strides = array<i32>} : memref<2x128xf32, #tpu.memory_space<vmem>>, vector<2x128xf32>,
    return
  }
}

</mosaic_0001>

<llo_original>
// kernel: tpu_custom_call.1
$region0: #{tpu_custom_call.1}
  #allocation0 [shape = 'u32[]', space=smem, size = 0x4, offset = 0x4, fixed_abs, tag = 'smem constant byte address 0x4 - core index']
  #allocation1 [shape = 'u32[144,128]{1,0:T(1,128)}', space=vmem, size = 0x12000, scoped, tag = 'internal scratch']
  #allocation2 [shape = 'f32[1,1]{1,0:T(1,128)S(1)}', space=vmem, size = 0x200, scoped, tag = 'scoped memory for tpu_custom_call.1']
  %s0 = inlined_call_operand.vmem [shape: f32[64,16], index: 0, kind: input, shape index: {}]
  %s1 = inlined_call_operand.vmem [shape: f32[128,5], index: 1, kind: input, shape index: {}]
  %s2 = inlined_call_operand.vmem [shape: s32[128,1], index: 2, kind: input, shape index: {}]
  %s3 = inlined_call_operand.hbm [shape: s32[1,128], index: 3, kind: input, shape index: {}]
  %s4 = inlined_call_operand.hbm [shape: s32[1,64], index: 4, kind: input, shape index: {}]
  %s5 = inlined_call_operand.hbm [shape: f32[2,8], index: 5, kind: input, shape index: {}]
  %s6 = inlined_call_operand.hbm [shape: bf16[16,128], index: 6, kind: input, shape index: {}]
  %s7 = inlined_call_operand.hbm [shape: f32[1,128], index: 7, kind: input, shape index: {}]
  %s8 = inlined_call_operand.hbm [shape: bf16[5,128], index: 8, kind: input, shape index: {}]
  %s9 = inlined_call_operand.hbm [shape: f32[1,128], index: 9, kind: input, shape index: {}]
  %s10 = inlined_call_operand.vmem [shape: bf16[3,256,128], index: 10, kind: input, shape index: {}]
  %s11 = inlined_call_operand.vmem [shape: f32[3,1,128], index: 11, kind: input, shape index: {}]
  %s12 = inlined_call_operand.hbm [shape: f32[3,1,128], index: 12, kind: input, shape index: {}]
  %s13 = inlined_call_operand.vmem [shape: f32[3,1,128], index: 13, kind: input, shape index: {}]
  %s14 = inlined_call_operand.vmem [shape: bf16[128,128], index: 14, kind: input, shape index: {}]
  %s15 = inlined_call_operand.vmem [shape: f32[1,128], index: 15, kind: input, shape index: {}]
  %s16 = inlined_call_operand.vmem [shape: bf16[128,1], index: 16, kind: input, shape index: {}]
  %s17 = inlined_call_operand.<no memory space> [shape: f32[1,1], index: 17, kind: input, shape index: {}]
  %s18 = inlined_call_operand.vmem [shape: bf16[8,128], index: 18, kind: input, shape index: {}]
  %s19 = inlined_call_operand.vmem [shape: f32[1,128], index: 19, kind: input, shape index: {}]
  %s20 = inlined_call_operand.hbm [shape: bf16[256,128], index: 20, kind: input, shape index: {}]
  %s21 = inlined_call_operand.vmem [shape: f32[1,128], index: 21, kind: input, shape index: {}]
  %s22 = inlined_call_operand.hbm [shape: f32[64,128], index: 22, kind: output, shape index: {0}]
  %s23 = inlined_call_operand.hbm [shape: f32[2,128], index: 23, kind: output, shape index: {1}]
  %24 = xla_tuple %s22, %s23
  %s25 = sld [smem:[#allocation0]]
  $region142: #{tpu_custom_call.1} parent=0
    _
  %s27 = ssub.s32 1, %s25
  %s28 = scalar_select 0, %s27, %s25
  %v29 = vstv %s17
  %30 = vst [vmem:[#allocation2] sm:$0x1] %v29
  $region1: #{tpu_custom_call.1} parent=0
    #allocation3 [shape = 'u8[512]{0}', space=vmem, size = 0x400, scoped, tag = 'input window, operand 3, single buffered']
    #allocation4 [shape = 's32[1]{0}', space=sflag, size = 0x4, scoped, tag = 'scoped memory for tpu_custom_call.1']
    #allocation5 [shape = 's32[1]{0}', space=sflag, size = 0x4, scoped, tag = 'scoped memory for tpu_custom_call.1']
    #allocation6 [shape = 'u8[512]{0}', space=vmem, size = 0x400, scoped, tag = 'input window, operand 4, single buffered']
    #allocation7 [shape = 's32[1]{0}', space=sflag, size = 0x4, scoped, tag = 'scoped memory for tpu_custom_call.1']
    #allocation8 [shape = 'u8[1024]{0}', space=vmem, size = 0x400, scoped, tag = 'input window, operand 5, single buffered']
    #allocation9 [shape = 'u8[4096]{0}', space=vmem, size = 0x1000, scoped, tag = 'input window, operand 6, single buffered']
    #allocation10 [shape = 's32[1]{0}', space=sflag, size = 0x4, scoped, tag = 'scoped memory for tpu_custom_call.1']
    #allocation11 [shape = 'u8[512]{0}', space=vmem, size = 0x400, scoped, tag = 'input window, operand 7, single buffered']
    #allocation12 [shape = 'u8[2048]{0}', space=vmem, size = 0x800, scoped, tag = 'input window, operand 8, single buffered']
    #allocation13 [shape = 's32[1]{0}', space=sflag, size = 0x4, scoped, tag = 'scoped memory for tpu_custom_call.1']
    #allocation14 [shape = 'u8[512]{0}', space=vmem, size = 0x400, scoped, tag = 'input window, operand 9, single buffered']
    #allocation15 [shape = 'u8[1536]{0}', space=vmem, size = 0x800, scoped, tag = 'input window, operand 12, single buffered']
    #allocation16 [shape = 's32[1]{0}', space=sflag, size = 0x4, scoped, tag = 'scoped memory for tpu_custom_call.1']
    #allocation17 [shape = 'u8[65536]{0}', space=vmem, size = 0x10000, scoped, tag = 'input window, operand 20, single buffered']
    #allocation18 [shape = 'u8[32768]{0}', space=vmem, size = 0x8000, scoped, tag = 'output window, operand 0, single buffered']
    #allocation19 [shape = 'u8[1024]{0}', space=vmem, size = 0x400, scoped, tag = 'output window, operand 1, single buffered']
    #allocation20 [shape = 's32[1]{0}', space=sflag, size = 0x4, scoped, tag = 'scoped memory for tpu_custom_call.1']
    %31 = vsyncpa [#allocation4], 0
    %32 = vsyncpa [#allocation7], 0
    %33 = vsyncpa [#allocation10], 0
    %34 = vsyncpa [#allocation13], 0
    %35 = vsyncpa [#allocation16], 0
    %36 = vsyncpa [#allocation5], 0
    %37 = vsyncpa [#allocation20], 0
    // Predicated region
    $region2: #{tpu_custom_call.1} parent=1 // pred_check
      _
    $region3: #{tpu_custom_call.1} parent=1 // pred_check_branch
      %39 = sbr.rel (0) target = $region5
    $region4: #{tpu_custom_call.1} parent=1 // pred_region
      _
    $region5: #{tpu_custom_call.1} parent=1 // pred_fallthru
      _
    // Predicated region
    $region6: #{tpu_custom_call.1} parent=1 // pred_check
      _
    $region7: #{tpu_custom_call.1} parent=1 // pred_check_branch
      %41 = sbr.rel (0) target = $region9
    $region8: #{tpu_custom_call.1} parent=1 // pred_region
      _
    $region9: #{tpu_custom_call.1} parent=1 // pred_fallthru
      _
    // Predicated region
    $region10: #{tpu_custom_call.1} parent=1 // pred_check
      _
    $region11: #{tpu_custom_call.1} parent=1 // pred_check_branch
      %43 = sbr.rel (0) target = $region13
    $region12: #{tpu_custom_call.1} parent=1 // pred_region
      _
    $region13: #{tpu_custom_call.1} parent=1 // pred_fallthru
      _
    // Predicated region
    $region14: #{tpu_custom_call.1} parent=1 // pred_check
      _
    $region15: #{tpu_custom_call.1} parent=1 // pred_check_branch
      %45 = sbr.rel (0) target = $region17
    $region16: #{tpu_custom_call.1} parent=1 // pred_region
      %s47 = ssub.s32 16, 16
      %48 = vsyncadd [#allocation4], %s47
      %s50 = sshll.u32 [#allocation3], 4
      %s51 = int_to_ptr.vmem [resolvable:$true] %s50
      %53 = dma.hbm_to_vmem [thread:$0]  %s3, 16, %s51, [#allocation4]
    $region17: #{tpu_custom_call.1} parent=1 // pred_fallthru
      _
    // Predicated region
    $region18: #{tpu_custom_call.1} parent=1 // pred_check
      _
    $region19: #{tpu_custom_call.1} parent=1 // pred_check_branch
      %55 = sbr.rel (0) target = $region21
    $region20: #{tpu_custom_call.1} parent=1 // pred_region
      %s57 = ssub.s32 16, 16
      %58 = vsyncadd [#allocation7], %s57
      %s60 = sshll.u32 [#allocation6], 4
      %s61 = int_to_ptr.vmem [resolvable:$true] %s60
      %63 = dma.hbm_to_vmem [thread:$0]  %s4, 16, %s61, [#allocation7]
    $region21: #{tpu_custom_call.1} parent=1 // pred_fallthru
      _
    // Predicated region
    $region22: #{tpu_custom_call.1} parent=1 // pred_check
      _
    $region23: #{tpu_custom_call.1} parent=1 // pred_check_branch
      %65 = sbr.rel (0) target = $region25
    $region24: #{tpu_custom_call.1} parent=1 // pred_region
      %s67 = ssub.s32 32, 32
      %68 = vsyncadd [#allocation7], %s67
      %s70 = sshll.u32 [#allocation8], 4
      %s71 = int_to_ptr.vmem [resolvable:$true] %s70
      %73 = dma.hbm_to_vmem [thread:$0]  %s5, 32, %s71, [#allocation7]
    $region25: #{tpu_custom_call.1} parent=1 // pred_fallthru
      _
    // Predicated region
    $region26: #{tpu_custom_call.1} parent=1 // pred_check
      _
    $region27: #{tpu_custom_call.1} parent=1 // pred_check_branch
      %75 = sbr.rel (0) target = $region29
    $region28: #{tpu_custom_call.1} parent=1 // pred_region
      %s77 = ssub.s32 128, 128
      %78 = vsyncadd [#allocation10], %s77
      %s79 = sshll.u32 [#allocation9], 4
      %s80 = int_to_ptr.vmem [resolvable:$true] %s79
      %85 = dma.hbm_to_vmem [thread:$0]  %s6, 128, %s80, [#allocation10], 64, 64, 4
    $region29: #{tpu_custom_call.1} parent=1 // pred_fallthru
      _
    // Predicated region
    $region30: #{tpu_custom_call.1} parent=1 // pred_check
      _
    $region31: #{tpu_custom_call.1} parent=1 // pred_check_branch
      %87 = sbr.rel (0) target = $region33
    $region32: #{tpu_custom_call.1} parent=1 // pred_region
      %s89 = ssub.s32 16, 16
      %90 = vsyncadd [#allocation10], %s89
      %s92 = sshll.u32 [#allocation11], 4
      %s93 = int_to_ptr.vmem [resolvable:$true] %s92
      %95 = dma.hbm_to_vmem [thread:$0]  %s7, 16, %s93, [#allocation10]
    $region33: #{tpu_custom_call.1} parent=1 // pred_fallthru
      _
    // Predicated region
    $region34: #{tpu_custom_call.1} parent=1 // pred_check
      _
    $region35: #{tpu_custom_call.1} parent=1 // pred_check_branch
      %97 = sbr.rel (0) target = $region37
    $region36: #{tpu_custom_call.1} parent=1 // pred_region
      %s99 = ssub.s32 64, 64
      %100 = vsyncadd [#allocation13], %s99
      %s102 = sshll.u32 [#allocation12], 4
      %s103 = int_to_ptr.vmem [resolvable:$true] %s102
      %105 = dma.hbm_to_vmem [thread:$0]  %s8, 64, %s103, [#allocation13]
    $region37: #{tpu_custom_call.1} parent=1 // pred_fallthru
      _
    // Predicated region
    $region38: #{tpu_custom_call.1} parent=1 // pred_check
      _
    $region39: #{tpu_custom_call.1} parent=1 // pred_check_branch
      %107 = sbr.rel (0) target = $region41
    $region40: #{tpu_custom_call.1} parent=1 // pred_region
      %s109 = ssub.s32 16, 16
      %110 = vsyncadd [#allocation13], %s109
      %s112 = sshll.u32 [#allocation14], 4
      %s113 = int_to_ptr.vmem [resolvable:$true] %s112
      %115 = dma.hbm_to_vmem [thread:$0]  %s9, 16, %s113, [#allocation13]
    $region41: #{tpu_custom_call.1} parent=1 // pred_fallthru
      _
    // Predicated region
    $region42: #{tpu_custom_call.1} parent=1 // pred_check
      _
    $region43: #{tpu_custom_call.1} parent=1 // pred_check_branch
      %117 = sbr.rel (0) target = $region45
    $region44: #{tpu_custom_call.1} parent=1 // pred_region
      _
    $region45: #{tpu_custom_call.1} parent=1 // pred_fallthru
      _
    // Predicated region
    $region46: #{tpu_custom_call.1} parent=1 // pred_check
      _
    $region47: #{tpu_custom_call.1} parent=1 // pred_check_branch
      %119 = sbr.rel (0) target = $region49
    $region48: #{tpu_custom_call.1} parent=1 // pred_region
      _
    $region49: #{tpu_custom_call.1} parent=1 // pred_fallthru
      _
    // Predicated region
    $region50: #{tpu_custom_call.1} parent=1 // pred_check
      _
    $region51: #{tpu_custom_call.1} parent=1 // pred_check_branch
      %121 = sbr.rel (0) target = $region53
    $region52: #{tpu_custom_call.1} parent=1 // pred_region
      %s123 = ssub.s32 48, 48
      %124 = vsyncadd [#allocation16], %s123
      %s125 = sshll.u32 [#allocation15], 4
      %s126 = int_to_ptr.vmem [resolvable:$true] %s125
      %131 = dma.hbm_to_vmem [thread:$0]  %s12, 48, %s126, [#allocation16], 16, 16, 1
    $region53: #{tpu_custom_call.1} parent=1 // pred_fallthru
      _
    // Predicated region
    $region54: #{tpu_custom_call.1} parent=1 // pred_check
      _
    $region55: #{tpu_custom_call.1} parent=1 // pred_check_branch
      %133 = sbr.rel (0) target = $region57
    $region56: #{tpu_custom_call.1} parent=1 // pred_region
      _
    $region57: #{tpu_custom_call.1} parent=1 // pred_fallthru
      _
    // Predicated region
    $region58: #{tpu_custom_call.1} parent=1 // pred_check
      _
    $region59: #{tpu_custom_call.1} parent=1 // pred_check_branch
      %135 = sbr.rel (0) target = $region61
    $region60: #{tpu_custom_call.1} parent=1 // pred_region
      _
    $region61: #{tpu_custom_call.1} parent=1 // pred_fallthru
      _
    // Predicated region
    $region62: #{tpu_custom_call.1} parent=1 // pred_check
      _
    $region63: #{tpu_custom_call.1} parent=1 // pred_check_branch
      %137 = sbr.rel (0) target = $region65
    $region64: #{tpu_custom_call.1} parent=1 // pred_region
      _
    $region65: #{tpu_custom_call.1} parent=1 // pred_fallthru
      _
    // Predicated region
    $region66: #{tpu_custom_call.1} parent=1 // pred_check
      _
    $region67: #{tpu_custom_call.1} parent=1 // pred_check_branch
      %139 = sbr.rel (0) target = $region69
    $region68: #{tpu_custom_call.1} parent=1 // pred_region
      _
    $region69: #{tpu_custom_call.1} parent=1 // pred_fallthru
      _
    // Predicated region
    $region70: #{tpu_custom_call.1} parent=1 // pred_check
      _
    $region71: #{tpu_custom_call.1} parent=1 // pred_check_branch
      %141 = sbr.rel (0) target = $region73
    $region72: #{tpu_custom_call.1} parent=1 // pred_region
      _
    $region73: #{tpu_custom_call.1} parent=1 // pred_fallthru
      _
    // Predicated region
    $region74: #{tpu_custom_call.1} parent=1 // pred_check
      _
    $region75: #{tpu_custom_call.1} parent=1 // pred_check_branch
      %143 = sbr.rel (0) target = $region77
    $region76: #{tpu_custom_call.1} parent=1 // pred_region
      _
    $region77: #{tpu_custom_call.1} parent=1 // pred_fallthru
      _
    // Predicated region
    $region78: #{tpu_custom_call.1} parent=1 // pred_check
      _
    $region79: #{tpu_custom_call.1} parent=1 // pred_check_branch
      %145 = sbr.rel (0) target = $region81
    $region80: #{tpu_custom_call.1} parent=1 // pred_region
      _
    $region81: #{tpu_custom_call.1} parent=1 // pred_fallthru
      _
    // Predicated region
    $region82: #{tpu_custom_call.1} parent=1 // pred_check
      _
    $region83: #{tpu_custom_call.1} parent=1 // pred_check_branch
      %147 = sbr.rel (0) target = $region85
    $region84: #{tpu_custom_call.1} parent=1 // pred_region
      %s149 = ssub.s32 2048, 2048
      %150 = vsyncadd [#allocation16], %s149
      %s151 = sshll.u32 [#allocation17], 4
      %s152 = int_to_ptr.vmem [resolvable:$true] %s151
      %157 = dma.hbm_to_vmem [thread:$0]  %s20, 2048, %s152, [#allocation16], 64, 64, 4
    $region85: #{tpu_custom_call.1} parent=1 // pred_fallthru
      _
    // Predicated region
    $region86: #{tpu_custom_call.1} parent=1 // pred_check
      _
    $region87: #{tpu_custom_call.1} parent=1 // pred_check_branch
      %159 = sbr.rel (0) target = $region89
    $region88: #{tpu_custom_call.1} parent=1 // pred_region
      _
    $region89: #{tpu_custom_call.1} parent=1 // pred_fallthru
      _
    // Predicated region
    $region90: #{tpu_custom_call.1} parent=1 // pred_check
      _
    $region91: #{tpu_custom_call.1} parent=1 // pred_check_branch
      %161 = sbr.rel (0) target = $region93
    $region92: #{tpu_custom_call.1} parent=1 // pred_region
      %162 = dma.done [#allocation4], 16
    $region93: #{tpu_custom_call.1} parent=1 // pred_fallthru
      _
    // Predicated region
    $region94: #{tpu_custom_call.1} parent=1 // pred_check
      _
    $region95: #{tpu_custom_call.1} parent=1 // pred_check_branch
      %164 = sbr.rel (0) target = $region97
    $region96: #{tpu_custom_call.1} parent=1 // pred_region
      %165 = dma.done [#allocation7], 16
    $region97: #{tpu_custom_call.1} parent=1 // pred_fallthru
      _
    // Predicated region
    $region98: #{tpu_custom_call.1} parent=1 // pred_check
      _
    $region99: #{tpu_custom_call.1} parent=1 // pred_check_branch
      %167 = sbr.rel (0) target = $region101
    $region100: #{tpu_custom_call.1} parent=1 // pred_region
      %168 = dma.done [#allocation7], 32
    $region101: #{tpu_custom_call.1} parent=1 // pred_fallthru
      _
    // Predicated region
    $region102: #{tpu_custom_call.1} parent=1 // pred_check
      _
    $region103: #{tpu_custom_call.1} parent=1 // pred_check_branch
      %170 = sbr.rel (0) target = $region105
    $region104: #{tpu_custom_call.1} parent=1 // pred_region
      %171 = dma.done [#allocation10], 128
    $region105: #{tpu_custom_call.1} parent=1 // pred_fallthru
      _
    // Predicated region
    $region106: #{tpu_custom_call.1} parent=1 // pred_check
      _
    $region107: #{tpu_custom_call.1} parent=1 // pred_check_branch
      %173 = sbr.rel (0) target = $region109
    $region108: #{tpu_custom_call.1} parent=1 // pred_region
      %174 = dma.done [#allocation10], 16
    $region109: #{tpu_custom_call.1} parent=1 // pred_fallthru
      _
    // Predicated region
    $region110: #{tpu_custom_call.1} parent=1 // pred_check
      _
    $region111: #{tpu_custom_call.1} parent=1 // pred_check_branch
      %176 = sbr.rel (0) target = $region113
    $region112: #{tpu_custom_call.1} parent=1 // pred_region
      %177 = dma.done [#allocation13], 64
    $region113: #{tpu_custom_call.1} parent=1 // pred_fallthru
      _
    // Predicated region
    $region114: #{tpu_custom_call.1} parent=1 // pred_check
      _
    $region115: #{tpu_custom_call.1} parent=1 // pred_check_branch
      %179 = sbr.rel (0) target = $region117
    $region116: #{tpu_custom_call.1} parent=1 // pred_region
      %180 = dma.done [#allocation13], 16
    $region117: #{tpu_custom_call.1} parent=1 // pred_fallthru
      _
    // Predicated region
    $region118: #{tpu_custom_call.1} parent=1 // pred_check
      _
    $region119: #{tpu_custom_call.1} parent=1 // pred_check_branch
      %182 = sbr.rel (0) target = $region121
    $region120: #{tpu_custom_call.1} parent=1 // pred_region
      %183 = dma.done [#allocation16], 48
    $region121: #{tpu_custom_call.1} parent=1 // pred_fallthru
      _
    // Predicated region
    $region122: #{tpu_custom_call.1} parent=1 // pred_check
      _
    $region123: #{tpu_custom_call.1} parent=1 // pred_check_branch
      %185 = sbr.rel (0) target = $region125
    $region124: #{tpu_custom_call.1} parent=1 // pred_region
      %186 = dma.done [#allocation16], 2048
    $region125: #{tpu_custom_call.1} parent=1 // pred_fallthru
      _
    %v188 = vld [vmem:[%s2] sm:$0xff]
    %v189 = vld [vmem:[%s2 + $0x8] sm:$0xff]
    %v190 = vld [vmem:[%s2 + $0x10] sm:$0xff]
    %v191 = vld [vmem:[%s2 + $0x18] sm:$0xff]
    %v192 = vld [vmem:[%s2 + $0x20] sm:$0xff]
    %v193 = vld [vmem:[%s2 + $0x28] sm:$0xff]
    %v194 = vld [vmem:[%s2 + $0x30] sm:$0xff]
    %v195 = vld [vmem:[%s2 + $0x38] sm:$0xff]
    %v196 = vld [vmem:[%s2 + $0x40] sm:$0xff]
    %v197 = vld [vmem:[%s2 + $0x48] sm:$0xff]
    %v198 = vld [vmem:[%s2 + $0x50] sm:$0xff]
    %v199 = vld [vmem:[%s2 + $0x58] sm:$0xff]
    %v200 = vld [vmem:[%s2 + $0x60] sm:$0xff]
    %v201 = vld [vmem:[%s2 + $0x68] sm:$0xff]
    %v202 = vld [vmem:[%s2 + $0x70] sm:$0xff]
    %v203 = vld [vmem:[%s2 + $0x78] sm:$0xff]
    %v204 = vld [vmem:[#allocation3] sm:$0x1]
    %v205 = vld [vmem:[#allocation6] sm:$0x1]
    %v206 = vlaneseq
    %v207 = vand.u32 %v206, 127
    %208 = vset.pattern.permute.xlu0 0
    %209 = vperm.xlu0 %208, %v188
    %v210 = vpop.permute.xlu0 %209
    %211 = vset.pattern.permute.xlu0 0
    %212 = vperm.xlu0 %211, %v189
    %v213 = vpop.permute.xlu0 %212
    %214 = vset.pattern.permute.xlu0 0
    %215 = vperm.xlu0 %214, %v190
    %v216 = vpop.permute.xlu0 %215
    %217 = vset.pattern.permute.xlu0 0
    %218 = vperm.xlu0 %217, %v191
    %v219 = vpop.permute.xlu0 %218
    %220 = vset.pattern.permute.xlu0 0
    %221 = vperm.xlu0 %220, %v192
    %v222 = vpop.permute.xlu0 %221
    %223 = vset.pattern.permute.xlu0 0
    %224 = vperm.xlu0 %223, %v193
    %v225 = vpop.permute.xlu0 %224
    %226 = vset.pattern.permute.xlu0 0
    %227 = vperm.xlu0 %226, %v194
    %v228 = vpop.permute.xlu0 %227
    %229 = vset.pattern.permute.xlu0 0
    %230 = vperm.xlu0 %229, %v195
    %v231 = vpop.permute.xlu0 %230
    %232 = vset.pattern.permute.xlu0 0
    %233 = vperm.xlu0 %232, %v196
    %v234 = vpop.permute.xlu0 %233
    %235 = vset.pattern.permute.xlu0 0
    %236 = vperm.xlu0 %235, %v197
    %v237 = vpop.permute.xlu0 %236
    %238 = vset.pattern.permute.xlu0 0
    %239 = vperm.xlu0 %238, %v198
    %v240 = vpop.permute.xlu0 %239
    %241 = vset.pattern.permute.xlu0 0
    %242 = vperm.xlu0 %241, %v199
    %v243 = vpop.permute.xlu0 %242
    %244 = vset.pattern.permute.xlu0 0
    %245 = vperm.xlu0 %244, %v200
    %v246 = vpop.permute.xlu0 %245
    %247 = vset.pattern.permute.xlu0 0
    %248 = vperm.xlu0 %247, %v201
    %v249 = vpop.permute.xlu0 %248
    %250 = vset.pattern.permute.xlu0 0
    %251 = vperm.xlu0 %250, %v202
    %v252 = vpop.permute.xlu0 %251
    %253 = vset.pattern.permute.xlu0 0
    %254 = vperm.xlu0 %253, %v203
    %v255 = vpop.permute.xlu0 %254
    %vm256 = vcmp.eq.s32.totalorder %v207, %v210
    %vm257 = vcmp.eq.s32.totalorder %v207, %v213
    %vm258 = vcmp.eq.s32.totalorder %v207, %v216
    %vm259 = vcmp.eq.s32.totalorder %v207, %v219
    %vm260 = vcmp.eq.s32.totalorder %v207, %v222
    %vm261 = vcmp.eq.s32.totalorder %v207, %v225
    %vm262 = vcmp.eq.s32.totalorder %v207, %v228
    %vm263 = vcmp.eq.s32.totalorder %v207, %v231
    %vm264 = vcmp.eq.s32.totalorder %v207, %v234
    %vm265 = vcmp.eq.s32.totalorder %v207, %v237
    %vm266 = vcmp.eq.s32.totalorder %v207, %v240
    %vm267 = vcmp.eq.s32.totalorder %v207, %v243
    %vm268 = vcmp.eq.s32.totalorder %v207, %v246
    %vm269 = vcmp.eq.s32.totalorder %v207, %v249
    %vm270 = vcmp.eq.s32.totalorder %v207, %v252
    %vm271 = vcmp.eq.s32.totalorder %v207, %v255
    %v272 = vsel %vm256, 1, 0
    %v273 = vsel %vm257, 1, 0
    %v274 = vsel %vm258, 1, 0
    %v275 = vsel %vm259, 1, 0
    %v276 = vsel %vm260, 1, 0
    %v277 = vsel %vm261, 1, 0
    %v278 = vsel %vm262, 1, 0
    %v279 = vsel %vm263, 1, 0
    %v280 = vsel %vm264, 1, 0
    %v281 = vsel %vm265, 1, 0
    %v282 = vsel %vm266, 1, 0
    %v283 = vsel %vm267, 1, 0
    %v284 = vsel %vm268, 1, 0
    %v285 = vsel %vm269, 1, 0
    %v286 = vsel %vm270, 1, 0
    %v287 = vsel %vm271, 1, 0
    %v288 = vcvt.s32.f32 %v272
    %v289 = vcvt.s32.f32 %v273
    %v290 = vcvt.s32.f32 %v274
    %v291 = vcvt.s32.f32 %v275
    %v292 = vcvt.s32.f32 %v276
    %v293 = vcvt.s32.f32 %v277
    %v294 = vcvt.s32.f32 %v278
    %v295 = vcvt.s32.f32 %v279
    %v296 = vcvt.s32.f32 %v280
    %v297 = vcvt.s32.f32 %v281
    %v298 = vcvt.s32.f32 %v282
    %v299 = vcvt.s32.f32 %v283
    %v300 = vcvt.s32.f32 %v284
    %v301 = vcvt.s32.f32 %v285
    %v302 = vcvt.s32.f32 %v286
    %v303 = vcvt.s32.f32 %v287
    %v304 = vpack.c.bf16 %v289, %v288
    %v305 = vpack.c.bf16 %v291, %v290
    %v306 = vpack.c.bf16 %v293, %v292
    %v307 = vpack.c.bf16 %v295, %v294
    %v308 = vpack.c.bf16 %v297, %v296
    %v309 = vpack.c.bf16 %v299, %v298
    %v310 = vpack.c.bf16 %v301, %v300
    %v311 = vpack.c.bf16 %v303, %v302
    %v312 = vlaneseq
    %v313 = vshrl.u32 %v312, 7
    %v314 = vadd.s32 %v313, 8
    %v315 = vadd.s32 %v313, 16
    %v316 = vadd.s32 %v313, 24
    %v317 = vadd.s32 %v313, 32
    %v318 = vadd.s32 %v313, 40
    %v319 = vadd.s32 %v313, 48
    %v320 = vadd.s32 %v313, 56
    %v321 = vlaneseq
    %v322 = vshrl.u32 %v321, 7
    %v323 = vsub.s32 0, %v322
    %v324 = vrot.slane %v204, %v323
    %vm325 = vcmp.eq.s32.totalorder %v313, %v324
    %vm326 = vcmp.eq.s32.totalorder %v314, %v324
    %vm327 = vcmp.eq.s32.totalorder %v315, %v324
    %vm328 = vcmp.eq.s32.totalorder %v316, %v324
    %vm329 = vcmp.eq.s32.totalorder %v317, %v324
    %vm330 = vcmp.eq.s32.totalorder %v318, %v324
    %vm331 = vcmp.eq.s32.totalorder %v319, %v324
    %vm332 = vcmp.eq.s32.totalorder %v320, %v324
    %v333 = vsel %vm325, 1, 0
    %v334 = vsel %vm326, 1, 0
    %v335 = vsel %vm327, 1, 0
    %v336 = vsel %vm328, 1, 0
    %v337 = vsel %vm329, 1, 0
    %v338 = vsel %vm330, 1, 0
    %v339 = vsel %vm331, 1, 0
    %v340 = vsel %vm332, 1, 0
    %v341 = vcvt.s32.f32 %v333
    %v342 = vcvt.s32.f32 %v334
    %v343 = vcvt.s32.f32 %v335
    %v344 = vcvt.s32.f32 %v336
    %v345 = vcvt.s32.f32 %v337
    %v346 = vcvt.s32.f32 %v338
    %v347 = vcvt.s32.f32 %v339
    %v348 = vcvt.s32.f32 %v340
    %v349 = vpack.c.bf16 %v342, %v341
    %v350 = vpack.c.bf16 %v344, %v343
    %v351 = vpack.c.bf16 %v346, %v345
    %v352 = vpack.c.bf16 %v348, %v347
    %v353 = vlaneseq
    %v354 = vshrl.u32 %v353, 7
    %v355 = vsub.s32 0, %v354
    %v356 = vrot.slane %v205, %v355
    %vm357 = vcmp.eq.s32.totalorder %v313, %v356
    %v358 = vsel %vm357, 1, 0
    %v359 = vcvt.s32.f32 %v358
    %v360 = vld [vmem:[%s0] sm:$0xff]
    %v361 = vld [vmem:[%s0 + $0x8] sm:$0xff]
    %v362 = vld [vmem:[%s0 + $0x10] sm:$0xff]
    %v363 = vld [vmem:[%s0 + $0x18] sm:$0xff]
    %v364 = vld [vmem:[%s0 + $0x20] sm:$0xff]
    %v365 = vld [vmem:[%s0 + $0x28] sm:$0xff]
    %v366 = vld [vmem:[%s0 + $0x30] sm:$0xff]
    %v367 = vld [vmem:[%s0 + $0x38] sm:$0xff]
    %v368 = vpack.c.bf16 %v361, %v360
    %v369 = vpack.c.bf16 %v363, %v362
    %v370 = vpack.c.bf16 %v365, %v364
    %v371 = vpack.c.bf16 %v367, %v366
    %v372 = vld [vmem:[#allocation9] sm:$0xf]
    %v373 = vld [vmem:[#allocation9 + $0x4] sm:$0xf]
    %v374 = vld [vmem:[#allocation11] sm:$0x1]
    %v376 = vlaneseq
    %v377 = vshrl.u32 %v376, 7
    %v378 = vsub.s32 0, %v377
    %v379 = vrot.slane %v374, %v378
    %v383 = vunpack.c.l.b16 %v372
    %v384 = vunpack.c.l.b16 %v373
    %v385 = vpack.c.b16 %v384, %v383
    %vm387 = vcmask 130048
    %v389 = vsel %vm387, %v368, 0
    %v392 = vsel %vm387, %v369, 0
    %v395 = vsel %vm387, %v370, 0
    %v398 = vsel %vm387, %v371, 0
    %400 = vmatprep.subr.bf16.mxu0 0
    %401 = vmatpush1.bf16.msra.mxu0 %v385
    %402 = vmatprep.subr.bf16.mxu0 0
    %403 = vmatpush1.bf16.msra.mxu0 0
    %404 = vmatprep.subr.bf16.mxu0 0
    %405 = vmatpush1.bf16.msra.mxu0 0
    %406 = vmatprep.subr.bf16.mxu0 0
    %407 = vmatpush1.bf16.msra.mxu0 0
    %408 = vmatprep.subr.bf16.mxu0 0
    %409 = vmatpush1.bf16.msra.mxu0 0
    %410 = vmatprep.subr.bf16.mxu0 0
    %411 = vmatpush1.bf16.msra.mxu0 0
    %412 = vmatprep.subr.bf16.mxu0 0
    %413 = vmatpush1.bf16.msra.mxu0 0
    %414 = vmatprep.subr.bf16.mxu0 0
    %415 = vmatpush1.bf16.msra.mxu0 0
    %416 = vmatprep.subr.bf16.mxu0 0
    %417 = vmatpush1.bf16.msra.mxu0 0
    %418 = vmatprep.subr.bf16.mxu0 0
    %419 = vmatpush1.bf16.msra.mxu0 0
    %420 = vmatprep.subr.bf16.mxu0 0
    %421 = vmatpush1.bf16.msra.mxu0 0
    %422 = vmatprep.subr.bf16.mxu0 0
    %423 = vmatpush1.bf16.msra.mxu0 0
    %424 = vmatprep.subr.bf16.mxu0 0
    %425 = vmatpush1.bf16.msra.mxu0 0
    %426 = vmatprep.subr.bf16.mxu0 0
    %427 = vmatpush1.bf16.msra.mxu0 0
    %428 = vmatprep.subr.bf16.mxu0 0
    %429 = vmatpush1.bf16.msra.mxu0 0
    %430 = vmatprep.subr.bf16.mxu0 0
    %431 = vmatpush1.bf16.msra.mxu0 0
    %432 = vmatprep.mubr.bf16.mxu0 0
    %433 = vmatmul.mubr.bf16.gmra.mrb[0].mxu0 %v389
    %v434 = vpop.f32.mrb[0].mxu0
    %v435 = vadd.f32 %v379, %v434
    %v436 = vpop.f32.mrb[0].mxu0
    %v437 = vpop.f32.mrb[0].mxu0
    %v438 = vadd.f32 %v379, %v437
    %v439 = vpop.f32.mrb[0].mxu0
    %440 = vmatprep.mubr.bf16.mxu0 0
    %441 = vmatmul.mubr.bf16.gmra.mrb[0].mxu0 %v392
    %v442 = vpop.f32.mrb[0].mxu0
    %v443 = vadd.f32 %v379, %v442
    %v444 = vpop.f32.mrb[0].mxu0
    %v445 = vpop.f32.mrb[0].mxu0
    %v446 = vadd.f32 %v379, %v445
    %v447 = vpop.f32.mrb[0].mxu0
    %448 = vmatprep.mubr.bf16.mxu0 0
    %449 = vmatmul.mubr.bf16.gmra.mrb[0].mxu0 %v395
    %v450 = vpop.f32.mrb[0].mxu0
    %v451 = vadd.f32 %v379, %v450
    %v452 = vpop.f32.mrb[0].mxu0
    %v453 = vpop.f32.mrb[0].mxu0
    %v454 = vadd.f32 %v379, %v453
    %v455 = vpop.f32.mrb[0].mxu0
    %456 = vmatprep.mubr.bf16.mxu0 0
    %457 = vmatmul.mubr.bf16.gmra.mrb[0].mxu0 %v398
    %v458 = vpop.f32.mrb[0].mxu0
    %v459 = vadd.f32 %v379, %v458
    %v460 = vpop.f32.mrb[0].mxu0
    %v461 = vpop.f32.mrb[0].mxu0
    %v462 = vadd.f32 %v379, %v461
    %v463 = vpop.f32.mrb[0].mxu0
    %464 = vdwg.mxu0
    %v465 = vld [vmem:[%s1] sm:$0xff]
    %v466 = vld [vmem:[%s1 + $0x8] sm:$0xff]
    %v467 = vld [vmem:[%s1 + $0x10] sm:$0xff]
    %v468 = vld [vmem:[%s1 + $0x18] sm:$0xff]
    %v469 = vld [vmem:[%s1 + $0x20] sm:$0xff]
    %v470 = vld [vmem:[%s1 + $0x28] sm:$0xff]
    %v471 = vld [vmem:[%s1 + $0x30] sm:$0xff]
    %v472 = vld [vmem:[%s1 + $0x38] sm:$0xff]
    %v473 = vld [vmem:[%s1 + $0x40] sm:$0xff]
    %v474 = vld [vmem:[%s1 + $0x48] sm:$0xff]
    %v475 = vld [vmem:[%s1 + $0x50] sm:$0xff]
    %v476 = vld [vmem:[%s1 + $0x58] sm:$0xff]
    %v477 = vld [vmem:[%s1 + $0x60] sm:$0xff]
    %v478 = vld [vmem:[%s1 + $0x68] sm:$0xff]
    %v479 = vld [vmem:[%s1 + $0x70] sm:$0xff]
    %v480 = vld [vmem:[%s1 + $0x78] sm:$0xff]
    %v481 = vpack.c.bf16 %v466, %v465
    %v482 = vpack.c.bf16 %v468, %v467
    %v483 = vpack.c.bf16 %v470, %v469
    %v484 = vpack.c.bf16 %v472, %v471
    %v485 = vpack.c.bf16 %v474, %v473
    %v486 = vpack.c.bf16 %v476, %v475
    %v487 = vpack.c.bf16 %v478, %v477
    %v488 = vpack.c.bf16 %v480, %v479
    %v489 = vld [vmem:[#allocation12] sm:$0x7]
    %v490 = vld [vmem:[#allocation14] sm:$0x1]
    %v492 = vlaneseq
    %v493 = vshrl.u32 %v492, 7
    %v494 = vsub.s32 0, %v493
    %v495 = vrot.slane %v490, %v494
    %vm497 = vcmask 39936
    %v499 = vsel %vm497, %v481, 0
    %v502 = vsel %vm497, %v482, 0
    %v505 = vsel %vm497, %v483, 0
    %v508 = vsel %vm497, %v484, 0
    %v511 = vsel %vm497, %v485, 0
    %v514 = vsel %vm497, %v486, 0
    %v517 = vsel %vm497, %v487, 0
    %v520 = vsel %vm497, %v488, 0
    %vm522 = vcmask 1041408
    %vm523 = vcmask 1042432
    %v524 = vsel %vm522, 4294967295, 65535
    %v525 = vsel %vm523, %v524, 0
    %v527 = vand.u32 %v489, %v525
    %529 = vmatprep.subr.bf16.mxu0 0
    %530 = vmatpush1.bf16.msra.mxu0 %v527
    %531 = vmatprep.subr.bf16.mxu0 0
    %532 = vmatpush1.bf16.msra.mxu0 0
    %533 = vmatprep.subr.bf16.mxu0 0
    %534 = vmatpush1.bf16.msra.mxu0 0
    %535 = vmatprep.subr.bf16.mxu0 0
    %536 = vmatpush1.bf16.msra.mxu0 0
    %537 = vmatprep.subr.bf16.mxu0 0
    %538 = vmatpush1.bf16.msra.mxu0 0
    %539 = vmatprep.subr.bf16.mxu0 0
    %540 = vmatpush1.bf16.msra.mxu0 0
    %541 = vmatprep.subr.bf16.mxu0 0
    %542 = vmatpush1.bf16.msra.mxu0 0
    %543 = vmatprep.subr.bf16.mxu0 0
    %544 = vmatpush1.bf16.msra.mxu0 0
    %545 = vmatprep.subr.bf16.mxu0 0
    %546 = vmatpush1.bf16.msra.mxu0 0
    %547 = vmatprep.subr.bf16.mxu0 0
    %548 = vmatpush1.bf16.msra.mxu0 0
    %549 = vmatprep.subr.bf16.mxu0 0
    %550 = vmatpush1.bf16.msra.mxu0 0
    %551 = vmatprep.subr.bf16.mxu0 0
    %552 = vmatpush1.bf16.msra.mxu0 0
    %553 = vmatprep.subr.bf16.mxu0 0
    %554 = vmatpush1.bf16.msra.mxu0 0
    %555 = vmatprep.subr.bf16.mxu0 0
    %556 = vmatpush1.bf16.msra.mxu0 0
    %557 = vmatprep.subr.bf16.mxu0 0
    %558 = vmatpush1.bf16.msra.mxu0 0
    %559 = vmatprep.subr.bf16.mxu0 0
    %560 = vmatpush1.bf16.msra.mxu0 0
    %561 = vmatprep.mubr.bf16.mxu0 0
    %562 = vmatmul.mubr.bf16.gmra.mrb[0].mxu0 %v499
    %v563 = vpop.f32.mrb[0].mxu0
    %v564 = vadd.f32 %v495, %v563
    %v565 = vpop.f32.mrb[0].mxu0
    %v566 = vpop.f32.mrb[0].mxu0
    %v567 = vadd.f32 %v495, %v566
    %v568 = vpop.f32.mrb[0].mxu0
    %569 = vmatprep.mubr.bf16.mxu0 0
    %570 = vmatmul.mubr.bf16.gmra.mrb[0].mxu0 %v502
    %v571 = vpop.f32.mrb[0].mxu0
    %v572 = vadd.f32 %v495, %v571
    %v573 = vpop.f32.mrb[0].mxu0
    %v574 = vpop.f32.mrb[0].mxu0
    %v575 = vadd.f32 %v495, %v574
    %v576 = vpop.f32.mrb[0].mxu0
    %577 = vmatprep.mubr.bf16.mxu0 0
    %578 = vmatmul.mubr.bf16.gmra.mrb[0].mxu0 %v505
    %v579 = vpop.f32.mrb[0].mxu0
    %v580 = vadd.f32 %v495, %v579
    %v581 = vpop.f32.mrb[0].mxu0
    %v582 = vpop.f32.mrb[0].mxu0
    %v583 = vadd.f32 %v495, %v582
    %v584 = vpop.f32.mrb[0].mxu0
    %585 = vmatprep.mubr.bf16.mxu0 0
    %586 = vmatmul.mubr.bf16.gmra.mrb[0].mxu0 %v508
    %v587 = vpop.f32.mrb[0].mxu0
    %v588 = vadd.f32 %v495, %v587
    %v589 = vpop.f32.mrb[0].mxu0
    %v590 = vpop.f32.mrb[0].mxu0
    %v591 = vadd.f32 %v495, %v590
    %v592 = vpop.f32.mrb[0].mxu0
    %593 = vmatprep.mubr.bf16.mxu0 0
    %594 = vmatmul.mubr.bf16.gmra.mrb[0].mxu0 %v511
    %v595 = vpop.f32.mrb[0].mxu0
    %v596 = vadd.f32 %v495, %v595
    %v597 = vpop.f32.mrb[0].mxu0
    %v598 = vpop.f32.mrb[0].mxu0
    %v599 = vadd.f32 %v495, %v598
    %v600 = vpop.f32.mrb[0].mxu0
    %601 = vmatprep.mubr.bf16.mxu0 0
    %602 = vmatmul.mubr.bf16.gmra.mrb[0].mxu0 %v514
    %v603 = vpop.f32.mrb[0].mxu0
    %v604 = vadd.f32 %v495, %v603
    %v605 = vpop.f32.mrb[0].mxu0
    %v606 = vpop.f32.mrb[0].mxu0
    %v607 = vadd.f32 %v495, %v606
    %v608 = vpop.f32.mrb[0].mxu0
    %609 = vmatprep.mubr.bf16.mxu0 0
    %610 = vmatmul.mubr.bf16.gmra.mrb[0].mxu0 %v517
    %v611 = vpop.f32.mrb[0].mxu0
    %v612 = vadd.f32 %v495, %v611
    %v613 = vpop.f32.mrb[0].mxu0
    %v614 = vpop.f32.mrb[0].mxu0
    %v615 = vadd.f32 %v495, %v614
    %v616 = vpop.f32.mrb[0].mxu0
    %617 = vmatprep.mubr.bf16.mxu0 0
    %618 = vmatmul.mubr.bf16.gmra.mrb[0].mxu0 %v520
    %v619 = vpop.f32.mrb[0].mxu0
    %v620 = vadd.f32 %v495, %v619
    %v621 = vpop.f32.mrb[0].mxu0
    %v622 = vpop.f32.mrb[0].mxu0
    %v623 = vadd.f32 %v495, %v622
    %v624 = vpop.f32.mrb[0].mxu0
    %625 = vdwg.mxu0
    %v626 = vpack.c.bf16 %v438, %v435
    %v627 = vpack.c.bf16 %v446, %v443
    %v628 = vpack.c.bf16 %v454, %v451
    %v629 = vpack.c.bf16 %v462, %v459
    %vm630 = vcmask 523264
    %v632 = vsel %vm630, %v304, 0
    %v635 = vsel %vm630, %v305, 0
    %v638 = vsel %vm630, %v306, 0
    %v641 = vsel %vm630, %v307, 0
    %v644 = vsel %vm630, %v308, 0
    %v647 = vsel %vm630, %v309, 0
    %v650 = vsel %vm630, %v310, 0
    %v653 = vsel %vm630, %v311, 0
    %655 = vmatprep.subr.bf16.mxu0 0
    %656 = vmatpush1.bf16.msra.mxu0 %v626
    %657 = vmatprep.subr.bf16.mxu0 0
    %658 = vmatpush1.bf16.msra.mxu0 %v627
    %659 = vmatprep.subr.bf16.mxu0 0
    %660 = vmatpush1.bf16.msra.mxu0 %v628
    %661 = vmatprep.subr.bf16.mxu0 0
    %662 = vmatpush1.bf16.msra.mxu0 %v629
    %663 = vmatprep.subr.bf16.mxu0 0
    %664 = vmatpush1.bf16.msra.mxu0 0
    %665 = vmatprep.subr.bf16.mxu0 0
    %666 = vmatpush1.bf16.msra.mxu0 0
    %667 = vmatprep.subr.bf16.mxu0 0
    %668 = vmatpush1.bf16.msra.mxu0 0
    %669 = vmatprep.subr.bf16.mxu0 0
    %670 = vmatpush1.bf16.msra.mxu0 0
    %671 = vmatprep.subr.bf16.mxu0 0
    %672 = vmatpush1.bf16.msra.mxu0 0
    %673 = vmatprep.subr.bf16.mxu0 0
    %674 = vmatpush1.bf16.msra.mxu0 0
    %675 = vmatprep.subr.bf16.mxu0 0
    %676 = vmatpush1.bf16.msra.mxu0 0
    %677 = vmatprep.subr.bf16.mxu0 0
    %678 = vmatpush1.bf16.msra.mxu0 0
    %679 = vmatprep.subr.bf16.mxu0 0
    %680 = vmatpush1.bf16.msra.mxu0 0
    %681 = vmatprep.subr.bf16.mxu0 0
    %682 = vmatpush1.bf16.msra.mxu0 0
    %683 = vmatprep.subr.bf16.mxu0 0
    %684 = vmatpush1.bf16.msra.mxu0 0
    %685 = vmatprep.subr.bf16.mxu0 0
    %686 = vmatpush1.bf16.msra.mxu0 0
    %687 = vmatprep.mubr.bf16.mxu0 0
    %688 = vmatmul.mubr.bf16.gmra.mrb[0].mxu0 %v632
    %v689 = vpop.f32.mrb[0].mxu0
    %v690 = vadd.f32 0.0, %v689
    %v691 = vpop.f32.mrb[0].mxu0
    %v692 = vpop.f32.mrb[0].mxu0
    %v693 = vadd.f32 0.0, %v692
    %v694 = vpop.f32.mrb[0].mxu0
    %695 = vmatprep.mubr.bf16.mxu0 0
    %696 = vmatmul.mubr.bf16.gmra.mrb[0].mxu0 %v635
    %v697 = vpop.f32.mrb[0].mxu0
    %v698 = vadd.f32 0.0, %v697
    %v699 = vpop.f32.mrb[0].mxu0
    %v700 = vpop.f32.mrb[0].mxu0
    %v701 = vadd.f32 0.0, %v700
    %v702 = vpop.f32.mrb[0].mxu0
    %703 = vmatprep.mubr.bf16.mxu0 0
    %704 = vmatmul.mubr.bf16.gmra.mrb[0].mxu0 %v638
    %v705 = vpop.f32.mrb[0].mxu0
    %v706 = vadd.f32 0.0, %v705
    %v707 = vpop.f32.mrb[0].mxu0
    %v708 = vpop.f32.mrb[0].mxu0
    %v709 = vadd.f32 0.0, %v708
    %v710 = vpop.f32.mrb[0].mxu0
    %711 = vmatprep.mubr.bf16.mxu0 0
    %712 = vmatmul.mubr.bf16.gmra.mrb[0].mxu0 %v641
    %v713 = vpop.f32.mrb[0].mxu0
    %v714 = vadd.f32 0.0, %v713
    %v715 = vpop.f32.mrb[0].mxu0
    %v716 = vpop.f32.mrb[0].mxu0
    %v717 = vadd.f32 0.0, %v716
    %v718 = vpop.f32.mrb[0].mxu0
    %719 = vmatprep.mubr.bf16.mxu0 0
    %720 = vmatmul.mubr.bf16.gmra.mrb[0].mxu0 %v644
    %v721 = vpop.f32.mrb[0].mxu0
    %v722 = vadd.f32 0.0, %v721
    %v723 = vpop.f32.mrb[0].mxu0
    %v724 = vpop.f32.mrb[0].mxu0
    %v725 = vadd.f32 0.0, %v724
    %v726 = vpop.f32.mrb[0].mxu0
    %727 = vmatprep.mubr.bf16.mxu0 0
    %728 = vmatmul.mubr.bf16.gmra.mrb[0].mxu0 %v647
    %v729 = vpop.f32.mrb[0].mxu0
    %v730 = vadd.f32 0.0, %v729
    %v731 = vpop.f32.mrb[0].mxu0
    %v732 = vpop.f32.mrb[0].mxu0
    %v733 = vadd.f32 0.0, %v732
    %v734 = vpop.f32.mrb[0].mxu0
    %735 = vmatprep.mubr.bf16.mxu0 0
    %736 = vmatmul.mubr.bf16.gmra.mrb[0].mxu0 %v650
    %v737 = vpop.f32.mrb[0].mxu0
    %v738 = vadd.f32 0.0, %v737
    %v739 = vpop.f32.mrb[0].mxu0
    %v740 = vpop.f32.mrb[0].mxu0
    %v741 = vadd.f32 0.0, %v740
    %v742 = vpop.f32.mrb[0].mxu0
    %743 = vmatprep.mubr.bf16.mxu0 0
    %744 = vmatmul.mubr.bf16.gmra.mrb[0].mxu0 %v653
    %v745 = vpop.f32.mrb[0].mxu0
    %v746 = vadd.f32 0.0, %v745
    %v747 = vpop.f32.mrb[0].mxu0
    %v748 = vpop.f32.mrb[0].mxu0
    %v749 = vadd.f32 0.0, %v748
    %v750 = vpop.f32.mrb[0].mxu0
    %751 = vdwg.mxu0
    %v752 = vmul.f32 %v690, %v564
    %v753 = vmul.f32 %v693, %v567
    %v754 = vmul.f32 %v698, %v572
    %v755 = vmul.f32 %v701, %v575
    %v756 = vmul.f32 %v706, %v580
    %v757 = vmul.f32 %v709, %v583
    %v758 = vmul.f32 %v714, %v588
    %v759 = vmul.f32 %v717, %v591
    %v760 = vmul.f32 %v722, %v596
    %v761 = vmul.f32 %v725, %v599
    %v762 = vmul.f32 %v730, %v604
    %v763 = vmul.f32 %v733, %v607
    %v764 = vmul.f32 %v738, %v612
    %v765 = vmul.f32 %v741, %v615
    %v766 = vmul.f32 %v746, %v620
    %v767 = vmul.f32 %v749, %v623
    %v768 = vpack.c.bf16 %v753, %v752
    %v769 = vpack.c.bf16 %v755, %v754
    %v770 = vpack.c.bf16 %v757, %v756
    %v771 = vpack.c.bf16 %v759, %v758
    %v772 = vpack.c.bf16 %v761, %v760
    %v773 = vpack.c.bf16 %v763, %v762
    %v774 = vpack.c.bf16 %v765, %v764
    %v775 = vpack.c.bf16 %v767, %v766
    %776 = vmatprep.subr.bf16.mxu0 0
    %777 = vmatpush1.bf16.msra.mxu0 %v768
    %778 = vmatprep.subr.bf16.mxu0 0
    %779 = vmatpush1.bf16.msra.mxu0 %v769
    %780 = vmatprep.subr.bf16.mxu0 0
    %781 = vmatpush1.bf16.msra.mxu0 %v770
    %782 = vmatprep.subr.bf16.mxu0 0
    %783 = vmatpush1.bf16.msra.mxu0 %v771
    %784 = vmatprep.subr.bf16.mxu0 0
    %785 = vmatpush1.bf16.msra.mxu0 %v772
    %786 = vmatprep.subr.bf16.mxu0 0
    %787 = vmatpush1.bf16.msra.mxu0 %v773
    %788 = vmatprep.subr.bf16.mxu0 0
    %789 = vmatpush1.bf16.msra.mxu0 %v774
    %790 = vmatprep.subr.bf16.mxu0 0
    %791 = vmatpush1.bf16.msra.mxu0 %v775
    %792 = vmatprep.subr.bf16.mxu0 0
    %793 = vmatpush1.bf16.msra.mxu0 0
    %794 = vmatprep.subr.bf16.mxu0 0
    %795 = vmatpush1.bf16.msra.mxu0 0
    %796 = vmatprep.subr.bf16.mxu0 0
    %797 = vmatpush1.bf16.msra.mxu0 0
    %798 = vmatprep.subr.bf16.mxu0 0
    %799 = vmatpush1.bf16.msra.mxu0 0
    %800 = vmatprep.subr.bf16.mxu0 0
    %801 = vmatpush1.bf16.msra.mxu0 0
    %802 = vmatprep.subr.bf16.mxu0 0
    %803 = vmatpush1.bf16.msra.mxu0 0
    %804 = vmatprep.subr.bf16.mxu0 0
    %805 = vmatpush1.bf16.msra.mxu0 0
    %806 = vmatprep.subr.bf16.mxu0 0
    %807 = vmatpush1.bf16.msra.mxu0 0
    %808 = vmatprep.mubr.bf16.mxu0 0
    %809 = vmatmul.mubr.bf16.gmra.mrb[0].mxu0 %v349
    %v810 = vpop.f32.mrb[0].mxu0
    %v811 = vadd.f32 0.0, %v810
    %v812 = vpop.f32.mrb[0].mxu0
    %v813 = vpop.f32.mrb[0].mxu0
    %v814 = vadd.f32 0.0, %v813
    %v815 = vpop.f32.mrb[0].mxu0
    %816 = vmatprep.mubr.bf16.mxu0 0
    %817 = vmatmul.mubr.bf16.gmra.mrb[0].mxu0 %v350
    %v818 = vpop.f32.mrb[0].mxu0
    %v819 = vadd.f32 0.0, %v818
    %v820 = vpop.f32.mrb[0].mxu0
    %v821 = vpop.f32.mrb[0].mxu0
    %v822 = vadd.f32 0.0, %v821
    %v823 = vpop.f32.mrb[0].mxu0
    %824 = vmatprep.mubr.bf16.mxu0 0
    %825 = vmatmul.mubr.bf16.gmra.mrb[0].mxu0 %v351
    %v826 = vpop.f32.mrb[0].mxu0
    %v827 = vadd.f32 0.0, %v826
    %v828 = vpop.f32.mrb[0].mxu0
    %v829 = vpop.f32.mrb[0].mxu0
    %v830 = vadd.f32 0.0, %v829
    %v831 = vpop.f32.mrb[0].mxu0
    %832 = vmatprep.mubr.bf16.mxu0 0
    %833 = vmatmul.mubr.bf16.gmra.mrb[0].mxu0 %v352
    %v834 = vpop.f32.mrb[0].mxu0
    %v835 = vadd.f32 0.0, %v834
    %v836 = vpop.f32.mrb[0].mxu0
    %v837 = vpop.f32.mrb[0].mxu0
    %v838 = vadd.f32 0.0, %v837
    %v839 = vpop.f32.mrb[0].mxu0
    %840 = vdwg.mxu0
    %v841 = vpack.c.bf16 %v814, %v811
    %v842 = vpack.c.bf16 %v822, %v819
    %v843 = vpack.c.bf16 %v830, %v827
    %v844 = vpack.c.bf16 %v838, %v835
    %v845 = vld [vmem:[%s10] sm:$0xf]
    %v846 = vld [vmem:[%s10 + $0x4] sm:$0xf]
    %v847 = vld [vmem:[%s10 + $0x8] sm:$0xf]
    %v848 = vld [vmem:[%s10 + $0xc] sm:$0xf]
    %v849 = vld [vmem:[%s10 + $0x10] sm:$0xf]
    %v850 = vld [vmem:[%s10 + $0x14] sm:$0xf]
    %v851 = vld [vmem:[%s10 + $0x18] sm:$0xf]
    %v852 = vld [vmem:[%s10 + $0x1c] sm:$0xf]
    %v853 = vld [vmem:[%s10 + $0x20] sm:$0xf]
    %v854 = vld [vmem:[%s10 + $0x24] sm:$0xf]
    %v855 = vld [vmem:[%s10 + $0x28] sm:$0xf]
    %v856 = vld [vmem:[%s10 + $0x2c] sm:$0xf]
    %v857 = vld [vmem:[%s10 + $0x30] sm:$0xf]
    %v858 = vld [vmem:[%s10 + $0x34] sm:$0xf]
    %v859 = vld [vmem:[%s10 + $0x38] sm:$0xf]
    %v860 = vld [vmem:[%s10 + $0x3c] sm:$0xf]
    %v861 = vld [vmem:[%s10 + $0x40] sm:$0xf]
    %v862 = vld [vmem:[%s10 + $0x44] sm:$0xf]
    %v863 = vld [vmem:[%s10 + $0x48] sm:$0xf]
    %v864 = vld [vmem:[%s10 + $0x4c] sm:$0xf]
    %v865 = vld [vmem:[%s10 + $0x50] sm:$0xf]
    %v866 = vld [vmem:[%s10 + $0x54] sm:$0xf]
    %v867 = vld [vmem:[%s10 + $0x58] sm:$0xf]
    %v868 = vld [vmem:[%s10 + $0x5c] sm:$0xf]
    %v869 = vld [vmem:[%s10 + $0x60] sm:$0xf]
    %v870 = vld [vmem:[%s10 + $0x64] sm:$0xf]
    %v871 = vld [vmem:[%s10 + $0x68] sm:$0xf]
    %v872 = vld [vmem:[%s10 + $0x6c] sm:$0xf]
    %v873 = vld [vmem:[%s10 + $0x70] sm:$0xf]
    %v874 = vld [vmem:[%s10 + $0x74] sm:$0xf]
    %v875 = vld [vmem:[%s10 + $0x78] sm:$0xf]
    %v876 = vld [vmem:[%s10 + $0x7c] sm:$0xf]
    %v877 = vld [vmem:[%s11] sm:$0x1]
    %v879 = vlaneseq
    %v880 = vshrl.u32 %v879, 7
    %v881 = vsub.s32 0, %v880
    %v882 = vrot.slane %v877, %v881
    %v916 = vunpack.c.l.b16 %v845
    %v917 = vunpack.c.l.b16 %v846
    %v918 = vunpack.c.l.b16 %v847
    %v919 = vunpack.c.l.b16 %v848
    %v920 = vunpack.c.l.b16 %v849
    %v921 = vunpack.c.l.b16 %v850
    %v922 = vunpack.c.l.b16 %v851
    %v923 = vunpack.c.l.b16 %v852
    %v924 = vunpack.c.l.b16 %v853
    %v925 = vunpack.c.l.b16 %v854
    %v926 = vunpack.c.l.b16 %v855
    %v927 = vunpack.c.l.b16 %v856
    %v928 = vunpack.c.l.b16 %v857
    %v929 = vunpack.c.l.b16 %v858
    %v930 = vunpack.c.l.b16 %v859
    %v931 = vunpack.c.l.b16 %v860
    %v932 = vunpack.c.l.b16 %v861
    %v933 = vunpack.c.l.b16 %v862
    %v934 = vunpack.c.l.b16 %v863
    %v935 = vunpack.c.l.b16 %v864
    %v936 = vunpack.c.l.b16 %v865
    %v937 = vunpack.c.l.b16 %v866
    %v938 = vunpack.c.l.b16 %v867
    %v939 = vunpack.c.l.b16 %v868
    %v940 = vunpack.c.l.b16 %v869
    %v941 = vunpack.c.l.b16 %v870
    %v942 = vunpack.c.l.b16 %v871
    %v943 = vunpack.c.l.b16 %v872
    %v944 = vunpack.c.l.b16 %v873
    %v945 = vunpack.c.l.b16 %v874
    %v946 = vunpack.c.l.b16 %v875
    %v947 = vunpack.c.l.b16 %v876
    %v948 = vpack.c.b16 %v917, %v916
    %v949 = vpack.c.b16 %v919, %v918
    %v950 = vpack.c.b16 %v921, %v920
    %v951 = vpack.c.b16 %v923, %v922
    %v952 = vpack.c.b16 %v925, %v924
    %v953 = vpack.c.b16 %v927, %v926
    %v954 = vpack.c.b16 %v929, %v928
    %v955 = vpack.c.b16 %v931, %v930
    %v956 = vpack.c.b16 %v933, %v932
    %v957 = vpack.c.b16 %v935, %v934
    %v958 = vpack.c.b16 %v937, %v936
    %v959 = vpack.c.b16 %v939, %v938
    %v960 = vpack.c.b16 %v941, %v940
    %v961 = vpack.c.b16 %v943, %v942
    %v962 = vpack.c.b16 %v945, %v944
    %v963 = vpack.c.b16 %v947, %v946
    %980 = vmatprep.subr.bf16.mxu0 0
    %981 = vmatpush1.bf16.msra.mxu0 %v948
    %982 = vmatprep.subr.bf16.mxu0 0
    %983 = vmatpush1.bf16.msra.mxu0 %v949
    %984 = vmatprep.subr.bf16.mxu0 0
    %985 = vmatpush1.bf16.msra.mxu0 %v950
    %986 = vmatprep.subr.bf16.mxu0 0
    %987 = vmatpush1.bf16.msra.mxu0 %v951
    %988 = vmatprep.subr.bf16.mxu0 0
    %989 = vmatpush1.bf16.msra.mxu0 %v952
    %990 = vmatprep.subr.bf16.mxu0 0
    %991 = vmatpush1.bf16.msra.mxu0 %v953
    %992 = vmatprep.subr.bf16.mxu0 0
    %993 = vmatpush1.bf16.msra.mxu0 %v954
    %994 = vmatprep.subr.bf16.mxu0 0
    %995 = vmatpush1.bf16.msra.mxu0 %v955
    %996 = vmatprep.subr.bf16.mxu0 0
    %997 = vmatpush1.bf16.msra.mxu0 %v956
    %998 = vmatprep.subr.bf16.mxu0 0
    %999 = vmatpush1.bf16.msra.mxu0 %v957
    %1000 = vmatprep.subr.bf16.mxu0 0
    %1001 = vmatpush1.bf16.msra.mxu0 %v958
    %1002 = vmatprep.subr.bf16.mxu0 0
    %1003 = vmatpush1.bf16.msra.mxu0 %v959
    %1004 = vmatprep.subr.bf16.mxu0 0
    %1005 = vmatpush1.bf16.msra.mxu0 %v960
    %1006 = vmatprep.subr.bf16.mxu0 0
    %1007 = vmatpush1.bf16.msra.mxu0 %v961
    %1008 = vmatprep.subr.bf16.mxu0 0
    %1009 = vmatpush1.bf16.msra.mxu0 %v962
    %1010 = vmatprep.subr.bf16.mxu0 0
    %1011 = vmatpush1.bf16.msra.mxu0 %v963
    %1012 = vmatprep.mubr.bf16.mxu0 %v626
    %1013 = vmatmul.mubr.bf16.gmra.mrb[0].mxu0 %v841
    %v1014 = vpop.f32.mrb[0].mxu0
    %v1015 = vadd.f32 %v882, %v1014
    %v1016 = vpop.f32.mrb[0].mxu0
    %v1017 = vpop.f32.mrb[0].mxu0
    %v1018 = vadd.f32 %v882, %v1017
    %v1019 = vpop.f32.mrb[0].mxu0
    %1020 = vmatprep.mubr.bf16.mxu0 %v627
    %1021 = vmatmul.mubr.bf16.gmra.mrb[0].mxu0 %v842
    %v1022 = vpop.f32.mrb[0].mxu0
    %v1023 = vadd.f32 %v882, %v1022
    %v1024 = vpop.f32.mrb[0].mxu0
    %v1025 = vpop.f32.mrb[0].mxu0
    %v1026 = vadd.f32 %v882, %v1025
    %v1027 = vpop.f32.mrb[0].mxu0
    %1028 = vmatprep.mubr.bf16.mxu0 %v628
    %1029 = vmatmul.mubr.bf16.gmra.mrb[0].mxu0 %v843
    %v1030 = vpop.f32.mrb[0].mxu0
    %v1031 = vadd.f32 %v882, %v1030
    %v1032 = vpop.f32.mrb[0].mxu0
    %v1033 = vpop.f32.mrb[0].mxu0
    %v1034 = vadd.f32 %v882, %v1033
    %v1035 = vpop.f32.mrb[0].mxu0
    %1036 = vmatprep.mubr.bf16.mxu0 %v629
    %1037 = vmatmul.mubr.bf16.gmra.mrb[0].mxu0 %v844
    %v1038 = vpop.f32.mrb[0].mxu0
    %v1039 = vadd.f32 %v882, %v1038
    %v1040 = vpop.f32.mrb[0].mxu0
    %v1041 = vpop.f32.mrb[0].mxu0
    %v1042 = vadd.f32 %v882, %v1041
    %v1043 = vpop.f32.mrb[0].mxu0
    %1044 = vdwg.mxu0
    %v1045 = vadd.f32 %v1015, %v1018
    %v1046 = vadd.f32 %v1045, %v1023
    %v1047 = vadd.f32 %v1046, %v1026
    %v1048 = vadd.f32 %v1047, %v1031
    %v1049 = vadd.f32 %v1048, %v1034
    %v1050 = vadd.f32 %v1049, %v1039
    %v1051 = vadd.f32 %v1050, %v1042
    %v1052 = vrot.slane %v1051, 4
    %v1053 = vadd.f32 %v1051, %v1052
    %v1054 = vrot.slane %v1053, 2
    %v1055 = vadd.f32 %v1053, %v1054
    %v1056 = vrot.slane %v1055, 1
    %v1057 = vadd.f32 %v1055, %v1056
    %v1058 = vrcp.pop 64.0
    %v1059 = vmul.f32 %v1057, %v1058
    %v1060 = vsub.f32 %v1015, %v1059
    %v1061 = vsub.f32 %v1018, %v1059
    %v1062 = vsub.f32 %v1023, %v1059
    %v1063 = vsub.f32 %v1026, %v1059
    %v1064 = vsub.f32 %v1031, %v1059
    %v1065 = vsub.f32 %v1034, %v1059
    %v1066 = vsub.f32 %v1039, %v1059
    %v1067 = vsub.f32 %v1042, %v1059
    %v1068 = vmul.f32 %v1060, %v1060
    %v1069 = vmul.f32 %v1061, %v1061
    %v1070 = vmul.f32 %v1062, %v1062
    %v1071 = vmul.f32 %v1063, %v1063
    %v1072 = vmul.f32 %v1064, %v1064
    %v1073 = vmul.f32 %v1065, %v1065
    %v1074 = vmul.f32 %v1066, %v1066
    %v1075 = vmul.f32 %v1067, %v1067
    %v1076 = vadd.f32 %v1068, %v1069
    %v1077 = vadd.f32 %v1076, %v1070
    %v1078 = vadd.f32 %v1077, %v1071
    %v1079 = vadd.f32 %v1078, %v1072
    %v1080 = vadd.f32 %v1079, %v1073
    %v1081 = vadd.f32 %v1080, %v1074
    %v1082 = vadd.f32 %v1081, %v1075
    %v1083 = vrot.slane %v1082, 4
    %v1084 = vadd.f32 %v1082, %v1083
    %v1085 = vrot.slane %v1084, 2
    %v1086 = vadd.f32 %v1084, %v1085
    %v1087 = vrot.slane %v1086, 1
    %v1088 = vadd.f32 %v1086, %v1087
    %v1089 = vmul.f32 %v1088, %v1058
    %v1090 = vadd.f32 %v1089, 1e-05
    %v1091 = vrsqrt.pop %v1090
    %v1092 = vmul.f32 %v1060, %v1091
    %v1093 = vmul.f32 %v1061, %v1091
    %v1094 = vmul.f32 %v1062, %v1091
    %v1095 = vmul.f32 %v1063, %v1091
    %v1096 = vmul.f32 %v1064, %v1091
    %v1097 = vmul.f32 %v1065, %v1091
    %v1098 = vmul.f32 %v1066, %v1091
    %v1099 = vmul.f32 %v1067, %v1091
    %v1100 = vld [vmem:[#allocation15] sm:$0x1]
    %v1102 = vlaneseq
    %v1103 = vshrl.u32 %v1102, 7
    %v1104 = vsub.s32 0, %v1103
    %v1105 = vrot.slane %v1100, %v1104
    %v1107 = vmul.f32 %v1092, %v1105
    %v1108 = vmul.f32 %v1093, %v1105
    %v1109 = vmul.f32 %v1094, %v1105
    %v1110 = vmul.f32 %v1095, %v1105
    %v1111 = vmul.f32 %v1096, %v1105
    %v1112 = vmul.f32 %v1097, %v1105
    %v1113 = vmul.f32 %v1098, %v1105
    %v1114 = vmul.f32 %v1099, %v1105
    %v1115 = vld [vmem:[%s13] sm:$0x1]
    %v1117 = vlaneseq
    %v1118 = vshrl.u32 %v1117, 7
    %v1119 = vsub.s32 0, %v1118
    %v1120 = vrot.slane %v1115, %v1119
    %v1122 = vadd.f32 %v1107, %v1120
    %v1123 = vadd.f32 %v1108, %v1120
    %v1124 = vadd.f32 %v1109, %v1120
    %v1125 = vadd.f32 %v1110, %v1120
    %v1126 = vadd.f32 %v1111, %v1120
    %v1127 = vadd.f32 %v1112, %v1120
    %v1128 = vadd.f32 %v1113, %v1120
    %v1129 = vadd.f32 %v1114, %v1120
    %v1130 = vadd.f32 %v1122, %v435
    %v1131 = vadd.f32 %v1123, %v438
    %v1132 = vadd.f32 %v1124, %v443
    %v1133 = vadd.f32 %v1125, %v446
    %v1134 = vadd.f32 %v1126, %v451
    %v1135 = vadd.f32 %v1127, %v454
    %v1136 = vadd.f32 %v1128, %v459
    %v1137 = vadd.f32 %v1129, %v462
    %v1138 = vmax.f32 %v1130, 0.0
    %v1139 = vmax.f32 %v1131, 0.0
    %v1140 = vmax.f32 %v1132, 0.0
    %v1141 = vmax.f32 %v1133, 0.0
    %v1142 = vmax.f32 %v1134, 0.0
    %v1143 = vmax.f32 %v1135, 0.0
    %v1144 = vmax.f32 %v1136, 0.0
    %v1145 = vmax.f32 %v1137, 0.0
    %v1146 = vpack.c.bf16 %v1139, %v1138
    %v1147 = vpack.c.bf16 %v1141, %v1140
    %v1148 = vpack.c.bf16 %v1143, %v1142
    %v1149 = vpack.c.bf16 %v1145, %v1144
    %1150 = vmatprep.subr.bf16.mxu0 0
    %1151 = vmatpush1.bf16.msra.mxu0 %v1146
    %1152 = vmatprep.subr.bf16.mxu0 0
    %1153 = vmatpush1.bf16.msra.mxu0 %v1147
    %1154 = vmatprep.subr.bf16.mxu0 0
    %1155 = vmatpush1.bf16.msra.mxu0 %v1148
    %1156 = vmatprep.subr.bf16.mxu0 0
    %1157 = vmatpush1.bf16.msra.mxu0 %v1149
    %1158 = vmatprep.subr.bf16.mxu0 0
    %1159 = vmatpush1.bf16.msra.mxu0 0
    %1160 = vmatprep.subr.bf16.mxu0 0
    %1161 = vmatpush1.bf16.msra.mxu0 0
    %1162 = vmatprep.subr.bf16.mxu0 0
    %1163 = vmatpush1.bf16.msra.mxu0 0
    %1164 = vmatprep.subr.bf16.mxu0 0
    %1165 = vmatpush1.bf16.msra.mxu0 0
    %1166 = vmatprep.subr.bf16.mxu0 0
    %1167 = vmatpush1.bf16.msra.mxu0 0
    %1168 = vmatprep.subr.bf16.mxu0 0
    %1169 = vmatpush1.bf16.msra.mxu0 0
    %1170 = vmatprep.subr.bf16.mxu0 0
    %1171 = vmatpush1.bf16.msra.mxu0 0
    %1172 = vmatprep.subr.bf16.mxu0 0
    %1173 = vmatpush1.bf16.msra.mxu0 0
    %1174 = vmatprep.subr.bf16.mxu0 0
    %1175 = vmatpush1.bf16.msra.mxu0 0
    %1176 = vmatprep.subr.bf16.mxu0 0
    %1177 = vmatpush1.bf16.msra.mxu0 0
    %1178 = vmatprep.subr.bf16.mxu0 0
    %1179 = vmatpush1.bf16.msra.mxu0 0
    %1180 = vmatprep.subr.bf16.mxu0 0
    %1181 = vmatpush1.bf16.msra.mxu0 0
    %1182 = vmatprep.mubr.bf16.mxu0 0
    %1183 = vmatmul.mubr.bf16.gmra.mrb[0].mxu0 %v632
    %v1184 = vpop.f32.mrb[0].mxu0
    %v1185 = vadd.f32 0.0, %v1184
    %v1186 = vpop.f32.mrb[0].mxu0
    %v1187 = vpop.f32.mrb[0].mxu0
    %v1188 = vadd.f32 0.0, %v1187
    %v1189 = vpop.f32.mrb[0].mxu0
    %1190 = vmatprep.mubr.bf16.mxu0 0
    %1191 = vmatmul.mubr.bf16.gmra.mrb[0].mxu0 %v635
    %v1192 = vpop.f32.mrb[0].mxu0
    %v1193 = vadd.f32 0.0, %v1192
    %v1194 = vpop.f32.mrb[0].mxu0
    %v1195 = vpop.f32.mrb[0].mxu0
    %v1196 = vadd.f32 0.0, %v1195
    %v1197 = vpop.f32.mrb[0].mxu0
    %1198 = vmatprep.mubr.bf16.mxu0 0
    %1199 = vmatmul.mubr.bf16.gmra.mrb[0].mxu0 %v638
    %v1200 = vpop.f32.mrb[0].mxu0
    %v1201 = vadd.f32 0.0, %v1200
    %v1202 = vpop.f32.mrb[0].mxu0
    %v1203 = vpop.f32.mrb[0].mxu0
    %v1204 = vadd.f32 0.0, %v1203
    %v1205 = vpop.f32.mrb[0].mxu0
    %1206 = vmatprep.mubr.bf16.mxu0 0
    %1207 = vmatmul.mubr.bf16.gmra.mrb[0].mxu0 %v641
    %v1208 = vpop.f32.mrb[0].mxu0
    %v1209 = vadd.f32 0.0, %v1208
    %v1210 = vpop.f32.mrb[0].mxu0
    %v1211 = vpop.f32.mrb[0].mxu0
    %v1212 = vadd.f32 0.0, %v1211
    %v1213 = vpop.f32.mrb[0].mxu0
    %1214 = vmatprep.mubr.bf16.mxu0 0
    %1215 = vmatmul.mubr.bf16.gmra.mrb[0].mxu0 %v644
    %v1216 = vpop.f32.mrb[0].mxu0
    %v1217 = vadd.f32 0.0, %v1216
    %v1218 = vpop.f32.mrb[0].mxu0
    %v1219 = vpop.f32.mrb[0].mxu0
    %v1220 = vadd.f32 0.0, %v1219
    %v1221 = vpop.f32.mrb[0].mxu0
    %1222 = vmatprep.mubr.bf16.mxu0 0
    %1223 = vmatmul.mubr.bf16.gmra.mrb[0].mxu0 %v647
    %v1224 = vpop.f32.mrb[0].mxu0
    %v1225 = vadd.f32 0.0, %v1224
    %v1226 = vpop.f32.mrb[0].mxu0
    %v1227 = vpop.f32.mrb[0].mxu0
    %v1228 = vadd.f32 0.0, %v1227
    %v1229 = vpop.f32.mrb[0].mxu0
    %1230 = vmatprep.mubr.bf16.mxu0 0
    %1231 = vmatmul.mubr.bf16.gmra.mrb[0].mxu0 %v650
    %v1232 = vpop.f32.mrb[0].mxu0
    %v1233 = vadd.f32 0.0, %v1232
    %v1234 = vpop.f32.mrb[0].mxu0
    %v1235 = vpop.f32.mrb[0].mxu0
    %v1236 = vadd.f32 0.0, %v1235
    %v1237 = vpop.f32.mrb[0].mxu0
    %1238 = vmatprep.mubr.bf16.mxu0 0
    %1239 = vmatmul.mubr.bf16.gmra.mrb[0].mxu0 %v653
    %v1240 = vpop.f32.mrb[0].mxu0
    %v1241 = vadd.f32 0.0, %v1240
    %v1242 = vpop.f32.mrb[0].mxu0
    %v1243 = vpop.f32.mrb[0].mxu0
    %v1244 = vadd.f32 0.0, %v1243
    %v1245 = vpop.f32.mrb[0].mxu0
    %1246 = vdwg.mxu0
    %v1247 = vmul.f32 %v1185, %v564
    %v1248 = vmul.f32 %v1188, %v567
    %v1249 = vmul.f32 %v1193, %v572
    %v1250 = vmul.f32 %v1196, %v575
    %v1251 = vmul.f32 %v1201, %v580
    %v1252 = vmul.f32 %v1204, %v583
    %v1253 = vmul.f32 %v1209, %v588
    %v1254 = vmul.f32 %v1212, %v591
    %v1255 = vmul.f32 %v1217, %v596
    %v1256 = vmul.f32 %v1220, %v599
    %v1257 = vmul.f32 %v1225, %v604
    %v1258 = vmul.f32 %v1228, %v607
    %v1259 = vmul.f32 %v1233, %v612
    %v1260 = vmul.f32 %v1236, %v615
    %v1261 = vmul.f32 %v1241, %v620
    %v1262 = vmul.f32 %v1244, %v623
    %v1263 = vpack.c.bf16 %v1248, %v1247
    %v1264 = vpack.c.bf16 %v1250, %v1249
    %v1265 = vpack.c.bf16 %v1252, %v1251
    %v1266 = vpack.c.bf16 %v1254, %v1253
    %v1267 = vpack.c.bf16 %v1256, %v1255
    %v1268 = vpack.c.bf16 %v1258, %v1257
    %v1269 = vpack.c.bf16 %v1260, %v1259
    %v1270 = vpack.c.bf16 %v1262, %v1261
    %1271 = vmatprep.subr.bf16.mxu0 0
    %1272 = vmatpush1.bf16.msra.mxu0 %v1263
    %1273 = vmatprep.subr.bf16.mxu0 0
    %1274 = vmatpush1.bf16.msra.mxu0 %v1264
    %1275 = vmatprep.subr.bf16.mxu0 0
    %1276 = vmatpush1.bf16.msra.mxu0 %v1265
    %1277 = vmatprep.subr.bf16.mxu0 0
    %1278 = vmatpush1.bf16.msra.mxu0 %v1266
    %1279 = vmatprep.subr.bf16.mxu0 0
    %1280 = vmatpush1.bf16.msra.mxu0 %v1267
    %1281 = vmatprep.subr.bf16.mxu0 0
    %1282 = vmatpush1.bf16.msra.mxu0 %v1268
    %1283 = vmatprep.subr.bf16.mxu0 0
    %1284 = vmatpush1.bf16.msra.mxu0 %v1269
    %1285 = vmatprep.subr.bf16.mxu0 0
    %1286 = vmatpush1.bf16.msra.mxu0 %v1270
    %1287 = vmatprep.subr.bf16.mxu0 0
    %1288 = vmatpush1.bf16.msra.mxu0 0
    %1289 = vmatprep.subr.bf16.mxu0 0
    %1290 = vmatpush1.bf16.msra.mxu0 0
    %1291 = vmatprep.subr.bf16.mxu0 0
    %1292 = vmatpush1.bf16.msra.mxu0 0
    %1293 = vmatprep.subr.bf16.mxu0 0
    %1294 = vmatpush1.bf16.msra.mxu0 0
    %1295 = vmatprep.subr.bf16.mxu0 0
    %1296 = vmatpush1.bf16.msra.mxu0 0
    %1297 = vmatprep.subr.bf16.mxu0 0
    %1298 = vmatpush1.bf16.msra.mxu0 0
    %1299 = vmatprep.subr.bf16.mxu0 0
    %1300 = vmatpush1.bf16.msra.mxu0 0
    %1301 = vmatprep.subr.bf16.mxu0 0
    %1302 = vmatpush1.bf16.msra.mxu0 0
    %1303 = vmatprep.mubr.bf16.mxu0 0
    %1304 = vmatmul.mubr.bf16.gmra.mrb[0].mxu0 %v349
    %v1305 = vpop.f32.mrb[0].mxu0
    %v1306 = vadd.f32 0.0, %v1305
    %v1307 = vpop.f32.mrb[0].mxu0
    %v1308 = vpop.f32.mrb[0].mxu0
    %v1309 = vadd.f32 0.0, %v1308
    %v1310 = vpop.f32.mrb[0].mxu0
    %1311 = vmatprep.mubr.bf16.mxu0 0
    %1312 = vmatmul.mubr.bf16.gmra.mrb[0].mxu0 %v350
    %v1313 = vpop.f32.mrb[0].mxu0
    %v1314 = vadd.f32 0.0, %v1313
    %v1315 = vpop.f32.mrb[0].mxu0
    %v1316 = vpop.f32.mrb[0].mxu0
    %v1317 = vadd.f32 0.0, %v1316
    %v1318 = vpop.f32.mrb[0].mxu0
    %1319 = vmatprep.mubr.bf16.mxu0 0
    %1320 = vmatmul.mubr.bf16.gmra.mrb[0].mxu0 %v351
    %v1321 = vpop.f32.mrb[0].mxu0
    %v1322 = vadd.f32 0.0, %v1321
    %v1323 = vpop.f32.mrb[0].mxu0
    %v1324 = vpop.f32.mrb[0].mxu0
    %v1325 = vadd.f32 0.0, %v1324
    %v1326 = vpop.f32.mrb[0].mxu0
    %1327 = vmatprep.mubr.bf16.mxu0 0
    %1328 = vmatmul.mubr.bf16.gmra.mrb[0].mxu0 %v352
    %v1329 = vpop.f32.mrb[0].mxu0
    %v1330 = vadd.f32 0.0, %v1329
    %v1331 = vpop.f32.mrb[0].mxu0
    %v1332 = vpop.f32.mrb[0].mxu0
    %v1333 = vadd.f32 0.0, %v1332
    %v1334 = vpop.f32.mrb[0].mxu0
    %1335 = vdwg.mxu0
    %v1336 = vpack.c.bf16 %v1309, %v1306
    %v1337 = vpack.c.bf16 %v1317, %v1314
    %v1338 = vpack.c.bf16 %v1325, %v1322
    %v1339 = vpack.c.bf16 %v1333, %v1330
    %s1340 = scalar_lea.vmem %s10, 128
    %v1341 = vld [vmem:[%s1340] sm:$0xf]
    %v1342 = vld [vmem:[%s1340 + $0x4] sm:$0xf]
    %v1343 = vld [vmem:[%s1340 + $0x8] sm:$0xf]
    %v1344 = vld [vmem:[%s1340 + $0xc] sm:$0xf]
    %v1345 = vld [vmem:[%s1340 + $0x10] sm:$0xf]
    %v1346 = vld [vmem:[%s1340 + $0x14] sm:$0xf]
    %v1347 = vld [vmem:[%s1340 + $0x18] sm:$0xf]
    %v1348 = vld [vmem:[%s1340 + $0x1c] sm:$0xf]
    %v1349 = vld [vmem:[%s1340 + $0x20] sm:$0xf]
    %v1350 = vld [vmem:[%s1340 + $0x24] sm:$0xf]
    %v1351 = vld [vmem:[%s1340 + $0x28] sm:$0xf]
    %v1352 = vld [vmem:[%s1340 + $0x2c] sm:$0xf]
    %v1353 = vld [vmem:[%s1340 + $0x30] sm:$0xf]
    %v1354 = vld [vmem:[%s1340 + $0x34] sm:$0xf]
    %v1355 = vld [vmem:[%s1340 + $0x38] sm:$0xf]
    %v1356 = vld [vmem:[%s1340 + $0x3c] sm:$0xf]
    %v1357 = vld [vmem:[%s1340 + $0x40] sm:$0xf]
    %v1358 = vld [vmem:[%s1340 + $0x44] sm:$0xf]
    %v1359 = vld [vmem:[%s1340 + $0x48] sm:$0xf]
    %v1360 = vld [vmem:[%s1340 + $0x4c] sm:$0xf]
    %v1361 = vld [vmem:[%s1340 + $0x50] sm:$0xf]
    %v1362 = vld [vmem:[%s1340 + $0x54] sm:$0xf]
    %v1363 = vld [vmem:[%s1340 + $0x58] sm:$0xf]
    %v1364 = vld [vmem:[%s1340 + $0x5c] sm:$0xf]
    %v1365 = vld [vmem:[%s1340 + $0x60] sm:$0xf]
    %v1366 = vld [vmem:[%s1340 + $0x64] sm:$0xf]
    %v1367 = vld [vmem:[%s1340 + $0x68] sm:$0xf]
    %v1368 = vld [vmem:[%s1340 + $0x6c] sm:$0xf]
    %v1369 = vld [vmem:[%s1340 + $0x70] sm:$0xf]
    %v1370 = vld [vmem:[%s1340 + $0x74] sm:$0xf]
    %v1371 = vld [vmem:[%s1340 + $0x78] sm:$0xf]
    %v1372 = vld [vmem:[%s1340 + $0x7c] sm:$0xf]
    %s1373 = scalar_lea.vmem %s11, 1
    %v1374 = vld [vmem:[%s1373] sm:$0x1]
    %v1376 = vlaneseq
    %v1377 = vshrl.u32 %v1376, 7
    %v1378 = vsub.s32 0, %v1377
    %v1379 = vrot.slane %v1374, %v1378
    %v1413 = vunpack.c.l.b16 %v1341
    %v1414 = vunpack.c.l.b16 %v1342
    %v1415 = vunpack.c.l.b16 %v1343
    %v1416 = vunpack.c.l.b16 %v1344
    %v1417 = vunpack.c.l.b16 %v1345
    %v1418 = vunpack.c.l.b16 %v1346
    %v1419 = vunpack.c.l.b16 %v1347
    %v1420 = vunpack.c.l.b16 %v1348
    %v1421 = vunpack.c.l.b16 %v1349
    %v1422 = vunpack.c.l.b16 %v1350
    %v1423 = vunpack.c.l.b16 %v1351
    %v1424 = vunpack.c.l.b16 %v1352
    %v1425 = vunpack.c.l.b16 %v1353
    %v1426 = vunpack.c.l.b16 %v1354
    %v1427 = vunpack.c.l.b16 %v1355
    %v1428 = vunpack.c.l.b16 %v1356
    %v1429 = vunpack.c.l.b16 %v1357
    %v1430 = vunpack.c.l.b16 %v1358
    %v1431 = vunpack.c.l.b16 %v1359
    %v1432 = vunpack.c.l.b16 %v1360
    %v1433 = vunpack.c.l.b16 %v1361
    %v1434 = vunpack.c.l.b16 %v1362
    %v1435 = vunpack.c.l.b16 %v1363
    %v1436 = vunpack.c.l.b16 %v1364
    %v1437 = vunpack.c.l.b16 %v1365
    %v1438 = vunpack.c.l.b16 %v1366
    %v1439 = vunpack.c.l.b16 %v1367
    %v1440 = vunpack.c.l.b16 %v1368
    %v1441 = vunpack.c.l.b16 %v1369
    %v1442 = vunpack.c.l.b16 %v1370
    %v1443 = vunpack.c.l.b16 %v1371
    %v1444 = vunpack.c.l.b16 %v1372
    %v1445 = vpack.c.b16 %v1414, %v1413
    %v1446 = vpack.c.b16 %v1416, %v1415
    %v1447 = vpack.c.b16 %v1418, %v1417
    %v1448 = vpack.c.b16 %v1420, %v1419
    %v1449 = vpack.c.b16 %v1422, %v1421
    %v1450 = vpack.c.b16 %v1424, %v1423
    %v1451 = vpack.c.b16 %v1426, %v1425
    %v1452 = vpack.c.b16 %v1428, %v1427
    %v1453 = vpack.c.b16 %v1430, %v1429
    %v1454 = vpack.c.b16 %v1432, %v1431
    %v1455 = vpack.c.b16 %v1434, %v1433
    %v1456 = vpack.c.b16 %v1436, %v1435
    %v1457 = vpack.c.b16 %v1438, %v1437
    %v1458 = vpack.c.b16 %v1440, %v1439
    %v1459 = vpack.c.b16 %v1442, %v1441
    %v1460 = vpack.c.b16 %v1444, %v1443
    %1477 = vmatprep.subr.bf16.mxu0 0
    %1478 = vmatpush1.bf16.msra.mxu0 %v1445
    %1479 = vmatprep.subr.bf16.mxu0 0
    %1480 = vmatpush1.bf16.msra.mxu0 %v1446
    %1481 = vmatprep.subr.bf16.mxu0 0
    %1482 = vmatpush1.bf16.msra.mxu0 %v1447
    %1483 = vmatprep.subr.bf16.mxu0 0
    %1484 = vmatpush1.bf16.msra.mxu0 %v1448
    %1485 = vmatprep.subr.bf16.mxu0 0
    %1486 = vmatpush1.bf16.msra.mxu0 %v1449
    %1487 = vmatprep.subr.bf16.mxu0 0
    %1488 = vmatpush1.bf16.msra.mxu0 %v1450
    %1489 = vmatprep.subr.bf16.mxu0 0
    %1490 = vmatpush1.bf16.msra.mxu0 %v1451
    %1491 = vmatprep.subr.bf16.mxu0 0
    %1492 = vmatpush1.bf16.msra.mxu0 %v1452
    %1493 = vmatprep.subr.bf16.mxu0 0
    %1494 = vmatpush1.bf16.msra.mxu0 %v1453
    %1495 = vmatprep.subr.bf16.mxu0 0
    %1496 = vmatpush1.bf16.msra.mxu0 %v1454
    %1497 = vmatprep.subr.bf16.mxu0 0
    %1498 = vmatpush1.bf16.msra.mxu0 %v1455
    %1499 = vmatprep.subr.bf16.mxu0 0
    %1500 = vmatpush1.bf16.msra.mxu0 %v1456
    %1501 = vmatprep.subr.bf16.mxu0 0
    %1502 = vmatpush1.bf16.msra.mxu0 %v1457
    %1503 = vmatprep.subr.bf16.mxu0 0
    %1504 = vmatpush1.bf16.msra.mxu0 %v1458
    %1505 = vmatprep.subr.bf16.mxu0 0
    %1506 = vmatpush1.bf16.msra.mxu0 %v1459
    %1507 = vmatprep.subr.bf16.mxu0 0
    %1508 = vmatpush1.bf16.msra.mxu0 %v1460
    %1509 = vmatprep.mubr.bf16.mxu0 %v1146
    %1510 = vmatmul.mubr.bf16.gmra.mrb[0].mxu0 %v1336
    %v1511 = vpop.f32.mrb[0].mxu0
    %v1512 = vadd.f32 %v1379, %v1511
    %v1513 = vpop.f32.mrb[0].mxu0
    %v1514 = vpop.f32.mrb[0].mxu0
    %v1515 = vadd.f32 %v1379, %v1514
    %v1516 = vpop.f32.mrb[0].mxu0
    %1517 = vmatprep.mubr.bf16.mxu0 %v1147
    %1518 = vmatmul.mubr.bf16.gmra.mrb[0].mxu0 %v1337
    %v1519 = vpop.f32.mrb[0].mxu0
    %v1520 = vadd.f32 %v1379, %v1519
    %v1521 = vpop.f32.mrb[0].mxu0
    %v1522 = vpop.f32.mrb[0].mxu0
    %v1523 = vadd.f32 %v1379, %v1522
    %v1524 = vpop.f32.mrb[0].mxu0
    %1525 = vmatprep.mubr.bf16.mxu0 %v1148
    %1526 = vmatmul.mubr.bf16.gmra.mrb[0].mxu0 %v1338
    %v1527 = vpop.f32.mrb[0].mxu0
    %v1528 = vadd.f32 %v1379, %v1527
    %v1529 = vpop.f32.mrb[0].mxu0
    %v1530 = vpop.f32.mrb[0].mxu0
    %v1531 = vadd.f32 %v1379, %v1530
    %v1532 = vpop.f32.mrb[0].mxu0
    %1533 = vmatprep.mubr.bf16.mxu0 %v1149
    %1534 = vmatmul.mubr.bf16.gmra.mrb[0].mxu0 %v1339
    %v1535 = vpop.f32.mrb[0].mxu0
    %v1536 = vadd.f32 %v1379, %v1535
    %v1537 = vpop.f32.mrb[0].mxu0
    %v1538 = vpop.f32.mrb[0].mxu0
    %v1539 = vadd.f32 %v1379, %v1538
    %v1540 = vpop.f32.mrb[0].mxu0
    %1541 = vdwg.mxu0
    %v1542 = vadd.f32 %v1512, %v1515
    %v1543 = vadd.f32 %v1542, %v1520
    %v1544 = vadd.f32 %v1543, %v1523
    %v1545 = vadd.f32 %v1544, %v1528
    %v1546 = vadd.f32 %v1545, %v1531
    %v1547 = vadd.f32 %v1546, %v1536
    %v1548 = vadd.f32 %v1547, %v1539
    %v1549 = vrot.slane %v1548, 4
    %v1550 = vadd.f32 %v1548, %v1549
    %v1551 = vrot.slane %v1550, 2
    %v1552 = vadd.f32 %v1550, %v1551
    %v1553 = vrot.slane %v1552, 1
    %v1554 = vadd.f32 %v1552, %v1553
    %v1555 = vmul.f32 %v1554, %v1058
    %v1556 = vsub.f32 %v1512, %v1555
    %v1557 = vsub.f32 %v1515, %v1555
    %v1558 = vsub.f32 %v1520, %v1555
    %v1559 = vsub.f32 %v1523, %v1555
    %v1560 = vsub.f32 %v1528, %v1555
    %v1561 = vsub.f32 %v1531, %v1555
    %v1562 = vsub.f32 %v1536, %v1555
    %v1563 = vsub.f32 %v1539, %v1555
    %v1564 = vmul.f32 %v1556, %v1556
    %v1565 = vmul.f32 %v1557, %v1557
    %v1566 = vmul.f32 %v1558, %v1558
    %v1567 = vmul.f32 %v1559, %v1559
    %v1568 = vmul.f32 %v1560, %v1560
    %v1569 = vmul.f32 %v1561, %v1561
    %v1570 = vmul.f32 %v1562, %v1562
    %v1571 = vmul.f32 %v1563, %v1563
    %v1572 = vadd.f32 %v1564, %v1565
    %v1573 = vadd.f32 %v1572, %v1566
    %v1574 = vadd.f32 %v1573, %v1567
    %v1575 = vadd.f32 %v1574, %v1568
    %v1576 = vadd.f32 %v1575, %v1569
    %v1577 = vadd.f32 %v1576, %v1570
    %v1578 = vadd.f32 %v1577, %v1571
    %v1579 = vrot.slane %v1578, 4
    %v1580 = vadd.f32 %v1578, %v1579
    %v1581 = vrot.slane %v1580, 2
    %v1582 = vadd.f32 %v1580, %v1581
    %v1583 = vrot.slane %v1582, 1
    %v1584 = vadd.f32 %v1582, %v1583
    %v1585 = vmul.f32 %v1584, %v1058
    %v1586 = vadd.f32 %v1585, 1e-05
    %v1587 = vrsqrt.pop %v1586
    %v1588 = vmul.f32 %v1556, %v1587
    %v1589 = vmul.f32 %v1557, %v1587
    %v1590 = vmul.f32 %v1558, %v1587
    %v1591 = vmul.f32 %v1559, %v1587
    %v1592 = vmul.f32 %v1560, %v1587
    %v1593 = vmul.f32 %v1561, %v1587
    %v1594 = vmul.f32 %v1562, %v1587
    %v1595 = vmul.f32 %v1563, %v1587
    %s1596 = scalar_lea.vmem [#allocation15], 1
    %v1597 = vld [vmem:[%s1596] sm:$0x1]
    %v1599 = vlaneseq
    %v1600 = vshrl.u32 %v1599, 7
    %v1601 = vsub.s32 0, %v1600
    %v1602 = vrot.slane %v1597, %v1601
    %v1604 = vmul.f32 %v1588, %v1602
    %v1605 = vmul.f32 %v1589, %v1602
    %v1606 = vmul.f32 %v1590, %v1602
    %v1607 = vmul.f32 %v1591, %v1602
    %v1608 = vmul.f32 %v1592, %v1602
    %v1609 = vmul.f32 %v1593, %v1602
    %v1610 = vmul.f32 %v1594, %v1602
    %v1611 = vmul.f32 %v1595, %v1602
    %s1612 = scalar_lea.vmem %s13, 1
    %v1613 = vld [vmem:[%s1612] sm:$0x1]
    %v1615 = vlaneseq
    %v1616 = vshrl.u32 %v1615, 7
    %v1617 = vsub.s32 0, %v1616
    %v1618 = vrot.slane %v1613, %v1617
    %v1620 = vadd.f32 %v1604, %v1618
    %v1621 = vadd.f32 %v1605, %v1618
    %v1622 = vadd.f32 %v1606, %v1618
    %v1623 = vadd.f32 %v1607, %v1618
    %v1624 = vadd.f32 %v1608, %v1618
    %v1625 = vadd.f32 %v1609, %v1618
    %v1626 = vadd.f32 %v1610, %v1618
    %v1627 = vadd.f32 %v1611, %v1618
    %v1628 = vadd.f32 %v1620, %v1138
    %v1629 = vadd.f32 %v1621, %v1139
    %v1630 = vadd.f32 %v1622, %v1140
    %v1631 = vadd.f32 %v1623, %v1141
    %v1632 = vadd.f32 %v1624, %v1142
    %v1633 = vadd.f32 %v1625, %v1143
    %v1634 = vadd.f32 %v1626, %v1144
    %v1635 = vadd.f32 %v1627, %v1145
    %v1636 = vmax.f32 %v1628, 0.0
    %v1637 = vmax.f32 %v1629, 0.0
    %v1638 = vmax.f32 %v1630, 0.0
    %v1639 = vmax.f32 %v1631, 0.0
    %v1640 = vmax.f32 %v1632, 0.0
    %v1641 = vmax.f32 %v1633, 0.0
    %v1642 = vmax.f32 %v1634, 0.0
    %v1643 = vmax.f32 %v1635, 0.0
    %v1644 = vpack.c.bf16 %v1637, %v1636
    %v1645 = vpack.c.bf16 %v1639, %v1638
    %v1646 = vpack.c.bf16 %v1641, %v1640
    %v1647 = vpack.c.bf16 %v1643, %v1642
    %1648 = vmatprep.subr.bf16.mxu0 0
    %1649 = vmatpush1.bf16.msra.mxu0 %v1644
    %1650 = vmatprep.subr.bf16.mxu0 0
    %1651 = vmatpush1.bf16.msra.mxu0 %v1645
    %1652 = vmatprep.subr.bf16.mxu0 0
    %1653 = vmatpush1.bf16.msra.mxu0 %v1646
    %1654 = vmatprep.subr.bf16.mxu0 0
    %1655 = vmatpush1.bf16.msra.mxu0 %v1647
    %1656 = vmatprep.subr.bf16.mxu0 0
    %1657 = vmatpush1.bf16.msra.mxu0 0
    %1658 = vmatprep.subr.bf16.mxu0 0
    %1659 = vmatpush1.bf16.msra.mxu0 0
    %1660 = vmatprep.subr.bf16.mxu0 0
    %1661 = vmatpush1.bf16.msra.mxu0 0
    %1662 = vmatprep.subr.bf16.mxu0 0
    %1663 = vmatpush1.bf16.msra.mxu0 0
    %1664 = vmatprep.subr.bf16.mxu0 0
    %1665 = vmatpush1.bf16.msra.mxu0 0
    %1666 = vmatprep.subr.bf16.mxu0 0
    %1667 = vmatpush1.bf16.msra.mxu0 0
    %1668 = vmatprep.subr.bf16.mxu0 0
    %1669 = vmatpush1.bf16.msra.mxu0 0
    %1670 = vmatprep.subr.bf16.mxu0 0
    %1671 = vmatpush1.bf16.msra.mxu0 0
    %1672 = vmatprep.subr.bf16.mxu0 0
    %1673 = vmatpush1.bf16.msra.mxu0 0
    %1674 = vmatprep.subr.bf16.mxu0 0
    %1675 = vmatpush1.bf16.msra.mxu0 0
    %1676 = vmatprep.subr.bf16.mxu0 0
    %1677 = vmatpush1.bf16.msra.mxu0 0
    %1678 = vmatprep.subr.bf16.mxu0 0
    %1679 = vmatpush1.bf16.msra.mxu0 0
    %1680 = vmatprep.mubr.bf16.mxu0 0
    %1681 = vmatmul.mubr.bf16.gmra.mrb[0].mxu0 %v632
    %v1682 = vpop.f32.mrb[0].mxu0
    %v1683 = vadd.f32 0.0, %v1682
    %v1684 = vpop.f32.mrb[0].mxu0
    %v1685 = vpop.f32.mrb[0].mxu0
    %v1686 = vadd.f32 0.0, %v1685
    %v1687 = vpop.f32.mrb[0].mxu0
    %1688 = vmatprep.mubr.bf16.mxu0 0
    %1689 = vmatmul.mubr.bf16.gmra.mrb[0].mxu0 %v635
    %v1690 = vpop.f32.mrb[0].mxu0
    %v1691 = vadd.f32 0.0, %v1690
    %v1692 = vpop.f32.mrb[0].mxu0
    %v1693 = vpop.f32.mrb[0].mxu0
    %v1694 = vadd.f32 0.0, %v1693
    %v1695 = vpop.f32.mrb[0].mxu0
    %1696 = vmatprep.mubr.bf16.mxu0 0
    %1697 = vmatmul.mubr.bf16.gmra.mrb[0].mxu0 %v638
    %v1698 = vpop.f32.mrb[0].mxu0
    %v1699 = vadd.f32 0.0, %v1698
    %v1700 = vpop.f32.mrb[0].mxu0
    %v1701 = vpop.f32.mrb[0].mxu0
    %v1702 = vadd.f32 0.0, %v1701
    %v1703 = vpop.f32.mrb[0].mxu0
    %1704 = vmatprep.mubr.bf16.mxu0 0
    %1705 = vmatmul.mubr.bf16.gmra.mrb[0].mxu0 %v641
    %v1706 = vpop.f32.mrb[0].mxu0
    %v1707 = vadd.f32 0.0, %v1706
    %v1708 = vpop.f32.mrb[0].mxu0
    %v1709 = vpop.f32.mrb[0].mxu0
    %v1710 = vadd.f32 0.0, %v1709
    %v1711 = vpop.f32.mrb[0].mxu0
    %1712 = vmatprep.mubr.bf16.mxu0 0
    %1713 = vmatmul.mubr.bf16.gmra.mrb[0].mxu0 %v644
    %v1714 = vpop.f32.mrb[0].mxu0
    %v1715 = vadd.f32 0.0, %v1714
    %v1716 = vpop.f32.mrb[0].mxu0
    %v1717 = vpop.f32.mrb[0].mxu0
    %v1718 = vadd.f32 0.0, %v1717
    %v1719 = vpop.f32.mrb[0].mxu0
    %1720 = vmatprep.mubr.bf16.mxu0 0
    %1721 = vmatmul.mubr.bf16.gmra.mrb[0].mxu0 %v647
    %v1722 = vpop.f32.mrb[0].mxu0
    %v1723 = vadd.f32 0.0, %v1722
    %v1724 = vpop.f32.mrb[0].mxu0
    %v1725 = vpop.f32.mrb[0].mxu0
    %v1726 = vadd.f32 0.0, %v1725
    %v1727 = vpop.f32.mrb[0].mxu0
    %1728 = vmatprep.mubr.bf16.mxu0 0
    %1729 = vmatmul.mubr.bf16.gmra.mrb[0].mxu0 %v650
    %v1730 = vpop.f32.mrb[0].mxu0
    %v1731 = vadd.f32 0.0, %v1730
    %v1732 = vpop.f32.mrb[0].mxu0
    %v1733 = vpop.f32.mrb[0].mxu0
    %v1734 = vadd.f32 0.0, %v1733
    %v1735 = vpop.f32.mrb[0].mxu0
    %1736 = vmatprep.mubr.bf16.mxu0 0
    %1737 = vmatmul.mubr.bf16.gmra.mrb[0].mxu0 %v653
    %v1738 = vpop.f32.mrb[0].mxu0
    %v1739 = vadd.f32 0.0, %v1738
    %v1740 = vpop.f32.mrb[0].mxu0
    %v1741 = vpop.f32.mrb[0].mxu0
    %v1742 = vadd.f32 0.0, %v1741
    %v1743 = vpop.f32.mrb[0].mxu0
    %1744 = vdwg.mxu0
    %v1745 = vmul.f32 %v1683, %v564
    %v1746 = vmul.f32 %v1686, %v567
    %v1747 = vmul.f32 %v1691, %v572
    %v1748 = vmul.f32 %v1694, %v575
    %v1749 = vmul.f32 %v1699, %v580
    %v1750 = vmul.f32 %v1702, %v583
    %v1751 = vmul.f32 %v1707, %v588
    %v1752 = vmul.f32 %v1710, %v591
    %v1753 = vmul.f32 %v1715, %v596
    %v1754 = vmul.f32 %v1718, %v599
    %v1755 = vmul.f32 %v1723, %v604
    %v1756 = vmul.f32 %v1726, %v607
    %v1757 = vmul.f32 %v1731, %v612
    %v1758 = vmul.f32 %v1734, %v615
    %v1759 = vmul.f32 %v1739, %v620
    %v1760 = vmul.f32 %v1742, %v623
    %v1761 = vpack.c.bf16 %v1746, %v1745
    %v1762 = vpack.c.bf16 %v1748, %v1747
    %v1763 = vpack.c.bf16 %v1750, %v1749
    %v1764 = vpack.c.bf16 %v1752, %v1751
    %v1765 = vpack.c.bf16 %v1754, %v1753
    %v1766 = vpack.c.bf16 %v1756, %v1755
    %v1767 = vpack.c.bf16 %v1758, %v1757
    %v1768 = vpack.c.bf16 %v1760, %v1759
    %1769 = vmatprep.subr.bf16.mxu0 0
    %1770 = vmatpush1.bf16.msra.mxu0 %v1761
    %1771 = vmatprep.subr.bf16.mxu0 0
    %1772 = vmatpush1.bf16.msra.mxu0 %v1762
    %1773 = vmatprep.subr.bf16.mxu0 0
    %1774 = vmatpush1.bf16.msra.mxu0 %v1763
    %1775 = vmatprep.subr.bf16.mxu0 0
    %1776 = vmatpush1.bf16.msra.mxu0 %v1764
    %1777 = vmatprep.subr.bf16.mxu0 0
    %1778 = vmatpush1.bf16.msra.mxu0 %v1765
    %1779 = vmatprep.subr.bf16.mxu0 0
    %1780 = vmatpush1.bf16.msra.mxu0 %v1766
    %1781 = vmatprep.subr.bf16.mxu0 0
    %1782 = vmatpush1.bf16.msra.mxu0 %v1767
    %1783 = vmatprep.subr.bf16.mxu0 0
    %1784 = vmatpush1.bf16.msra.mxu0 %v1768
    %1785 = vmatprep.subr.bf16.mxu0 0
    %1786 = vmatpush1.bf16.msra.mxu0 0
    %1787 = vmatprep.subr.bf16.mxu0 0
    %1788 = vmatpush1.bf16.msra.mxu0 0
    %1789 = vmatprep.subr.bf16.mxu0 0
    %1790 = vmatpush1.bf16.msra.mxu0 0
    %1791 = vmatprep.subr.bf16.mxu0 0
    %1792 = vmatpush1.bf16.msra.mxu0 0
    %1793 = vmatprep.subr.bf16.mxu0 0
    %1794 = vmatpush1.bf16.msra.mxu0 0
    %1795 = vmatprep.subr.bf16.mxu0 0
    %1796 = vmatpush1.bf16.msra.mxu0 0
    %1797 = vmatprep.subr.bf16.mxu0 0
    %1798 = vmatpush1.bf16.msra.mxu0 0
    %1799 = vmatprep.subr.bf16.mxu0 0
    %1800 = vmatpush1.bf16.msra.mxu0 0
    %1801 = vmatprep.mubr.bf16.mxu0 0
    %1802 = vmatmul.mubr.bf16.gmra.mrb[0].mxu0 %v349
    %v1803 = vpop.f32.mrb[0].mxu0
    %v1804 = vadd.f32 0.0, %v1803
    %v1805 = vpop.f32.mrb[0].mxu0
    %v1806 = vpop.f32.mrb[0].mxu0
    %v1807 = vadd.f32 0.0, %v1806
    %v1808 = vpop.f32.mrb[0].mxu0
    %1809 = vmatprep.mubr.bf16.mxu0 0
    %1810 = vmatmul.mubr.bf16.gmra.mrb[0].mxu0 %v350
    %v1811 = vpop.f32.mrb[0].mxu0
    %v1812 = vadd.f32 0.0, %v1811
    %v1813 = vpop.f32.mrb[0].mxu0
    %v1814 = vpop.f32.mrb[0].mxu0
    %v1815 = vadd.f32 0.0, %v1814
    %v1816 = vpop.f32.mrb[0].mxu0
    %1817 = vmatprep.mubr.bf16.mxu0 0
    %1818 = vmatmul.mubr.bf16.gmra.mrb[0].mxu0 %v351
    %v1819 = vpop.f32.mrb[0].mxu0
    %v1820 = vadd.f32 0.0, %v1819
    %v1821 = vpop.f32.mrb[0].mxu0
    %v1822 = vpop.f32.mrb[0].mxu0
    %v1823 = vadd.f32 0.0, %v1822
    %v1824 = vpop.f32.mrb[0].mxu0
    %1825 = vmatprep.mubr.bf16.mxu0 0
    %1826 = vmatmul.mubr.bf16.gmra.mrb[0].mxu0 %v352
    %v1827 = vpop.f32.mrb[0].mxu0
    %v1828 = vadd.f32 0.0, %v1827
    %v1829 = vpop.f32.mrb[0].mxu0
    %v1830 = vpop.f32.mrb[0].mxu0
    %v1831 = vadd.f32 0.0, %v1830
    %v1832 = vpop.f32.mrb[0].mxu0
    %1833 = vdwg.mxu0
    %v1834 = vpack.c.bf16 %v1807, %v1804
    %v1835 = vpack.c.bf16 %v1815, %v1812
    %v1836 = vpack.c.bf16 %v1823, %v1820
    %v1837 = vpack.c.bf16 %v1831, %v1828
    %s1838 = scalar_lea.vmem %s10, 256
    %v1839 = vld [vmem:[%s1838] sm:$0xf]
    %v1840 = vld [vmem:[%s1838 + $0x4] sm:$0xf]
    %v1841 = vld [vmem:[%s1838 + $0x8] sm:$0xf]
    %v1842 = vld [vmem:[%s1838 + $0xc] sm:$0xf]
    %v1843 = vld [vmem:[%s1838 + $0x10] sm:$0xf]
    %v1844 = vld [vmem:[%s1838 + $0x14] sm:$0xf]
    %v1845 = vld [vmem:[%s1838 + $0x18] sm:$0xf]
    %v1846 = vld [vmem:[%s1838 + $0x1c] sm:$0xf]
    %v1847 = vld [vmem:[%s1838 + $0x20] sm:$0xf]
    %v1848 = vld [vmem:[%s1838 + $0x24] sm:$0xf]
    %v1849 = vld [vmem:[%s1838 + $0x28] sm:$0xf]
    %v1850 = vld [vmem:[%s1838 + $0x2c] sm:$0xf]
    %v1851 = vld [vmem:[%s1838 + $0x30] sm:$0xf]
    %v1852 = vld [vmem:[%s1838 + $0x34] sm:$0xf]
    %v1853 = vld [vmem:[%s1838 + $0x38] sm:$0xf]
    %v1854 = vld [vmem:[%s1838 + $0x3c] sm:$0xf]
    %v1855 = vld [vmem:[%s1838 + $0x40] sm:$0xf]
    %v1856 = vld [vmem:[%s1838 + $0x44] sm:$0xf]
    %v1857 = vld [vmem:[%s1838 + $0x48] sm:$0xf]
    %v1858 = vld [vmem:[%s1838 + $0x4c] sm:$0xf]
    %v1859 = vld [vmem:[%s1838 + $0x50] sm:$0xf]
    %v1860 = vld [vmem:[%s1838 + $0x54] sm:$0xf]
    %v1861 = vld [vmem:[%s1838 + $0x58] sm:$0xf]
    %v1862 = vld [vmem:[%s1838 + $0x5c] sm:$0xf]
    %v1863 = vld [vmem:[%s1838 + $0x60] sm:$0xf]
    %v1864 = vld [vmem:[%s1838 + $0x64] sm:$0xf]
    %v1865 = vld [vmem:[%s1838 + $0x68] sm:$0xf]
    %v1866 = vld [vmem:[%s1838 + $0x6c] sm:$0xf]
    %v1867 = vld [vmem:[%s1838 + $0x70] sm:$0xf]
    %v1868 = vld [vmem:[%s1838 + $0x74] sm:$0xf]
    %v1869 = vld [vmem:[%s1838 + $0x78] sm:$0xf]
    %v1870 = vld [vmem:[%s1838 + $0x7c] sm:$0xf]
    %s1871 = scalar_lea.vmem %s11, 2
    %v1872 = vld [vmem:[%s1871] sm:$0x1]
    %v1874 = vlaneseq
    %v1875 = vshrl.u32 %v1874, 7
    %v1876 = vsub.s32 0, %v1875
    %v1877 = vrot.slane %v1872, %v1876
    %v1911 = vunpack.c.l.b16 %v1839
    %v1912 = vunpack.c.l.b16 %v1840
    %v1913 = vunpack.c.l.b16 %v1841
    %v1914 = vunpack.c.l.b16 %v1842
    %v1915 = vunpack.c.l.b16 %v1843
    %v1916 = vunpack.c.l.b16 %v1844
    %v1917 = vunpack.c.l.b16 %v1845
    %v1918 = vunpack.c.l.b16 %v1846
    %v1919 = vunpack.c.l.b16 %v1847
    %v1920 = vunpack.c.l.b16 %v1848
    %v1921 = vunpack.c.l.b16 %v1849
    %v1922 = vunpack.c.l.b16 %v1850
    %v1923 = vunpack.c.l.b16 %v1851
    %v1924 = vunpack.c.l.b16 %v1852
    %v1925 = vunpack.c.l.b16 %v1853
    %v1926 = vunpack.c.l.b16 %v1854
    %v1927 = vunpack.c.l.b16 %v1855
    %v1928 = vunpack.c.l.b16 %v1856
    %v1929 = vunpack.c.l.b16 %v1857
    %v1930 = vunpack.c.l.b16 %v1858
    %v1931 = vunpack.c.l.b16 %v1859
    %v1932 = vunpack.c.l.b16 %v1860
    %v1933 = vunpack.c.l.b16 %v1861
    %v1934 = vunpack.c.l.b16 %v1862
    %v1935 = vunpack.c.l.b16 %v1863
    %v1936 = vunpack.c.l.b16 %v1864
    %v1937 = vunpack.c.l.b16 %v1865
    %v1938 = vunpack.c.l.b16 %v1866
    %v1939 = vunpack.c.l.b16 %v1867
    %v1940 = vunpack.c.l.b16 %v1868
    %v1941 = vunpack.c.l.b16 %v1869
    %v1942 = vunpack.c.l.b16 %v1870
    %v1943 = vpack.c.b16 %v1912, %v1911
    %v1944 = vpack.c.b16 %v1914, %v1913
    %v1945 = vpack.c.b16 %v1916, %v1915
    %v1946 = vpack.c.b16 %v1918, %v1917
    %v1947 = vpack.c.b16 %v1920, %v1919
    %v1948 = vpack.c.b16 %v1922, %v1921
    %v1949 = vpack.c.b16 %v1924, %v1923
    %v1950 = vpack.c.b16 %v1926, %v1925
    %v1951 = vpack.c.b16 %v1928, %v1927
    %v1952 = vpack.c.b16 %v1930, %v1929
    %v1953 = vpack.c.b16 %v1932, %v1931
    %v1954 = vpack.c.b16 %v1934, %v1933
    %v1955 = vpack.c.b16 %v1936, %v1935
    %v1956 = vpack.c.b16 %v1938, %v1937
    %v1957 = vpack.c.b16 %v1940, %v1939
    %v1958 = vpack.c.b16 %v1942, %v1941
    %1975 = vmatprep.subr.bf16.mxu0 0
    %1976 = vmatpush1.bf16.msra.mxu0 %v1943
    %1977 = vmatprep.subr.bf16.mxu0 0
    %1978 = vmatpush1.bf16.msra.mxu0 %v1944
    %1979 = vmatprep.subr.bf16.mxu0 0
    %1980 = vmatpush1.bf16.msra.mxu0 %v1945
    %1981 = vmatprep.subr.bf16.mxu0 0
    %1982 = vmatpush1.bf16.msra.mxu0 %v1946
    %1983 = vmatprep.subr.bf16.mxu0 0
    %1984 = vmatpush1.bf16.msra.mxu0 %v1947
    %1985 = vmatprep.subr.bf16.mxu0 0
    %1986 = vmatpush1.bf16.msra.mxu0 %v1948
    %1987 = vmatprep.subr.bf16.mxu0 0
    %1988 = vmatpush1.bf16.msra.mxu0 %v1949
    %1989 = vmatprep.subr.bf16.mxu0 0
    %1990 = vmatpush1.bf16.msra.mxu0 %v1950
    %1991 = vmatprep.subr.bf16.mxu0 0
    %1992 = vmatpush1.bf16.msra.mxu0 %v1951
    %1993 = vmatprep.subr.bf16.mxu0 0
    %1994 = vmatpush1.bf16.msra.mxu0 %v1952
    %1995 = vmatprep.subr.bf16.mxu0 0
    %1996 = vmatpush1.bf16.msra.mxu0 %v1953
    %1997 = vmatprep.subr.bf16.mxu0 0
    %1998 = vmatpush1.bf16.msra.mxu0 %v1954
    %1999 = vmatprep.subr.bf16.mxu0 0
    %2000 = vmatpush1.bf16.msra.mxu0 %v1955
    %2001 = vmatprep.subr.bf16.mxu0 0
    %2002 = vmatpush1.bf16.msra.mxu0 %v1956
    %2003 = vmatprep.subr.bf16.mxu0 0
    %2004 = vmatpush1.bf16.msra.mxu0 %v1957
    %2005 = vmatprep.subr.bf16.mxu0 0
    %2006 = vmatpush1.bf16.msra.mxu0 %v1958
    %2007 = vmatprep.mubr.bf16.mxu0 %v1644
    %2008 = vmatmul.mubr.bf16.gmra.mrb[0].mxu0 %v1834
    %v2009 = vpop.f32.mrb[0].mxu0
    %v2010 = vadd.f32 %v1877, %v2009
    %v2011 = vpop.f32.mrb[0].mxu0
    %v2012 = vpop.f32.mrb[0].mxu0
    %v2013 = vadd.f32 %v1877, %v2012
    %v2014 = vpop.f32.mrb[0].mxu0
    %2015 = vmatprep.mubr.bf16.mxu0 %v1645
    %2016 = vmatmul.mubr.bf16.gmra.mrb[0].mxu0 %v1835
    %v2017 = vpop.f32.mrb[0].mxu0
    %v2018 = vadd.f32 %v1877, %v2017
    %v2019 = vpop.f32.mrb[0].mxu0
    %v2020 = vpop.f32.mrb[0].mxu0
    %v2021 = vadd.f32 %v1877, %v2020
    %v2022 = vpop.f32.mrb[0].mxu0
    %2023 = vmatprep.mubr.bf16.mxu0 %v1646
    %2024 = vmatmul.mubr.bf16.gmra.mrb[0].mxu0 %v1836
    %v2025 = vpop.f32.mrb[0].mxu0
    %v2026 = vadd.f32 %v1877, %v2025
    %v2027 = vpop.f32.mrb[0].mxu0
    %v2028 = vpop.f32.mrb[0].mxu0
    %v2029 = vadd.f32 %v1877, %v2028
    %v2030 = vpop.f32.mrb[0].mxu0
    %2031 = vmatprep.mubr.bf16.mxu0 %v1647
    %2032 = vmatmul.mubr.bf16.gmra.mrb[0].mxu0 %v1837
    %v2033 = vpop.f32.mrb[0].mxu0
    %v2034 = vadd.f32 %v1877, %v2033
    %v2035 = vpop.f32.mrb[0].mxu0
    %v2036 = vpop.f32.mrb[0].mxu0
    %v2037 = vadd.f32 %v1877, %v2036
    %v2038 = vpop.f32.mrb[0].mxu0
    %2039 = vdwg.mxu0
    %v2040 = vadd.f32 %v2010, %v2013
    %v2041 = vadd.f32 %v2040, %v2018
    %v2042 = vadd.f32 %v2041, %v2021
    %v2043 = vadd.f32 %v2042, %v2026
    %v2044 = vadd.f32 %v2043, %v2029
    %v2045 = vadd.f32 %v2044, %v2034
    %v2046 = vadd.f32 %v2045, %v2037
    %v2047 = vrot.slane %v2046, 4
    %v2048 = vadd.f32 %v2046, %v2047
    %v2049 = vrot.slane %v2048, 2
    %v2050 = vadd.f32 %v2048, %v2049
    %v2051 = vrot.slane %v2050, 1
    %v2052 = vadd.f32 %v2050, %v2051
    %v2053 = vmul.f32 %v2052, %v1058
    %v2054 = vsub.f32 %v2010, %v2053
    %v2055 = vsub.f32 %v2013, %v2053
    %v2056 = vsub.f32 %v2018, %v2053
    %v2057 = vsub.f32 %v2021, %v2053
    %v2058 = vsub.f32 %v2026, %v2053
    %v2059 = vsub.f32 %v2029, %v2053
    %v2060 = vsub.f32 %v2034, %v2053
    %v2061 = vsub.f32 %v2037, %v2053
    %v2062 = vmul.f32 %v2054, %v2054
    %v2063 = vmul.f32 %v2055, %v2055
    %v2064 = vmul.f32 %v2056, %v2056
    %v2065 = vmul.f32 %v2057, %v2057
    %v2066 = vmul.f32 %v2058, %v2058
    %v2067 = vmul.f32 %v2059, %v2059
    %v2068 = vmul.f32 %v2060, %v2060
    %v2069 = vmul.f32 %v2061, %v2061
    %v2070 = vadd.f32 %v2062, %v2063
    %v2071 = vadd.f32 %v2070, %v2064
    %v2072 = vadd.f32 %v2071, %v2065
    %v2073 = vadd.f32 %v2072, %v2066
    %v2074 = vadd.f32 %v2073, %v2067
    %v2075 = vadd.f32 %v2074, %v2068
    %v2076 = vadd.f32 %v2075, %v2069
    %v2077 = vrot.slane %v2076, 4
    %v2078 = vadd.f32 %v2076, %v2077
    %v2079 = vrot.slane %v2078, 2
    %v2080 = vadd.f32 %v2078, %v2079
    %v2081 = vrot.slane %v2080, 1
    %v2082 = vadd.f32 %v2080, %v2081
    %v2083 = vmul.f32 %v2082, %v1058
    %v2084 = vadd.f32 %v2083, 1e-05
    %v2085 = vrsqrt.pop %v2084
    %v2086 = vmul.f32 %v2054, %v2085
    %v2087 = vmul.f32 %v2055, %v2085
    %v2088 = vmul.f32 %v2056, %v2085
    %v2089 = vmul.f32 %v2057, %v2085
    %v2090 = vmul.f32 %v2058, %v2085
    %v2091 = vmul.f32 %v2059, %v2085
    %v2092 = vmul.f32 %v2060, %v2085
    %v2093 = vmul.f32 %v2061, %v2085
    %s2094 = scalar_lea.vmem [#allocation15], 2
    %v2095 = vld [vmem:[%s2094] sm:$0x1]
    %v2097 = vlaneseq
    %v2098 = vshrl.u32 %v2097, 7
    %v2099 = vsub.s32 0, %v2098
    %v2100 = vrot.slane %v2095, %v2099
    %v2102 = vmul.f32 %v2086, %v2100
    %v2103 = vmul.f32 %v2087, %v2100
    %v2104 = vmul.f32 %v2088, %v2100
    %v2105 = vmul.f32 %v2089, %v2100
    %v2106 = vmul.f32 %v2090, %v2100
    %v2107 = vmul.f32 %v2091, %v2100
    %v2108 = vmul.f32 %v2092, %v2100
    %v2109 = vmul.f32 %v2093, %v2100
    %s2110 = scalar_lea.vmem %s13, 2
    %v2111 = vld [vmem:[%s2110] sm:$0x1]
    %v2113 = vlaneseq
    %v2114 = vshrl.u32 %v2113, 7
    %v2115 = vsub.s32 0, %v2114
    %v2116 = vrot.slane %v2111, %v2115
    %v2118 = vadd.f32 %v2102, %v2116
    %v2119 = vadd.f32 %v2103, %v2116
    %v2120 = vadd.f32 %v2104, %v2116
    %v2121 = vadd.f32 %v2105, %v2116
    %v2122 = vadd.f32 %v2106, %v2116
    %v2123 = vadd.f32 %v2107, %v2116
    %v2124 = vadd.f32 %v2108, %v2116
    %v2125 = vadd.f32 %v2109, %v2116
    %v2126 = vadd.f32 %v2118, %v1636
    %v2127 = vadd.f32 %v2119, %v1637
    %v2128 = vadd.f32 %v2120, %v1638
    %v2129 = vadd.f32 %v2121, %v1639
    %v2130 = vadd.f32 %v2122, %v1640
    %v2131 = vadd.f32 %v2123, %v1641
    %v2132 = vadd.f32 %v2124, %v1642
    %v2133 = vadd.f32 %v2125, %v1643
    %v2134 = vmax.f32 %v2126, 0.0
    %v2135 = vmax.f32 %v2127, 0.0
    %v2136 = vmax.f32 %v2128, 0.0
    %v2137 = vmax.f32 %v2129, 0.0
    %v2138 = vmax.f32 %v2130, 0.0
    %v2139 = vmax.f32 %v2131, 0.0
    %v2140 = vmax.f32 %v2132, 0.0
    %v2141 = vmax.f32 %v2133, 0.0
    %2142 = vst [vmem:[#allocation18] sm:$0xff] %v2134
    %2143 = vst [vmem:[#allocation18 + $0x8] sm:$0xff] %v2135
    %2144 = vst [vmem:[#allocation18 + $0x10] sm:$0xff] %v2136
    %2145 = vst [vmem:[#allocation18 + $0x18] sm:$0xff] %v2137
    %2146 = vst [vmem:[#allocation18 + $0x20] sm:$0xff] %v2138
    %2147 = vst [vmem:[#allocation18 + $0x28] sm:$0xff] %v2139
    %2148 = vst [vmem:[#allocation18 + $0x30] sm:$0xff] %v2140
    %2149 = vst [vmem:[#allocation18 + $0x38] sm:$0xff] %v2141
    %v2150 = vpack.c.bf16 %v2135, %v2134
    %v2151 = vpack.c.bf16 %v2137, %v2136
    %v2152 = vpack.c.bf16 %v2139, %v2138
    %v2153 = vpack.c.bf16 %v2141, %v2140
    %v2154 = vld [vmem:[%s14] sm:$0xf]
    %v2155 = vld [vmem:[%s14 + $0x4] sm:$0xf]
    %v2156 = vld [vmem:[%s14 + $0x8] sm:$0xf]
    %v2157 = vld [vmem:[%s14 + $0xc] sm:$0xf]
    %v2158 = vld [vmem:[%s14 + $0x10] sm:$0xf]
    %v2159 = vld [vmem:[%s14 + $0x14] sm:$0xf]
    %v2160 = vld [vmem:[%s14 + $0x18] sm:$0xf]
    %v2161 = vld [vmem:[%s14 + $0x1c] sm:$0xf]
    %v2162 = vld [vmem:[%s14 + $0x20] sm:$0xf]
    %v2163 = vld [vmem:[%s14 + $0x24] sm:$0xf]
    %v2164 = vld [vmem:[%s14 + $0x28] sm:$0xf]
    %v2165 = vld [vmem:[%s14 + $0x2c] sm:$0xf]
    %v2166 = vld [vmem:[%s14 + $0x30] sm:$0xf]
    %v2167 = vld [vmem:[%s14 + $0x34] sm:$0xf]
    %v2168 = vld [vmem:[%s14 + $0x38] sm:$0xf]
    %v2169 = vld [vmem:[%s14 + $0x3c] sm:$0xf]
    %v2170 = vld [vmem:[%s15] sm:$0x1]
    %v2172 = vlaneseq
    %v2173 = vshrl.u32 %v2172, 7
    %v2174 = vsub.s32 0, %v2173
    %v2175 = vrot.slane %v2170, %v2174
    %v2193 = vunpack.c.l.b16 %v2154
    %v2194 = vunpack.c.l.b16 %v2155
    %v2195 = vunpack.c.l.b16 %v2156
    %v2196 = vunpack.c.l.b16 %v2157
    %v2197 = vunpack.c.l.b16 %v2158
    %v2198 = vunpack.c.l.b16 %v2159
    %v2199 = vunpack.c.l.b16 %v2160
    %v2200 = vunpack.c.l.b16 %v2161
    %v2201 = vunpack.c.l.b16 %v2162
    %v2202 = vunpack.c.l.b16 %v2163
    %v2203 = vunpack.c.l.b16 %v2164
    %v2204 = vunpack.c.l.b16 %v2165
    %v2205 = vunpack.c.l.b16 %v2166
    %v2206 = vunpack.c.l.b16 %v2167
    %v2207 = vunpack.c.l.b16 %v2168
    %v2208 = vunpack.c.l.b16 %v2169
    %v2209 = vpack.c.b16 %v2194, %v2193
    %v2210 = vpack.c.b16 %v2196, %v2195
    %v2211 = vpack.c.b16 %v2198, %v2197
    %v2212 = vpack.c.b16 %v2200, %v2199
    %v2213 = vpack.c.b16 %v2202, %v2201
    %v2214 = vpack.c.b16 %v2204, %v2203
    %v2215 = vpack.c.b16 %v2206, %v2205
    %v2216 = vpack.c.b16 %v2208, %v2207
    %2225 = vmatprep.subr.bf16.mxu0 0
    %2226 = vmatpush1.bf16.msra.mxu0 %v2209
    %2227 = vmatprep.subr.bf16.mxu0 0
    %2228 = vmatpush1.bf16.msra.mxu0 %v2210
    %2229 = vmatprep.subr.bf16.mxu0 0
    %2230 = vmatpush1.bf16.msra.mxu0 %v2211
    %2231 = vmatprep.subr.bf16.mxu0 0
    %2232 = vmatpush1.bf16.msra.mxu0 %v2212
    %2233 = vmatprep.subr.bf16.mxu0 0
    %2234 = vmatpush1.bf16.msra.mxu0 %v2213
    %2235 = vmatprep.subr.bf16.mxu0 0
    %2236 = vmatpush1.bf16.msra.mxu0 %v2214
    %2237 = vmatprep.subr.bf16.mxu0 0
    %2238 = vmatpush1.bf16.msra.mxu0 %v2215
    %2239 = vmatprep.subr.bf16.mxu0 0
    %2240 = vmatpush1.bf16.msra.mxu0 %v2216
    %2241 = vmatprep.subr.bf16.mxu0 0
    %2242 = vmatpush1.bf16.msra.mxu0 0
    %2243 = vmatprep.subr.bf16.mxu0 0
    %2244 = vmatpush1.bf16.msra.mxu0 0
    %2245 = vmatprep.subr.bf16.mxu0 0
    %2246 = vmatpush1.bf16.msra.mxu0 0
    %2247 = vmatprep.subr.bf16.mxu0 0
    %2248 = vmatpush1.bf16.msra.mxu0 0
    %2249 = vmatprep.subr.bf16.mxu0 0
    %2250 = vmatpush1.bf16.msra.mxu0 0
    %2251 = vmatprep.subr.bf16.mxu0 0
    %2252 = vmatpush1.bf16.msra.mxu0 0
    %2253 = vmatprep.subr.bf16.mxu0 0
    %2254 = vmatpush1.bf16.msra.mxu0 0
    %2255 = vmatprep.subr.bf16.mxu0 0
    %2256 = vmatpush1.bf16.msra.mxu0 0
    %2257 = vmatprep.mubr.bf16.mxu0 0
    %2258 = vmatmul.mubr.bf16.gmra.mrb[0].mxu0 %v2150
    %v2259 = vpop.f32.mrb[0].mxu0
    %v2260 = vadd.f32 %v2175, %v2259
    %v2261 = vpop.f32.mrb[0].mxu0
    %v2262 = vpop.f32.mrb[0].mxu0
    %v2263 = vadd.f32 %v2175, %v2262
    %v2264 = vpop.f32.mrb[0].mxu0
    %2265 = vmatprep.mubr.bf16.mxu0 0
    %2266 = vmatmul.mubr.bf16.gmra.mrb[0].mxu0 %v2151
    %v2267 = vpop.f32.mrb[0].mxu0
    %v2268 = vadd.f32 %v2175, %v2267
    %v2269 = vpop.f32.mrb[0].mxu0
    %v2270 = vpop.f32.mrb[0].mxu0
    %v2271 = vadd.f32 %v2175, %v2270
    %v2272 = vpop.f32.mrb[0].mxu0
    %2273 = vmatprep.mubr.bf16.mxu0 0
    %2274 = vmatmul.mubr.bf16.gmra.mrb[0].mxu0 %v2152
    %v2275 = vpop.f32.mrb[0].mxu0
    %v2276 = vadd.f32 %v2175, %v2275
    %v2277 = vpop.f32.mrb[0].mxu0
    %v2278 = vpop.f32.mrb[0].mxu0
    %v2279 = vadd.f32 %v2175, %v2278
    %v2280 = vpop.f32.mrb[0].mxu0
    %2281 = vmatprep.mubr.bf16.mxu0 0
    %2282 = vmatmul.mubr.bf16.gmra.mrb[0].mxu0 %v2153
    %v2283 = vpop.f32.mrb[0].mxu0
    %v2284 = vadd.f32 %v2175, %v2283
    %v2285 = vpop.f32.mrb[0].mxu0
    %v2286 = vpop.f32.mrb[0].mxu0
    %v2287 = vadd.f32 %v2175, %v2286
    %v2288 = vpop.f32.mrb[0].mxu0
    %2289 = vdwg.mxu0
    %v2290 = vmax.f32 %v2260, 0.0
    %v2291 = vmax.f32 %v2263, 0.0
    %v2292 = vmax.f32 %v2268, 0.0
    %v2293 = vmax.f32 %v2271, 0.0
    %v2294 = vmax.f32 %v2276, 0.0
    %v2295 = vmax.f32 %v2279, 0.0
    %v2296 = vmax.f32 %v2284, 0.0
    %v2297 = vmax.f32 %v2287, 0.0
    %v2298 = vpack.c.bf16 %v2291, %v2290
    %v2299 = vpack.c.bf16 %v2293, %v2292
    %v2300 = vpack.c.bf16 %v2295, %v2294
    %v2301 = vpack.c.bf16 %v2297, %v2296
    %v2302 = vld [vmem:[%s16] sm:$0xf]
    %v2303 = vld [vmem:[%s16 + $0x4] sm:$0xf]
    %v2304 = vld [vmem:[%s16 + $0x8] sm:$0xf]
    %v2305 = vld [vmem:[%s16 + $0xc] sm:$0xf]
    %v2306 = vld [vmem:[%s16 + $0x10] sm:$0xf]
    %v2307 = vld [vmem:[%s16 + $0x14] sm:$0xf]
    %v2308 = vld [vmem:[%s16 + $0x18] sm:$0xf]
    %v2309 = vld [vmem:[%s16 + $0x1c] sm:$0xf]
    %v2310 = vld [vmem:[%s16 + $0x20] sm:$0xf]
    %v2311 = vld [vmem:[%s16 + $0x24] sm:$0xf]
    %v2312 = vld [vmem:[%s16 + $0x28] sm:$0xf]
    %v2313 = vld [vmem:[%s16 + $0x2c] sm:$0xf]
    %v2314 = vld [vmem:[%s16 + $0x30] sm:$0xf]
    %v2315 = vld [vmem:[%s16 + $0x34] sm:$0xf]
    %v2316 = vld [vmem:[%s16 + $0x38] sm:$0xf]
    %v2317 = vld [vmem:[%s16 + $0x3c] sm:$0xf]
    %v2318 = vld [vmem:[#allocation2] sm:$0x1]
    %v2320 = vlaneseq
    %v2321 = vshrl.u32 %v2320, 7
    %v2322 = vsub.s32 0, %v2321
    %v2323 = vrot.slane %v2318, %v2322
    %v2341 = vunpack.c.l.b16 %v2302
    %v2342 = vunpack.c.l.b16 %v2303
    %v2343 = vunpack.c.l.b16 %v2304
    %v2344 = vunpack.c.l.b16 %v2305
    %v2345 = vunpack.c.l.b16 %v2306
    %v2346 = vunpack.c.l.b16 %v2307
    %v2347 = vunpack.c.l.b16 %v2308
    %v2348 = vunpack.c.l.b16 %v2309
    %v2349 = vunpack.c.l.b16 %v2310
    %v2350 = vunpack.c.l.b16 %v2311
    %v2351 = vunpack.c.l.b16 %v2312
    %v2352 = vunpack.c.l.b16 %v2313
    %v2353 = vunpack.c.l.b16 %v2314
    %v2354 = vunpack.c.l.b16 %v2315
    %v2355 = vunpack.c.l.b16 %v2316
    %v2356 = vunpack.c.l.b16 %v2317
    %v2357 = vpack.c.b16 %v2342, %v2341
    %v2358 = vpack.c.b16 %v2344, %v2343
    %v2359 = vpack.c.b16 %v2346, %v2345
    %v2360 = vpack.c.b16 %v2348, %v2347
    %v2361 = vpack.c.b16 %v2350, %v2349
    %v2362 = vpack.c.b16 %v2352, %v2351
    %v2363 = vpack.c.b16 %v2354, %v2353
    %v2364 = vpack.c.b16 %v2356, %v2355
    %2373 = vmatprep.subr.bf16.mxu0 0
    %2374 = vmatpush1.bf16.msra.mxu0 %v2357
    %2375 = vmatprep.subr.bf16.mxu0 0
    %2376 = vmatpush1.bf16.msra.mxu0 %v2358
    %2377 = vmatprep.subr.bf16.mxu0 0
    %2378 = vmatpush1.bf16.msra.mxu0 %v2359
    %2379 = vmatprep.subr.bf16.mxu0 0
    %2380 = vmatpush1.bf16.msra.mxu0 %v2360
    %2381 = vmatprep.subr.bf16.mxu0 0
    %2382 = vmatpush1.bf16.msra.mxu0 %v2361
    %2383 = vmatprep.subr.bf16.mxu0 0
    %2384 = vmatpush1.bf16.msra.mxu0 %v2362
    %2385 = vmatprep.subr.bf16.mxu0 0
    %2386 = vmatpush1.bf16.msra.mxu0 %v2363
    %2387 = vmatprep.subr.bf16.mxu0 0
    %2388 = vmatpush1.bf16.msra.mxu0 %v2364
    %2389 = vmatprep.subr.bf16.mxu0 0
    %2390 = vmatpush1.bf16.msra.mxu0 0
    %2391 = vmatprep.subr.bf16.mxu0 0
    %2392 = vmatpush1.bf16.msra.mxu0 0
    %2393 = vmatprep.subr.bf16.mxu0 0
    %2394 = vmatpush1.bf16.msra.mxu0 0
    %2395 = vmatprep.subr.bf16.mxu0 0
    %2396 = vmatpush1.bf16.msra.mxu0 0
    %2397 = vmatprep.subr.bf16.mxu0 0
    %2398 = vmatpush1.bf16.msra.mxu0 0
    %2399 = vmatprep.subr.bf16.mxu0 0
    %2400 = vmatpush1.bf16.msra.mxu0 0
    %2401 = vmatprep.subr.bf16.mxu0 0
    %2402 = vmatpush1.bf16.msra.mxu0 0
    %2403 = vmatprep.subr.bf16.mxu0 0
    %2404 = vmatpush1.bf16.msra.mxu0 0
    %2405 = vmatprep.mubr.bf16.mxu0 0
    %2406 = vmatmul.mubr.bf16.gmra.mrb[0].mxu0 %v2298
    %v2407 = vpop.f32.mrb[0].mxu0
    %v2408 = vadd.f32 %v2323, %v2407
    %v2409 = vpop.f32.mrb[0].mxu0
    %v2410 = vpop.f32.mrb[0].mxu0
    %v2411 = vadd.f32 %v2323, %v2410
    %v2412 = vpop.f32.mrb[0].mxu0
    %2413 = vmatprep.mubr.bf16.mxu0 0
    %2414 = vmatmul.mubr.bf16.gmra.mrb[0].mxu0 %v2299
    %v2415 = vpop.f32.mrb[0].mxu0
    %v2416 = vadd.f32 %v2323, %v2415
    %v2417 = vpop.f32.mrb[0].mxu0
    %v2418 = vpop.f32.mrb[0].mxu0
    %v2419 = vadd.f32 %v2323, %v2418
    %v2420 = vpop.f32.mrb[0].mxu0
    %2421 = vmatprep.mubr.bf16.mxu0 0
    %2422 = vmatmul.mubr.bf16.gmra.mrb[0].mxu0 %v2300
    %v2423 = vpop.f32.mrb[0].mxu0
    %v2424 = vadd.f32 %v2323, %v2423
    %v2425 = vpop.f32.mrb[0].mxu0
    %v2426 = vpop.f32.mrb[0].mxu0
    %v2427 = vadd.f32 %v2323, %v2426
    %v2428 = vpop.f32.mrb[0].mxu0
    %2429 = vmatprep.mubr.bf16.mxu0 0
    %2430 = vmatmul.mubr.bf16.gmra.mrb[0].mxu0 %v2301
    %v2431 = vpop.f32.mrb[0].mxu0
    %v2432 = vadd.f32 %v2323, %v2431
    %v2433 = vpop.f32.mrb[0].mxu0
    %v2434 = vpop.f32.mrb[0].mxu0
    %v2435 = vadd.f32 %v2323, %v2434
    %v2436 = vpop.f32.mrb[0].mxu0
    %2437 = vdwg.mxu0
    %2438 = vxpose.xlu0.b32.start [1/16] %v2408, 128
    %2439 = vxpose.xlu0.b32.cont [2/16] %v2411, 128
    %2440 = vxpose.xlu0.b32.cont [3/16] %v2416, 128
    %2441 = vxpose.xlu0.b32.cont [4/16] %v2419, 128
    %2442 = vxpose.xlu0.b32.cont [5/16] %v2424, 128
    %2443 = vxpose.xlu0.b32.cont [6/16] %v2427, 128
    %2444 = vxpose.xlu0.b32.cont [7/16] %v2432, 128
    %2445 = vxpose.xlu0.b32.cont [8/16] %v2435, 128
    %2446 = vxpose.xlu0.b32.cont [9/16] 0.0, 128
    %2447 = vxpose.xlu0.b32.cont [10/16] 0.0, 128
    %2448 = vxpose.xlu0.b32.cont [11/16] 0.0, 128
    %2449 = vxpose.xlu0.b32.cont [12/16] 0.0, 128
    %2450 = vxpose.xlu0.b32.cont [13/16] 0.0, 128
    %2451 = vxpose.xlu0.b32.cont [14/16] 0.0, 128
    %2452 = vxpose.xlu0.b32.cont [15/16] 0.0, 128
    %2453 = vxpose.xlu0.b32.end [16/16] 0.0, 128
    %v2454 = vpop.trf.xlu0
    %v2455 = vpop.trf.xlu0
    %v2456 = vpop.trf.xlu0
    %v2457 = vpop.trf.xlu0
    %v2458 = vpop.trf.xlu0
    %v2459 = vpop.trf.xlu0
    %v2460 = vpop.trf.xlu0
    %v2461 = vpop.trf.xlu0
    %v2462 = vpop.trf.xlu0
    %v2463 = vpop.trf.xlu0
    %v2464 = vpop.trf.xlu0
    %v2465 = vpop.trf.xlu0
    %v2466 = vpop.trf.xlu0
    %v2467 = vpop.trf.xlu0
    %v2468 = vpop.trf.xlu0
    %v2469 = vpop.trf.xlu0
    %v2470 = vlaneseq
    %v2471 = vshrl.u32 %v2470, 7
    %v2472 = vsub.s32 0, %v2471
    %v2473 = vrot.slane %v2454, %v2472
    %v2474 = vsel %vm357, %v2473, -1e+30
    %vm2475 = vcmask 517120
    %v2476 = vsel %vm2475, %v2474, -inf
    %2477 = vmax.xlane.f32.xlu0 %v2476
    %v2478 = vpop.xlane.xlu0 %2477
    %v2479 = vsub.f32 %v2474, %v2478
    %v2480 = vmul.f32 %v2479, 1.442695
    %v2481 = vpow.pop %v2480
    %v2482 = vmul.f32 %v2481, %v359
    %v2483 = vsel %vm2475, %v2482, 0.0
    %2484 = vadd.xlane.f32.xlu0 %v2483
    %v2485 = vpop.xlane.xlu0 %2484
    %v2486 = vrcp.pop %v2485
    %v2487 = vmul.f32 %v2482, %v2486
    %v2488 = vpack.c.bf16 %v2487, %v2487
    %v2490 = vsel %vm630, %v2488, 0
    %2492 = vmatprep.subr.bf16.mxu0 0
    %2493 = vmatpush1.bf16.msra.mxu0 %v2150
    %2494 = vmatprep.subr.bf16.mxu0 0
    %2495 = vmatpush1.bf16.msra.mxu0 %v2151
    %2496 = vmatprep.subr.bf16.mxu0 0
    %2497 = vmatpush1.bf16.msra.mxu0 %v2152
    %2498 = vmatprep.subr.bf16.mxu0 0
    %2499 = vmatpush1.bf16.msra.mxu0 %v2153
    %2500 = vmatprep.subr.bf16.mxu0 0
    %2501 = vmatpush1.bf16.msra.mxu0 0
    %2502 = vmatprep.subr.bf16.mxu0 0
    %2503 = vmatpush1.bf16.msra.mxu0 0
    %2504 = vmatprep.subr.bf16.mxu0 0
    %2505 = vmatpush1.bf16.msra.mxu0 0
    %2506 = vmatprep.subr.bf16.mxu0 0
    %2507 = vmatpush1.bf16.msra.mxu0 0
    %2508 = vmatprep.subr.bf16.mxu0 0
    %2509 = vmatpush1.bf16.msra.mxu0 0
    %2510 = vmatprep.subr.bf16.mxu0 0
    %2511 = vmatpush1.bf16.msra.mxu0 0
    %2512 = vmatprep.subr.bf16.mxu0 0
    %2513 = vmatpush1.bf16.msra.mxu0 0
    %2514 = vmatprep.subr.bf16.mxu0 0
    %2515 = vmatpush1.bf16.msra.mxu0 0
    %2516 = vmatprep.subr.bf16.mxu0 0
    %2517 = vmatpush1.bf16.msra.mxu0 0
    %2518 = vmatprep.subr.bf16.mxu0 0
    %2519 = vmatpush1.bf16.msra.mxu0 0
    %2520 = vmatprep.subr.bf16.mxu0 0
    %2521 = vmatpush1.bf16.msra.mxu0 0
    %2522 = vmatprep.subr.bf16.mxu0 0
    %2523 = vmatpush1.bf16.msra.mxu0 0
    %2524 = vmatprep.mubr.bf16.mxu0 0
    %2525 = vmatmul.mubr.bf16.gmra.mrb[0].mxu0 %v2490
    %v2526 = vpop.f32.mrb[0].mxu0
    %v2527 = vadd.f32 0.0, %v2526
    %v2528 = vpop.f32.mrb[0].mxu0
    %v2529 = vpop.f32.mrb[0].mxu0
    %v2530 = vpop.f32.mrb[0].mxu0
    %2531 = vdwg.mxu0
    %v2532 = vld [vmem:[#allocation8] sm:$0x3]
    %v2533 = vpack.c.bf16 %v2532, %v2532
    %v2534 = vld [vmem:[%s18] sm:$0xf]
    %v2535 = vld [vmem:[%s19] sm:$0x1]
    %v2537 = vlaneseq
    %v2538 = vshrl.u32 %v2537, 7
    %v2539 = vsub.s32 0, %v2538
    %v2540 = vrot.slane %v2535, %v2539
    %vm2542 = vcmask 64512
    %v2544 = vsel %vm2542, %v2533, 0
    %vm2546 = vcmask 1043456
    %v2548 = vsel %vm2546, %v2534, 0
    %2550 = vmatprep.subr.bf16.mxu0 0
    %2551 = vmatpush1.bf16.msra.mxu0 %v2548
    %2552 = vmatprep.subr.bf16.mxu0 0
    %2553 = vmatpush1.bf16.msra.mxu0 0
    %2554 = vmatprep.subr.bf16.mxu0 0
    %2555 = vmatpush1.bf16.msra.mxu0 0
    %2556 = vmatprep.subr.bf16.mxu0 0
    %2557 = vmatpush1.bf16.msra.mxu0 0
    %2558 = vmatprep.subr.bf16.mxu0 0
    %2559 = vmatpush1.bf16.msra.mxu0 0
    %2560 = vmatprep.subr.bf16.mxu0 0
    %2561 = vmatpush1.bf16.msra.mxu0 0
    %2562 = vmatprep.subr.bf16.mxu0 0
    %2563 = vmatpush1.bf16.msra.mxu0 0
    %2564 = vmatprep.subr.bf16.mxu0 0
    %2565 = vmatpush1.bf16.msra.mxu0 0
    %2566 = vmatprep.subr.bf16.mxu0 0
    %2567 = vmatpush1.bf16.msra.mxu0 0
    %2568 = vmatprep.subr.bf16.mxu0 0
    %2569 = vmatpush1.bf16.msra.mxu0 0
    %2570 = vmatprep.subr.bf16.mxu0 0
    %2571 = vmatpush1.bf16.msra.mxu0 0
    %2572 = vmatprep.subr.bf16.mxu0 0
    %2573 = vmatpush1.bf16.msra.mxu0 0
    %2574 = vmatprep.subr.bf16.mxu0 0
    %2575 = vmatpush1.bf16.msra.mxu0 0
    %2576 = vmatprep.subr.bf16.mxu0 0
    %2577 = vmatpush1.bf16.msra.mxu0 0
    %2578 = vmatprep.subr.bf16.mxu0 0
    %2579 = vmatpush1.bf16.msra.mxu0 0
    %2580 = vmatprep.subr.bf16.mxu0 0
    %2581 = vmatpush1.bf16.msra.mxu0 0
    %2582 = vmatprep.mubr.bf16.mxu0 0
    %2583 = vmatmul.mubr.bf16.gmra.mrb[0].mxu0 %v2544
    %v2584 = vpop.f32.mrb[0].mxu0
    %v2585 = vadd.f32 %v2540, %v2584
    %v2586 = vpop.f32.mrb[0].mxu0
    %v2587 = vpop.f32.mrb[0].mxu0
    %v2588 = vpop.f32.mrb[0].mxu0
    %2589 = vdwg.mxu0
    %v2590 = vpack.c.bf16 %v2527, %v2527
    %v2591 = vpack.c.bf16 %v2585, %v2585
    %v2592 = vld [vmem:[#allocation17] sm:$0xf]
    %v2593 = vld [vmem:[#allocation17 + $0x4] sm:$0xf]
    %v2594 = vld [vmem:[#allocation17 + $0x8] sm:$0xf]
    %v2595 = vld [vmem:[#allocation17 + $0xc] sm:$0xf]
    %v2596 = vld [vmem:[#allocation17 + $0x10] sm:$0xf]
    %v2597 = vld [vmem:[#allocation17 + $0x14] sm:$0xf]
    %v2598 = vld [vmem:[#allocation17 + $0x18] sm:$0xf]
    %v2599 = vld [vmem:[#allocation17 + $0x1c] sm:$0xf]
    %v2600 = vld [vmem:[#allocation17 + $0x20] sm:$0xf]
    %v2601 = vld [vmem:[#allocation17 + $0x24] sm:$0xf]
    %v2602 = vld [vmem:[#allocation17 + $0x28] sm:$0xf]
    %v2603 = vld [vmem:[#allocation17 + $0x2c] sm:$0xf]
    %v2604 = vld [vmem:[#allocation17 + $0x30] sm:$0xf]
    %v2605 = vld [vmem:[#allocation17 + $0x34] sm:$0xf]
    %v2606 = vld [vmem:[#allocation17 + $0x38] sm:$0xf]
    %v2607 = vld [vmem:[#allocation17 + $0x3c] sm:$0xf]
    %v2608 = vld [vmem:[#allocation17 + $0x40] sm:$0xf]
    %v2609 = vld [vmem:[#allocation17 + $0x44] sm:$0xf]
    %v2610 = vld [vmem:[#allocation17 + $0x48] sm:$0xf]
    %v2611 = vld [vmem:[#allocation17 + $0x4c] sm:$0xf]
    %v2612 = vld [vmem:[#allocation17 + $0x50] sm:$0xf]
    %v2613 = vld [vmem:[#allocation17 + $0x54] sm:$0xf]
    %v2614 = vld [vmem:[#allocation17 + $0x58] sm:$0xf]
    %v2615 = vld [vmem:[#allocation17 + $0x5c] sm:$0xf]
    %v2616 = vld [vmem:[#allocation17 + $0x60] sm:$0xf]
    %v2617 = vld [vmem:[#allocation17 + $0x64] sm:$0xf]
    %v2618 = vld [vmem:[#allocation17 + $0x68] sm:$0xf]
    %v2619 = vld [vmem:[#allocation17 + $0x6c] sm:$0xf]
    %v2620 = vld [vmem:[#allocation17 + $0x70] sm:$0xf]
    %v2621 = vld [vmem:[#allocation17 + $0x74] sm:$0xf]
    %v2622 = vld [vmem:[#allocation17 + $0x78] sm:$0xf]
    %v2623 = vld [vmem:[#allocation17 + $0x7c] sm:$0xf]
    %v2624 = vld [vmem:[%s21] sm:$0x1]
    %v2626 = vlaneseq
    %v2627 = vshrl.u32 %v2626, 7
    %v2628 = vsub.s32 0, %v2627
    %v2629 = vrot.slane %v2624, %v2628
    %v2663 = vunpack.c.l.b16 %v2592
    %v2664 = vunpack.c.l.b16 %v2593
    %v2665 = vunpack.c.l.b16 %v2594
    %v2666 = vunpack.c.l.b16 %v2595
    %v2667 = vunpack.c.l.b16 %v2596
    %v2668 = vunpack.c.l.b16 %v2597
    %v2669 = vunpack.c.l.b16 %v2598
    %v2670 = vunpack.c.l.b16 %v2599
    %v2671 = vunpack.c.l.b16 %v2600
    %v2672 = vunpack.c.l.b16 %v2601
    %v2673 = vunpack.c.l.b16 %v2602
    %v2674 = vunpack.c.l.b16 %v2603
    %v2675 = vunpack.c.l.b16 %v2604
    %v2676 = vunpack.c.l.b16 %v2605
    %v2677 = vunpack.c.l.b16 %v2606
    %v2678 = vunpack.c.l.b16 %v2607
    %v2679 = vunpack.c.l.b16 %v2608
    %v2680 = vunpack.c.l.b16 %v2609
    %v2681 = vunpack.c.l.b16 %v2610
    %v2682 = vunpack.c.l.b16 %v2611
    %v2683 = vunpack.c.l.b16 %v2612
    %v2684 = vunpack.c.l.b16 %v2613
    %v2685 = vunpack.c.l.b16 %v2614
    %v2686 = vunpack.c.l.b16 %v2615
    %v2687 = vunpack.c.l.b16 %v2616
    %v2688 = vunpack.c.l.b16 %v2617
    %v2689 = vunpack.c.l.b16 %v2618
    %v2690 = vunpack.c.l.b16 %v2619
    %v2691 = vunpack.c.l.b16 %v2620
    %v2692 = vunpack.c.l.b16 %v2621
    %v2693 = vunpack.c.l.b16 %v2622
    %v2694 = vunpack.c.l.b16 %v2623
    %v2695 = vpack.c.b16 %v2664, %v2663
    %v2696 = vpack.c.b16 %v2666, %v2665
    %v2697 = vpack.c.b16 %v2668, %v2667
    %v2698 = vpack.c.b16 %v2670, %v2669
    %v2699 = vpack.c.b16 %v2672, %v2671
    %v2700 = vpack.c.b16 %v2674, %v2673
    %v2701 = vpack.c.b16 %v2676, %v2675
    %v2702 = vpack.c.b16 %v2678, %v2677
    %v2703 = vpack.c.b16 %v2680, %v2679
    %v2704 = vpack.c.b16 %v2682, %v2681
    %v2705 = vpack.c.b16 %v2684, %v2683
    %v2706 = vpack.c.b16 %v2686, %v2685
    %v2707 = vpack.c.b16 %v2688, %v2687
    %v2708 = vpack.c.b16 %v2690, %v2689
    %v2709 = vpack.c.b16 %v2692, %v2691
    %v2710 = vpack.c.b16 %v2694, %v2693
    %2727 = vmatprep.subr.bf16.mxu0 0
    %2728 = vmatpush1.bf16.msra.mxu0 %v2695
    %2729 = vmatprep.subr.bf16.mxu0 0
    %2730 = vmatpush1.bf16.msra.mxu0 %v2696
    %2731 = vmatprep.subr.bf16.mxu0 0
    %2732 = vmatpush1.bf16.msra.mxu0 %v2697
    %2733 = vmatprep.subr.bf16.mxu0 0
    %2734 = vmatpush1.bf16.msra.mxu0 %v2698
    %2735 = vmatprep.subr.bf16.mxu0 0
    %2736 = vmatpush1.bf16.msra.mxu0 %v2699
    %2737 = vmatprep.subr.bf16.mxu0 0
    %2738 = vmatpush1.bf16.msra.mxu0 %v2700
    %2739 = vmatprep.subr.bf16.mxu0 0
    %2740 = vmatpush1.bf16.msra.mxu0 %v2701
    %2741 = vmatprep.subr.bf16.mxu0 0
    %2742 = vmatpush1.bf16.msra.mxu0 %v2702
    %2743 = vmatprep.subr.bf16.mxu0 0
    %2744 = vmatpush1.bf16.msra.mxu0 %v2703
    %2745 = vmatprep.subr.bf16.mxu0 0
    %2746 = vmatpush1.bf16.msra.mxu0 %v2704
    %2747 = vmatprep.subr.bf16.mxu0 0
    %2748 = vmatpush1.bf16.msra.mxu0 %v2705
    %2749 = vmatprep.subr.bf16.mxu0 0
    %2750 = vmatpush1.bf16.msra.mxu0 %v2706
    %2751 = vmatprep.subr.bf16.mxu0 0
    %2752 = vmatpush1.bf16.msra.mxu0 %v2707
    %2753 = vmatprep.subr.bf16.mxu0 0
    %2754 = vmatpush1.bf16.msra.mxu0 %v2708
    %2755 = vmatprep.subr.bf16.mxu0 0
    %2756 = vmatpush1.bf16.msra.mxu0 %v2709
    %2757 = vmatprep.subr.bf16.mxu0 0
    %2758 = vmatpush1.bf16.msra.mxu0 %v2710
    %2759 = vmatprep.mubr.bf16.mxu0 %v2591
    %2760 = vmatmul.mubr.bf16.gmra.mrb[0].mxu0 %v2590
    %v2761 = vpop.f32.mrb[0].mxu0
    %v2762 = vadd.f32 %v2629, %v2761
    %v2763 = vpop.f32.mrb[0].mxu0
    %v2764 = vpop.f32.mrb[0].mxu0
    %v2765 = vpop.f32.mrb[0].mxu0
    %2766 = vdwg.mxu0
    %2767 = vst [vmem:[#allocation19] sm:$0x3] %v2762
    // Predicated region
    $region126: #{tpu_custom_call.1} parent=1 // pred_check
      _
    $region127: #{tpu_custom_call.1} parent=1 // pred_check_branch
      %2769 = sbr.rel (0) target = $region129
    $region128: #{tpu_custom_call.1} parent=1 // pred_region
      %s2771 = ssub.s32 1024, 1024
      %2772 = vsyncadd [#allocation5], %s2771
      %s2773 = sshll.u32 [#allocation18], 4
      %s2774 = int_to_ptr.vmem [resolvable:$true] %s2773
      %2779 = dma.vmem_to_hbm [thread:$0]  %s2774, 1024, %s22, [#allocation5], 128, 128, 8
    $region129: #{tpu_custom_call.1} parent=1 // pred_fallthru
      _
    // Predicated region
    $region130: #{tpu_custom_call.1} parent=1 // pred_check
      _
    $region131: #{tpu_custom_call.1} parent=1 // pred_check_branch
      %2781 = sbr.rel (0) target = $region133
    $region132: #{tpu_custom_call.1} parent=1 // pred_region
      %s2783 = ssub.s32 32, 32
      %2784 = vsyncadd [#allocation20], %s2783
      %s2786 = sshll.u32 [#allocation19], 4
      %s2787 = int_to_ptr.vmem [resolvable:$true] %s2786
      %2789 = dma.vmem_to_hbm [thread:$0]  %s2787, 32, %s23, [#allocation20]
    $region133: #{tpu_custom_call.1} parent=1 // pred_fallthru
      _
    // Predicated region
    $region134: #{tpu_custom_call.1} parent=1 // pred_check
      _
    $region135: #{tpu_custom_call.1} parent=1 // pred_check_branch
      %2791 = sbr.rel (0) target = $region137
    $region136: #{tpu_custom_call.1} parent=1 // pred_region
      %2792 = dma.done [#allocation5], 1024
    $region137: #{tpu_custom_call.1} parent=1 // pred_fallthru
      _
    // Predicated region
    $region138: #{tpu_custom_call.1} parent=1 // pred_check
      _
    $region139: #{tpu_custom_call.1} parent=1 // pred_check_branch
      %2794 = sbr.rel (0) target = $region141
    $region140: #{tpu_custom_call.1} parent=1 // pred_region
      %2795 = dma.done [#allocation20], 32
    $region141: #{tpu_custom_call.1} parent=1 // pred_fallthru
      _
    %2796 = vsyncpa [#allocation4], 1
    %2797 = vsyncpa [#allocation7], 1
    %2798 = vsyncpa [#allocation10], 1
    %2799 = vsyncpa [#allocation13], 1
    %2800 = vsyncpa [#allocation16], 1
    %2801 = vsyncpa [#allocation5], 1
    %2802 = vsyncpa [#allocation20], 1

</llo_original>
